<compile_context>
chip_gen: v7x
topology: tpu7x:2x2x1
jax: 0.10.0
libtpu: 0.0.40
codegen_flags: <defaults>
</compile_context>

<pallas_src>
import functools

import jax
import jax.numpy as jnp
from jax.experimental import pallas as pl
from jax.experimental.pallas import tpu as pltpu


# ----------------------------------------------------------------------------
# Fused ResidualBlock kernel (one grid step == NB batch elements)
# ----------------------------------------------------------------------------
def _residual_block_kernel(x_ref, w1_ref, b1_ref, w2_ref, b2_ref, out_ref,
                           pad_ref, col_ref, *, NB, H, W, C):
    # x_ref:   (NB, H, W, C)      f32   input feature maps (NB batch elements)
    # w*_ref:  (9*C, C)           bf16  conv weights, BN scale folded, im2col layout
    # b*_ref:  (1, C)             f32   folded BN/conv bias
    # out_ref: (NB*H*W, C)        f32   output slab
    # pad_ref: (NB, H+2, W+2, C)  bf16  VMEM scratch, zero halo
    # col_ref: (NB*H*W, 9*C)      bf16  VMEM scratch, im2col slab
    M = NB * H * W

    # --- zero only the 1-pixel halo strips of the padded scratch -------------
    # Invariant: no store below ever touches the halo; the interior is fully
    # overwritten before every conv, so only these strips must be zero.
    pad_ref[:, 0:1, :, :] = jnp.zeros((NB, 1, W + 2, C), jnp.bfloat16)
    pad_ref[:, H + 1:H + 2, :, :] = jnp.zeros((NB, 1, W + 2, C), jnp.bfloat16)
    pad_ref[:, 1:H + 1, 0:1, :] = jnp.zeros((NB, H, 1, C), jnp.bfloat16)
    pad_ref[:, 1:H + 1, W + 1:W + 2, :] = jnp.zeros((NB, H, 1, C), jnp.bfloat16)

    # Taps grouped so each col_ref write spans a multiple of 128 lanes
    # (4 taps * 32 channels = 128 lanes when C == 32).
    taps_per_store = (128 // C) if (C < 128 and 128 % C == 0) else 1

    def conv3x3(w_ref):
        """3x3 conv over the current pad_ref interior: one K=9*C MXU matmul."""
        xp = pad_ref[...]                                    # (NB, H+2, W+2, C) bf16
        for g in range(0, 9, taps_per_store):
            n_t = min(taps_per_store, 9 - g)
            parts = []
            for t in range(g, g + n_t):
                dy, dx = divmod(t, 3)
                parts.append(xp[:, dy:dy + H, dx:dx + W, :].reshape(M, C))
            chunk = parts[0] if n_t == 1 else jnp.concatenate(parts, axis=-1)
            col_ref[:, g * C:(g + n_t) * C] = chunk          # 128-lane aligned store
        return jnp.dot(col_ref[...], w_ref[...],
                       preferred_element_type=jnp.float32)   # (M, C) f32

    x = x_ref[...]                                           # (NB, H, W, C) f32

    # conv1 + BN1(folded) + ReLU -> stored straight into the pad interior (bf16)
    pad_ref[:, 1:H + 1, 1:W + 1, :] = x.astype(jnp.bfloat16)
    h = jnp.maximum(conv3x3(w1_ref) + b1_ref[...], 0.0)      # (M, C) f32
    pad_ref[:, 1:H + 1, 1:W + 1, :] = h.reshape(NB, H, W, C).astype(jnp.bfloat16)

    # conv2 + BN2(folded) + residual + ReLU
    y = conv3x3(w2_ref) + b2_ref[...] + x.reshape(M, C)
    out_ref[...] = jnp.maximum(y, 0.0)


def _pick_batch_tile(N, HW):
    """Images per grid step: target ~512 im2col rows, keep >=2 grid steps."""
    target = max(1, 512 // HW)
    if N >= 2:
        target = min(target, max(1, N // 2))   # leave >=2 steps for v7x megacore
    target = min(target, N)
    for nb in range(target, 0, -1):            # largest divisor of N <= target
        if N % nb == 0:
            return nb
    return 1


# ----------------------------------------------------------------------------
# Fused forward, native NHWC (no layout transposes around the kernel)
# ----------------------------------------------------------------------------
def residual_block_forward_nhwc(x_nhwc, params):
    x = x_nhwc.astype(jnp.float32)
    N, H, W, C = x.shape
    NB = _pick_batch_tile(N, H * W)
    M = NB * H * W
    num_steps = N // NB

    kernel = functools.partial(_residual_block_kernel, NB=NB, H=H, W=W, C=C)

    # Explicit VMEM budget: scratches + double-buffered in/out blocks + params.
    x_blk = NB * H * W * C * 4
    out_blk = M * C * 4
    w_bytes = 9 * C * C * 2
    b_bytes = C * 4
    pad_bytes = NB * (H + 2) * (W + 2) * C * 2
    col_bytes = M * 9 * C * 2
    vmem_needed = (2 * (x_blk + out_blk) + 2 * 2 * (w_bytes + b_bytes)
                   + pad_bytes + col_bytes)
    vmem_limit = int(min(96 * 2**20, max(32 * 2**20, 2 * vmem_needed)))

    out2d = pl.pallas_call(
        kernel,
        out_shape=jax.ShapeDtypeStruct((N * H * W, C), jnp.float32),
        grid=(num_steps,),
        in_specs=[
            pl.BlockSpec((NB, H, W, C), lambda i: (i, 0, 0, 0)),   # x (NB images)
            pl.BlockSpec((9 * C, C), lambda i: (0, 0)),            # w1 (resident)
            pl.BlockSpec((1, C), lambda i: (0, 0)),                # b1
            pl.BlockSpec((9 * C, C), lambda i: (0, 0)),            # w2
            pl.BlockSpec((1, C), lambda i: (0, 0)),                # b2
        ],
        out_specs=pl.BlockSpec((M, C), lambda i: (i, 0)),
        scratch_shapes=[
            pltpu.VMEM((NB, H + 2, W + 2, C), jnp.bfloat16),       # padded buffer
            pltpu.VMEM((M, 9 * C), jnp.bfloat16),                  # im2col slab
        ],
        compiler_params=pltpu.CompilerParams(
            dimension_semantics=("parallel",),
            vmem_limit_bytes=vmem_limit),
    )(x, params['w1'], params['b1'], params['w2'], params['b2'])

    return out2d.reshape(N, H, W, C)


def residual_block_forward(x_nchw, params):
    """PyTorch-layout (NCHW) convenience wrapper.

    NOTE: the two transposes each cost an extra HBM round trip; keep data in
    NHWC (residual_block_forward_nhwc) inside a real pipeline.
    """
    x = jnp.transpose(x_nchw, (0, 2, 3, 1))
    y = residual_block_forward_nhwc(x, params)
    return jnp.transpose(y, (0, 3, 1, 2))


# ----------------------------------------------------------------------------
# Deterministic synthetic parameters (BN eval-mode folded; scale into weights)
# ----------------------------------------------------------------------------
def init_residual_block_params(key, num_filters):
    C = num_filters
    eps = 1e-5
    ks = jax.random.split(key, 10)

    def conv_bn(k0, k1, k2, k3, k4):
        w = jax.random.normal(k0, (9, C, C), jnp.float32) / jnp.sqrt(9.0 * C)
        cb = 0.05 * jax.random.normal(k1, (C,), jnp.float32)
        gamma = 1.0 + 0.1 * jax.random.normal(k2, (C,), jnp.float32)
        beta = 0.1 * jax.random.normal(k3, (C,), jnp.float32)
        mean = 0.05 * jax.random.normal(k4, (C,), jnp.float32)
        var = jnp.ones((C,), jnp.float32)
        scale = gamma / jnp.sqrt(var + eps)
        w_folded = w * scale                               # fold BN scale into weights
        bias = (beta + (cb - mean) * scale).reshape(1, C)  # folded bias
        return w_folded, bias

    w1, b1 = conv_bn(*ks[0:5])
    w2, b2 = conv_bn(*ks[5:10])

    params = {
        'w1': w1.reshape(9 * C, C).astype(jnp.bfloat16),   # bf16 MXU operands
        'b1': b1,
        'w2': w2.reshape(9 * C, C).astype(jnp.bfloat16),
        'b2': b2,
    }
    ref_params = {'w1': w1, 'b1': b1, 'w2': w2, 'b2': b2}  # f32 for reference check
    return params, ref_params


# ----------------------------------------------------------------------------
# Pure-JAX reference (same folded-BN eval semantics, f32 throughout, NHWC)
# ----------------------------------------------------------------------------
def residual_block_reference_nhwc(x_nhwc, ref_params):
    x = x_nhwc.astype(jnp.float32)

    def conv3x3(z, w9, b):
        w = w9.reshape(3, 3, w9.shape[1], w9.shape[2])     # HWIO
        y = jax.lax.conv_general_dilated(
            z, w, (1, 1), 'SAME', dimension_numbers=('NHWC', 'HWIO', 'NHWC'))
        return y + b.reshape(1, 1, 1, -1)

    h = jnp.maximum(conv3x3(x, ref_params['w1'], ref_params['b1']), 0.0)
    y = conv3x3(h, ref_params['w2'], ref_params['b2']) + x
    return jnp.maximum(y, 0.0)


if __name__ == "__main__":
    num_filters = 32
    batch, H, W = 4, 8, 8

    key = jax.random.PRNGKey(0)
    pkey, xkey = jax.random.split(key)
    params, ref_params = init_residual_block_params(pkey, num_filters)

    # Native NHWC fast path (no layout transposes around the kernel).
    x_nhwc = jax.random.normal(xkey, (batch, H, W, num_filters), jnp.float32)
    fwd = jax.jit(residual_block_forward_nhwc)
    out = fwd(x_nhwc, params)
    jax.block_until_ready(out)

    assert out.shape == (batch, H, W, num_filters), out.shape
    assert bool(jnp.all(jnp.isfinite(out)))

    # Correctness vs pure-JAX f32 reference (loose tol: kernel matmuls are bf16).
    ref = residual_block_reference_nhwc(x_nhwc, ref_params)
    max_err = float(jnp.max(jnp.abs(out - ref)))
    assert max_err < 0.2, f"max abs error vs reference (NHWC): {max_err}"

    # PyTorch-layout (NCHW) wrapper: semantics parity with the nn.Module.
    x_nchw = jnp.transpose(x_nhwc, (0, 3, 1, 2))
    out_nchw = jax.jit(residual_block_forward)(x_nchw, params)
    jax.block_until_ready(out_nchw)
    ref_nchw = jnp.transpose(ref, (0, 3, 1, 2))
    max_err_nchw = float(jnp.max(jnp.abs(out_nchw - ref_nchw)))
    assert out_nchw.shape == (batch, num_filters, H, W), out_nchw.shape
    assert max_err_nchw < 0.2, f"max abs error vs reference (NCHW): {max_err_nchw}"

    print("KERNEL_OK")
</pallas_src>

<mosaic_0001>
module attributes {stable_mosaic.version = 11 : i64} {
  func.func @_residual_block_kernel(%arg0: i32, %arg1: memref<2x8x8x32xf32, #tpu.memory_space<vmem>>, %arg2: memref<288x32xbf16, #tpu.memory_space<vmem>>, %arg3: memref<1x32xf32, #tpu.memory_space<vmem>>, %arg4: memref<288x32xbf16, #tpu.memory_space<vmem>>, %arg5: memref<1x32xf32, #tpu.memory_space<vmem>>, %arg6: memref<128x32xf32, #tpu.memory_space<vmem>>, %arg7: memref<2x10x10x32xbf16, #tpu.memory_space<vmem>>, %arg8: memref<128x288xbf16, #tpu.memory_space<vmem>>) attributes {dimension_semantics = [#tpu.dimension_semantics<parallel>], iteration_bounds = array<i64: 2>, scalar_prefetch = 0 : i64, scratch_operands = 2 : i64, tpu.core_type = #tpu.core_type<tc>, window_params = [{transform_indices = @transform_0, window_bounds = array<i64: 2, 8, 8, 32>}, {pipeline_mode = #tpu.pipeline_mode<synchronous>, transform_indices = @transform_1, window_bounds = array<i64: 288, 32>}, {pipeline_mode = #tpu.pipeline_mode<synchronous>, transform_indices = @transform_2, window_bounds = array<i64: 1, 32>}, {pipeline_mode = #tpu.pipeline_mode<synchronous>, transform_indices = @transform_3, window_bounds = array<i64: 288, 32>}, {pipeline_mode = #tpu.pipeline_mode<synchronous>, transform_indices = @transform_4, window_bounds = array<i64: 1, 32>}, {transform_indices = @transform_5, window_bounds = array<i64: 128, 32>}]} {
    %cst = arith.constant 0.000000e+00 : bf16
    %0 = vector.broadcast %cst : bf16 to vector<2x1x10x32xbf16>
    %c0 = arith.constant 0 : index
    %c0_0 = arith.constant 0 : index
    %c0_1 = arith.constant 0 : index
    %c0_2 = arith.constant 0 : index
    %1 = vector.load %arg7[%c0, %c0_0, %c0_1, %c0_2] : memref<2x10x10x32xbf16, #tpu.memory_space<vmem>>, vector<2x1x10x32xbf16>
    tpu.vector_store %arg7[%c0, %c0_0, %c0_1, %c0_2], %0 {strides = array<i32>} : memref<2x10x10x32xbf16, #tpu.memory_space<vmem>>, vector<2x1x10x32xbf16>,
    %cst_3 = arith.constant 0.000000e+00 : bf16
    %2 = vector.broadcast %cst_3 : bf16 to vector<2x1x10x32xbf16>
    %c0_4 = arith.constant 0 : index
    %c9 = arith.constant 9 : index
    %c0_5 = arith.constant 0 : index
    %c0_6 = arith.constant 0 : index
    %3 = vector.load %arg7[%c0_4, %c9, %c0_5, %c0_6] : memref<2x10x10x32xbf16, #tpu.memory_space<vmem>>, vector<2x1x10x32xbf16>
    tpu.vector_store %arg7[%c0_4, %c9, %c0_5, %c0_6], %2 {strides = array<i32>} : memref<2x10x10x32xbf16, #tpu.memory_space<vmem>>, vector<2x1x10x32xbf16>,
    %cst_7 = arith.constant 0.000000e+00 : bf16
    %4 = vector.broadcast %cst_7 : bf16 to vector<2x8x1x32xbf16>
    %c0_8 = arith.constant 0 : index
    %c1 = arith.constant 1 : index
    %c0_9 = arith.constant 0 : index
    %c0_10 = arith.constant 0 : index
    %5 = vector.load %arg7[%c0_8, %c1, %c0_9, %c0_10] : memref<2x10x10x32xbf16, #tpu.memory_space<vmem>>, vector<2x8x1x32xbf16>
    tpu.vector_store %arg7[%c0_8, %c1, %c0_9, %c0_10], %4 {strides = array<i32>} : memref<2x10x10x32xbf16, #tpu.memory_space<vmem>>, vector<2x8x1x32xbf16>,
    %cst_11 = arith.constant 0.000000e+00 : bf16
    %6 = vector.broadcast %cst_11 : bf16 to vector<2x8x1x32xbf16>
    %c0_12 = arith.constant 0 : index
    %c1_13 = arith.constant 1 : index
    %c9_14 = arith.constant 9 : index
    %c0_15 = arith.constant 0 : index
    %7 = vector.load %arg7[%c0_12, %c1_13, %c9_14, %c0_15] : memref<2x10x10x32xbf16, #tpu.memory_space<vmem>>, vector<2x8x1x32xbf16>
    tpu.vector_store %arg7[%c0_12, %c1_13, %c9_14, %c0_15], %6 {strides = array<i32>} : memref<2x10x10x32xbf16, #tpu.memory_space<vmem>>, vector<2x8x1x32xbf16>,
    %c0_16 = arith.constant 0 : index
    %c0_17 = arith.constant 0 : index
    %c0_18 = arith.constant 0 : index
    %c0_19 = arith.constant 0 : index
    %8 = vector.load %arg1[%c0_16, %c0_17, %c0_18, %c0_19] : memref<2x8x8x32xf32, #tpu.memory_space<vmem>>, vector<2x8x8x32xf32>
    %9 = arith.truncf %8 : vector<2x8x8x32xf32> to vector<2x8x8x32xbf16>
    %c0_20 = arith.constant 0 : index
    %c1_21 = arith.constant 1 : index
    %c1_22 = arith.constant 1 : index
    %c0_23 = arith.constant 0 : index
    %10 = vector.load %arg7[%c0_20, %c1_21, %c1_22, %c0_23] : memref<2x10x10x32xbf16, #tpu.memory_space<vmem>>, vector<2x8x8x32xbf16>
    tpu.vector_store %arg7[%c0_20, %c1_21, %c1_22, %c0_23], %9 {strides = array<i32>} : memref<2x10x10x32xbf16, #tpu.memory_space<vmem>>, vector<2x8x8x32xbf16>,
    %c0_24 = arith.constant 0 : index
    %c0_25 = arith.constant 0 : index
    %c0_26 = arith.constant 0 : index
    %c0_27 = arith.constant 0 : index
    %11 = vector.load %arg7[%c0_24, %c0_25, %c0_26, %c0_27] : memref<2x10x10x32xbf16, #tpu.memory_space<vmem>>, vector<2x10x10x32xbf16>
    %12 = vector.extract_strided_slice %11 {offsets = [0, 0, 0, 0], sizes = [2, 8, 8, 32], strides = [1, 1, 1, 1]} : vector<2x10x10x32xbf16> to vector<2x8x8x32xbf16>
    %13 = vector.shape_cast %12 : vector<2x8x8x32xbf16> to vector<128x32xbf16>
    %14 = vector.extract_strided_slice %11 {offsets = [0, 0, 1, 0], sizes = [2, 8, 8, 32], strides = [1, 1, 1, 1]} : vector<2x10x10x32xbf16> to vector<2x8x8x32xbf16>
    %15 = vector.shape_cast %14 : vector<2x8x8x32xbf16> to vector<128x32xbf16>
    %16 = vector.extract_strided_slice %11 {offsets = [0, 0, 2, 0], sizes = [2, 8, 8, 32], strides = [1, 1, 1, 1]} : vector<2x10x10x32xbf16> to vector<2x8x8x32xbf16>
    %17 = vector.shape_cast %16 : vector<2x8x8x32xbf16> to vector<128x32xbf16>
    %18 = vector.extract_strided_slice %11 {offsets = [0, 1, 0, 0], sizes = [2, 8, 8, 32], strides = [1, 1, 1, 1]} : vector<2x10x10x32xbf16> to vector<2x8x8x32xbf16>
    %19 = vector.shape_cast %18 : vector<2x8x8x32xbf16> to vector<128x32xbf16>
    %20 = tpu.concatenate %13, %15, %17, %19 in 1 : vector<128x32xbf16>, vector<128x32xbf16>, vector<128x32xbf16>, vector<128x32xbf16> -> vector<128x128xbf16>
    %c0_28 = arith.constant 0 : index
    %c0_29 = arith.constant 0 : index
    %21 = vector.load %arg8[%c0_28, %c0_29] : memref<128x288xbf16, #tpu.memory_space<vmem>>, vector<128x128xbf16>
    tpu.vector_store %arg8[%c0_28, %c0_29], %20 {strides = array<i32>} : memref<128x288xbf16, #tpu.memory_space<vmem>>, vector<128x128xbf16>,
    %22 = vector.extract_strided_slice %11 {offsets = [0, 1, 1, 0], sizes = [2, 8, 8, 32], strides = [1, 1, 1, 1]} : vector<2x10x10x32xbf16> to vector<2x8x8x32xbf16>
    %23 = vector.shape_cast %22 : vector<2x8x8x32xbf16> to vector<128x32xbf16>
    %24 = vector.extract_strided_slice %11 {offsets = [0, 1, 2, 0], sizes = [2, 8, 8, 32], strides = [1, 1, 1, 1]} : vector<2x10x10x32xbf16> to vector<2x8x8x32xbf16>
    %25 = vector.shape_cast %24 : vector<2x8x8x32xbf16> to vector<128x32xbf16>
    %26 = vector.extract_strided_slice %11 {offsets = [0, 2, 0, 0], sizes = [2, 8, 8, 32], strides = [1, 1, 1, 1]} : vector<2x10x10x32xbf16> to vector<2x8x8x32xbf16>
    %27 = vector.shape_cast %26 : vector<2x8x8x32xbf16> to vector<128x32xbf16>
    %28 = vector.extract_strided_slice %11 {offsets = [0, 2, 1, 0], sizes = [2, 8, 8, 32], strides = [1, 1, 1, 1]} : vector<2x10x10x32xbf16> to vector<2x8x8x32xbf16>
    %29 = vector.shape_cast %28 : vector<2x8x8x32xbf16> to vector<128x32xbf16>
    %30 = tpu.concatenate %23, %25, %27, %29 in 1 : vector<128x32xbf16>, vector<128x32xbf16>, vector<128x32xbf16>, vector<128x32xbf16> -> vector<128x128xbf16>
    %c0_30 = arith.constant 0 : index
    %c128 = arith.constant 128 : index
    %31 = vector.load %arg8[%c0_30, %c128] : memref<128x288xbf16, #tpu.memory_space<vmem>>, vector<128x128xbf16>
    tpu.vector_store %arg8[%c0_30, %c128], %30 {strides = array<i32>} : memref<128x288xbf16, #tpu.memory_space<vmem>>, vector<128x128xbf16>,
    %32 = vector.extract_strided_slice %11 {offsets = [0, 2, 2, 0], sizes = [2, 8, 8, 32], strides = [1, 1, 1, 1]} : vector<2x10x10x32xbf16> to vector<2x8x8x32xbf16>
    %33 = vector.shape_cast %32 : vector<2x8x8x32xbf16> to vector<128x32xbf16>
    %c0_31 = arith.constant 0 : index
    %c256 = arith.constant 256 : index
    %34 = vector.load %arg8[%c0_31, %c256] : memref<128x288xbf16, #tpu.memory_space<vmem>>, vector<128x32xbf16>
    tpu.vector_store %arg8[%c0_31, %c256], %33 {strides = array<i32>} : memref<128x288xbf16, #tpu.memory_space<vmem>>, vector<128x32xbf16>,
    %c0_32 = arith.constant 0 : index
    %c0_33 = arith.constant 0 : index
    %35 = vector.load %arg8[%c0_32, %c0_33] : memref<128x288xbf16, #tpu.memory_space<vmem>>, vector<128x288xbf16>
    %c0_34 = arith.constant 0 : index
    %c0_35 = arith.constant 0 : index
    %36 = vector.load %arg2[%c0_34, %c0_35] : memref<288x32xbf16, #tpu.memory_space<vmem>>, vector<288x32xbf16>
    %cst_36 = arith.constant dense<0.000000e+00> : vector<128x32xf32>
    %37 = tpu.matmul %35, %36, %cst_36 {dimension_numbers = #tpu.dot_dimension_numbers<[1], [0], [0], [1], [0, 0, 1, 1], [], []>} : vector<128x288xbf16>, vector<288x32xbf16>, vector<128x32xf32> -> vector<128x32xf32>
    %c0_37 = arith.constant 0 : index
    %c0_38 = arith.constant 0 : index
    %38 = vector.load %arg3[%c0_37, %c0_38] : memref<1x32xf32, #tpu.memory_space<vmem>>, vector<1x32xf32>
    %39 = vector.broadcast %38 : vector<1x32xf32> to vector<128x32xf32>
    %40 = arith.addf %37, %39 : vector<128x32xf32>
    %cst_39 = arith.constant 0.000000e+00 : f32
    %41 = vector.broadcast %cst_39 : f32 to vector<128x32xf32>
    %42 = arith.maximumf %40, %41 : vector<128x32xf32>
    %43 = vector.shape_cast %42 : vector<128x32xf32> to vector<2x8x8x32xf32>
    %44 = arith.truncf %43 : vector<2x8x8x32xf32> to vector<2x8x8x32xbf16>
    %c0_40 = arith.constant 0 : index
    %c1_41 = arith.constant 1 : index
    %c1_42 = arith.constant 1 : index
    %c0_43 = arith.constant 0 : index
    %45 = vector.load %arg7[%c0_40, %c1_41, %c1_42, %c0_43] : memref<2x10x10x32xbf16, #tpu.memory_space<vmem>>, vector<2x8x8x32xbf16>
    tpu.vector_store %arg7[%c0_40, %c1_41, %c1_42, %c0_43], %44 {strides = array<i32>} : memref<2x10x10x32xbf16, #tpu.memory_space<vmem>>, vector<2x8x8x32xbf16>,
    %c0_44 = arith.constant 0 : index
    %c0_45 = arith.constant 0 : index
    %c0_46 = arith.constant 0 : index
    %c0_47 = arith.constant 0 : index
    %46 = vector.load %arg7[%c0_44, %c0_45, %c0_46, %c0_47] : memref<2x10x10x32xbf16, #tpu.memory_space<vmem>>, vector<2x10x10x32xbf16>
    %47 = vector.extract_strided_slice %46 {offsets = [0, 0, 0, 0], sizes = [2, 8, 8, 32], strides = [1, 1, 1, 1]} : vector<2x10x10x32xbf16> to vector<2x8x8x32xbf16>
    %48 = vector.shape_cast %47 : vector<2x8x8x32xbf16> to vector<128x32xbf16>
    %49 = vector.extract_strided_slice %46 {offsets = [0, 0, 1, 0], sizes = [2, 8, 8, 32], strides = [1, 1, 1, 1]} : vector<2x10x10x32xbf16> to vector<2x8x8x32xbf16>
    %50 = vector.shape_cast %49 : vector<2x8x8x32xbf16> to vector<128x32xbf16>
    %51 = vector.extract_strided_slice %46 {offsets = [0, 0, 2, 0], sizes = [2, 8, 8, 32], strides = [1, 1, 1, 1]} : vector<2x10x10x32xbf16> to vector<2x8x8x32xbf16>
    %52 = vector.shape_cast %51 : vector<2x8x8x32xbf16> to vector<128x32xbf16>
    %53 = vector.extract_strided_slice %46 {offsets = [0, 1, 0, 0], sizes = [2, 8, 8, 32], strides = [1, 1, 1, 1]} : vector<2x10x10x32xbf16> to vector<2x8x8x32xbf16>
    %54 = vector.shape_cast %53 : vector<2x8x8x32xbf16> to vector<128x32xbf16>
    %55 = tpu.concatenate %48, %50, %52, %54 in 1 : vector<128x32xbf16>, vector<128x32xbf16>, vector<128x32xbf16>, vector<128x32xbf16> -> vector<128x128xbf16>
    %c0_48 = arith.constant 0 : index
    %c0_49 = arith.constant 0 : index
    %56 = vector.load %arg8[%c0_48, %c0_49] : memref<128x288xbf16, #tpu.memory_space<vmem>>, vector<128x128xbf16>
    tpu.vector_store %arg8[%c0_48, %c0_49], %55 {strides = array<i32>} : memref<128x288xbf16, #tpu.memory_space<vmem>>, vector<128x128xbf16>,
    %57 = vector.extract_strided_slice %46 {offsets = [0, 1, 1, 0], sizes = [2, 8, 8, 32], strides = [1, 1, 1, 1]} : vector<2x10x10x32xbf16> to vector<2x8x8x32xbf16>
    %58 = vector.shape_cast %57 : vector<2x8x8x32xbf16> to vector<128x32xbf16>
    %59 = vector.extract_strided_slice %46 {offsets = [0, 1, 2, 0], sizes = [2, 8, 8, 32], strides = [1, 1, 1, 1]} : vector<2x10x10x32xbf16> to vector<2x8x8x32xbf16>
    %60 = vector.shape_cast %59 : vector<2x8x8x32xbf16> to vector<128x32xbf16>
    %61 = vector.extract_strided_slice %46 {offsets = [0, 2, 0, 0], sizes = [2, 8, 8, 32], strides = [1, 1, 1, 1]} : vector<2x10x10x32xbf16> to vector<2x8x8x32xbf16>
    %62 = vector.shape_cast %61 : vector<2x8x8x32xbf16> to vector<128x32xbf16>
    %63 = vector.extract_strided_slice %46 {offsets = [0, 2, 1, 0], sizes = [2, 8, 8, 32], strides = [1, 1, 1, 1]} : vector<2x10x10x32xbf16> to vector<2x8x8x32xbf16>
    %64 = vector.shape_cast %63 : vector<2x8x8x32xbf16> to vector<128x32xbf16>
    %65 = tpu.concatenate %58, %60, %62, %64 in 1 : vector<128x32xbf16>, vector<128x32xbf16>, vector<128x32xbf16>, vector<128x32xbf16> -> vector<128x128xbf16>
    %c0_50 = arith.constant 0 : index
    %c128_51 = arith.constant 128 : index
    %66 = vector.load %arg8[%c0_50, %c128_51] : memref<128x288xbf16, #tpu.memory_space<vmem>>, vector<128x128xbf16>
    tpu.vector_store %arg8[%c0_50, %c128_51], %65 {strides = array<i32>} : memref<128x288xbf16, #tpu.memory_space<vmem>>, vector<128x128xbf16>,
    %67 = vector.extract_strided_slice %46 {offsets = [0, 2, 2, 0], sizes = [2, 8, 8, 32], strides = [1, 1, 1, 1]} : vector<2x10x10x32xbf16> to vector<2x8x8x32xbf16>
    %68 = vector.shape_cast %67 : vector<2x8x8x32xbf16> to vector<128x32xbf16>
    %c0_52 = arith.constant 0 : index
    %c256_53 = arith.constant 256 : index
    %69 = vector.load %arg8[%c0_52, %c256_53] : memref<128x288xbf16, #tpu.memory_space<vmem>>, vector<128x32xbf16>
    tpu.vector_store %arg8[%c0_52, %c256_53], %68 {strides = array<i32>} : memref<128x288xbf16, #tpu.memory_space<vmem>>, vector<128x32xbf16>,
    %c0_54 = arith.constant 0 : index
    %c0_55 = arith.constant 0 : index
    %70 = vector.load %arg8[%c0_54, %c0_55] : memref<128x288xbf16, #tpu.memory_space<vmem>>, vector<128x288xbf16>
    %c0_56 = arith.constant 0 : index
    %c0_57 = arith.constant 0 : index
    %71 = vector.load %arg4[%c0_56, %c0_57] : memref<288x32xbf16, #tpu.memory_space<vmem>>, vector<288x32xbf16>
    %cst_58 = arith.constant dense<0.000000e+00> : vector<128x32xf32>
    %72 = tpu.matmul %70, %71, %cst_58 {dimension_numbers = #tpu.dot_dimension_numbers<[1], [0], [0], [1], [0, 0, 1, 1], [], []>} : vector<128x288xbf16>, vector<288x32xbf16>, vector<128x32xf32> -> vector<128x32xf32>
    %c0_59 = arith.constant 0 : index
    %c0_60 = arith.constant 0 : index
    %73 = vector.load %arg5[%c0_59, %c0_60] : memref<1x32xf32, #tpu.memory_space<vmem>>, vector<1x32xf32>
    %74 = vector.broadcast %73 : vector<1x32xf32> to vector<128x32xf32>
    %75 = arith.addf %72, %74 : vector<128x32xf32>
    %76 = vector.shape_cast %8 : vector<2x8x8x32xf32> to vector<128x32xf32>
    %77 = arith.addf %75, %76 : vector<128x32xf32>
    %cst_61 = arith.constant 0.000000e+00 : f32
    %78 = vector.broadcast %cst_61 : f32 to vector<128x32xf32>
    %79 = arith.maximumf %77, %78 : vector<128x32xf32>
    %c0_62 = arith.constant 0 : index
    %c0_63 = arith.constant 0 : index
    %80 = vector.load %arg6[%c0_62, %c0_63] : memref<128x32xf32, #tpu.memory_space<vmem>>, vector<128x32xf32>
    tpu.vector_store %arg6[%c0_62, %c0_63], %79 {strides = array<i32>} : memref<128x32xf32, #tpu.memory_space<vmem>>, vector<128x32xf32>,
    return
  }
  func.func @transform_0(%arg0: i32) -> (i32, i32, i32, i32) {
    %c0_i32 = arith.constant 0 : i32
    %c0_i32_0 = arith.constant 0 : i32
    %c0_i32_1 = arith.constant 0 : i32
    %c0_i32_2 = arith.constant 0 : i32
    return %arg0, %c0_i32, %c0_i32_0, %c0_i32_1 : i32, i32, i32, i32
  }
  func.func @transform_1(%arg0: i32) -> (i32, i32) {
    %c0_i32 = arith.constant 0 : i32
    %c0_i32_0 = arith.constant 0 : i32
    %c0_i32_1 = arith.constant 0 : i32
    return %c0_i32, %c0_i32_0 : i32, i32
  }
  func.func @transform_2(%arg0: i32) -> (i32, i32) {
    %c0_i32 = arith.constant 0 : i32
    %c0_i32_0 = arith.constant 0 : i32
    %c0_i32_1 = arith.constant 0 : i32
    return %c0_i32, %c0_i32_0 : i32, i32
  }
  func.func @transform_3(%arg0: i32) -> (i32, i32) {
    %c0_i32 = arith.constant 0 : i32
    %c0_i32_0 = arith.constant 0 : i32
    %c0_i32_1 = arith.constant 0 : i32
    return %c0_i32, %c0_i32_0 : i32, i32
  }
  func.func @transform_4(%arg0: i32) -> (i32, i32) {
    %c0_i32 = arith.constant 0 : i32
    %c0_i32_0 = arith.constant 0 : i32
    %c0_i32_1 = arith.constant 0 : i32
    return %c0_i32, %c0_i32_0 : i32, i32
  }
  func.func @transform_5(%arg0: i32) -> (i32, i32) {
    %c0_i32 = arith.constant 0 : i32
    %c0_i32_0 = arith.constant 0 : i32
    return %arg0, %c0_i32 : i32, i32
  }
}

</mosaic_0001>

<llo_original>
// kernel: residual_block_forward_nhwc.1
$region0: #{residual_block_forward_nhwc.1}
  #allocation0 [shape = 'u32[]', space=smem, size = 0x4, offset = 0x4, fixed_abs, tag = 'smem constant byte address 0x4 - core index']
  #allocation1 [shape = 'u32[144,128]{1,0:T(1,128)}', space=vmem, size = 0x12000, scoped, tag = 'internal scratch']
  #allocation2 [shape = 'bf16[2,10,10,32]{3,2,1,0:T(8,128)(2,1)}', space=vmem, size = 0x14000, scoped, tag = 'scratch operand']
  #allocation3 [shape = 'bf16[128,288]{1,0:T(16,128)(2,1)}', space=vmem, size = 0x18000, scoped, tag = 'scratch operand']
  %s0 = inlined_call_operand.vmem [shape: f32[4,8,8,32], index: 0, kind: input, shape index: {}]
  %s1 = inlined_call_operand.vmem [shape: bf16[288,32], index: 1, kind: input, shape index: {}]
  %s2 = inlined_call_operand.vmem [shape: f32[1,32], index: 2, kind: input, shape index: {}]
  %s3 = inlined_call_operand.vmem [shape: bf16[288,32], index: 3, kind: input, shape index: {}]
  %s4 = inlined_call_operand.vmem [shape: f32[1,32], index: 4, kind: input, shape index: {}]
  %s5 = inlined_call_operand.hbm [shape: f32[256,32], index: 5, kind: output, shape index: {}]
  %s6 = sld [smem:[#allocation0]]
  $region53: #{residual_block_forward_nhwc.1} parent=0
    _
  %s8 = ssub.s32 1, %s6
  %s9 = scalar_select 0, %s8, %s6
  $region1: #{residual_block_forward_nhwc.1} parent=0
    #allocation4 [shape = 'u8[131072]{0}', space=vmem, size = 0x20000, scoped, tag = 'output window, operand 0']
    #allocation5 [shape = 's32[2]{0}', space=sflag, size = 0x8, scoped, tag = 'scoped memory for residual_block_forward_nhwc.1']
    %10 = vsyncpa [#allocation5], 0
    %s11 = scalar_lea.sflag [#allocation5], 1
    %12 = vsyncpa %s11, 0
    loop: start=0, step=1, limit=4
    $region2: #{residual_block_forward_nhwc.1} parent=1 // loop_pre_header
      _
    $region3: #{residual_block_forward_nhwc.1} parent=1 // loop_header
      %s14 = sphi 0, %s18
      %p15 = scmp.ge.s32.totalorder %s14, 4
      %s24 = sphi 0, %s26
      %s27 = sphi 0, %s24
      %s28 = sphi 0, %s27
      %s44 = sphi 0, %s28
      %s48 = sphi 0, %s48
      %s50 = sphi 0, %s48
      %s51 = sphi 0, %s50
      %s65 = sphi 0, %s51
      %s69 = sphi 0, %s69
      %s71 = sphi 0, %s69
      %s72 = sphi 0, %s71
      %s86 = sphi 0, %s72
      %s90 = sphi 0, %s90
      %s92 = sphi 0, %s90
      %s93 = sphi 0, %s92
      %s107 = sphi 0, %s93
      %s111 = sphi 0, %s111
      %s113 = sphi 0, %s111
      %s114 = sphi 0, %s113
      %s128 = sphi 0, %s114
      %s134 = sphi 0, %s136
      %s137 = sphi 0, %s134
      %s138 = sphi 0, %s137
      %s154 = sphi 0, %s138
    $region4: #{residual_block_forward_nhwc.1} parent=1 // loop_header_branch
      %17 = sbr.rel (%p15) target = $region8
    $region5: #{residual_block_forward_nhwc.1} parent=1 // loop_body
      %s19 = ssub.s32 %s14, 1
      %s20 = ssub.s32 %s14, 2
      %s21 = sadd.s32 %s14, 1
      %s22 = ssub.s32 %s14, %s21
      %p23 = scmp.eq.s32.totalorder %s22, 0
      %s25 = sadd.s32 %s24, 1
      %s26 = scalar_select %p23, %s24, %s25
      %p29 = pneg %p23
      %p30 = scmp.eq.s32.totalorder %s14, 1
      %p31 = por %p29, %p30
      %p32 = scmp.ne.s32.totalorder %s24, %s27
      %p33 = scmp.eq.s32.totalorder %s14, 0
      %p34 = por %p32, %p33
      %p35 = scmp.ne.s32.totalorder %s24, %s27
      %p36 = scmp.eq.s32.totalorder %s19, 1
      %p37 = por %p35, %p36
      %p38 = scmp.ne.s32.totalorder %s27, %s28
      %p39 = scmp.eq.s32.totalorder %s19, 0
      %p40 = por %p38, %p39
      %p41 = scmp.ne.s32.totalorder %s27, %s28
      %p42 = scmp.eq.s32.totalorder %s20, 1
      %p43 = por %p41, %p42
      %p45 = scmp.ne.s32.totalorder %s28, %s44
      %p46 = scmp.eq.s32.totalorder %s20, 0
      %p47 = por %p45, %p46
      %s49 = sadd.s32 %s48, 1
      %p52 = scmp.eq.s32.totalorder %s14, 1
      %p53 = scmp.ne.s32.totalorder %s48, %s50
      %p54 = scmp.eq.s32.totalorder %s14, 0
      %p55 = por %p53, %p54
      %p56 = scmp.ne.s32.totalorder %s48, %s50
      %p57 = scmp.eq.s32.totalorder %s19, 1
      %p58 = por %p56, %p57
      %p59 = scmp.ne.s32.totalorder %s50, %s51
      %p60 = scmp.eq.s32.totalorder %s19, 0
      %p61 = por %p59, %p60
      %p62 = scmp.ne.s32.totalorder %s50, %s51
      %p63 = scmp.eq.s32.totalorder %s20, 1
      %p64 = por %p62, %p63
      %p66 = scmp.ne.s32.totalorder %s51, %s65
      %p67 = scmp.eq.s32.totalorder %s20, 0
      %p68 = por %p66, %p67
      %s70 = sadd.s32 %s69, 1
      %p73 = scmp.eq.s32.totalorder %s14, 1
      %p74 = scmp.ne.s32.totalorder %s69, %s71
      %p75 = scmp.eq.s32.totalorder %s14, 0
      %p76 = por %p74, %p75
      %p77 = scmp.ne.s32.totalorder %s69, %s71
      %p78 = scmp.eq.s32.totalorder %s19, 1
      %p79 = por %p77, %p78
      %p80 = scmp.ne.s32.totalorder %s71, %s72
      %p81 = scmp.eq.s32.totalorder %s19, 0
      %p82 = por %p80, %p81
      %p83 = scmp.ne.s32.totalorder %s71, %s72
      %p84 = scmp.eq.s32.totalorder %s20, 1
      %p85 = por %p83, %p84
      %p87 = scmp.ne.s32.totalorder %s72, %s86
      %p88 = scmp.eq.s32.totalorder %s20, 0
      %p89 = por %p87, %p88
      %s91 = sadd.s32 %s90, 1
      %p94 = scmp.eq.s32.totalorder %s14, 1
      %p95 = scmp.ne.s32.totalorder %s90, %s92
      %p96 = scmp.eq.s32.totalorder %s14, 0
      %p97 = por %p95, %p96
      %p98 = scmp.ne.s32.totalorder %s90, %s92
      %p99 = scmp.eq.s32.totalorder %s19, 1
      %p100 = por %p98, %p99
      %p101 = scmp.ne.s32.totalorder %s92, %s93
      %p102 = scmp.eq.s32.totalorder %s19, 0
      %p103 = por %p101, %p102
      %p104 = scmp.ne.s32.totalorder %s92, %s93
      %p105 = scmp.eq.s32.totalorder %s20, 1
      %p106 = por %p104, %p105
      %p108 = scmp.ne.s32.totalorder %s93, %s107
      %p109 = scmp.eq.s32.totalorder %s20, 0
      %p110 = por %p108, %p109
      %s112 = sadd.s32 %s111, 1
      %p115 = scmp.eq.s32.totalorder %s14, 1
      %p116 = scmp.ne.s32.totalorder %s111, %s113
      %p117 = scmp.eq.s32.totalorder %s14, 0
      %p118 = por %p116, %p117
      %p119 = scmp.ne.s32.totalorder %s111, %s113
      %p120 = scmp.eq.s32.totalorder %s19, 1
      %p121 = por %p119, %p120
      %p122 = scmp.ne.s32.totalorder %s113, %s114
      %p123 = scmp.eq.s32.totalorder %s19, 0
      %p124 = por %p122, %p123
      %p125 = scmp.ne.s32.totalorder %s113, %s114
      %p126 = scmp.eq.s32.totalorder %s20, 1
      %p127 = por %p125, %p126
      %p129 = scmp.ne.s32.totalorder %s114, %s128
      %p130 = scmp.eq.s32.totalorder %s20, 0
      %p131 = por %p129, %p130
      %s132 = ssub.s32 %s14, %s21
      %p133 = scmp.eq.s32.totalorder %s132, 0
      %s135 = sadd.s32 %s134, 1
      %s136 = scalar_select %p133, %s134, %s135
      %p139 = pneg %p133
      %p140 = scmp.eq.s32.totalorder %s14, 1
      %p141 = por %p139, %p140
      %p142 = scmp.ne.s32.totalorder %s134, %s137
      %p143 = scmp.eq.s32.totalorder %s14, 0
      %p144 = por %p142, %p143
      %p145 = scmp.ne.s32.totalorder %s134, %s137
      %p146 = scmp.eq.s32.totalorder %s19, 1
      %p147 = por %p145, %p146
      %p148 = scmp.ne.s32.totalorder %s137, %s138
      %p149 = scmp.eq.s32.totalorder %s19, 0
      %p150 = por %p148, %p149
      %p151 = scmp.ne.s32.totalorder %s137, %s138
      %p152 = scmp.eq.s32.totalorder %s20, 1
      %p153 = por %p151, %p152
      %p155 = scmp.ne.s32.totalorder %s138, %s154
      %p156 = scmp.eq.s32.totalorder %s20, 0
      %p157 = por %p155, %p156
      %p158 = scmp.le.s32.totalorder 1, %s14
      %p159 = scmp.lt.s32.totalorder %s14, 3
      %p160 = pnand %p158, %p159
      %p161 = pneg %p160
      // Predicated region
      $region9: #{residual_block_forward_nhwc.1} parent=5 // pred_check
        _
      $region10: #{residual_block_forward_nhwc.1} parent=5 // pred_check_branch
        %163 = sbr.rel (%p160) target = $region12
      $region11: #{residual_block_forward_nhwc.1} parent=5 // pred_region
        %s164 = ssub.s32 %s14, 1
        // Predicated region
        $region13: #{residual_block_forward_nhwc.1} parent=11 // pred_check
          %p165 = pneg %p61
        $region14: #{residual_block_forward_nhwc.1} parent=11 // pred_check_branch
          %167 = sbr.rel (%p165) target = $region16
        $region15: #{residual_block_forward_nhwc.1} parent=11 // pred_region
          _
        $region16: #{residual_block_forward_nhwc.1} parent=11 // pred_fallthru
          _
        // Predicated region
        $region17: #{residual_block_forward_nhwc.1} parent=11 // pred_check
          %p168 = pneg %p82
        $region18: #{residual_block_forward_nhwc.1} parent=11 // pred_check_branch
          %170 = sbr.rel (%p168) target = $region20
        $region19: #{residual_block_forward_nhwc.1} parent=11 // pred_region
          _
        $region20: #{residual_block_forward_nhwc.1} parent=11 // pred_fallthru
          _
        // Predicated region
        $region21: #{residual_block_forward_nhwc.1} parent=11 // pred_check
          %p171 = pneg %p103
        $region22: #{residual_block_forward_nhwc.1} parent=11 // pred_check_branch
          %173 = sbr.rel (%p171) target = $region24
        $region23: #{residual_block_forward_nhwc.1} parent=11 // pred_region
          _
        $region24: #{residual_block_forward_nhwc.1} parent=11 // pred_fallthru
          _
        // Predicated region
        $region25: #{residual_block_forward_nhwc.1} parent=11 // pred_check
          %p174 = pneg %p124
        $region26: #{residual_block_forward_nhwc.1} parent=11 // pred_check_branch
          %176 = sbr.rel (%p174) target = $region28
        $region27: #{residual_block_forward_nhwc.1} parent=11 // pred_region
          _
        $region28: #{residual_block_forward_nhwc.1} parent=11 // pred_fallthru
          _
      $region12: #{residual_block_forward_nhwc.1} parent=5 // pred_fallthru
        _
      %p177 = scmp.lt.s32.totalorder %s14, 2
      // Predicated region
      $region29: #{residual_block_forward_nhwc.1} parent=5 // pred_check
        %p178 = pneg %p177
      $region30: #{residual_block_forward_nhwc.1} parent=5 // pred_check_branch
        %180 = sbr.rel (%p178) target = $region32
      $region31: #{residual_block_forward_nhwc.1} parent=5 // pred_region
        // Predicated region
        $region33: #{residual_block_forward_nhwc.1} parent=31 // pred_check
          %p181 = pneg %p34
        $region34: #{residual_block_forward_nhwc.1} parent=31 // pred_check_branch
          %183 = sbr.rel (%p181) target = $region36
        $region35: #{residual_block_forward_nhwc.1} parent=31 // pred_region
          %s184 = smul.u32 2, %s14
          %p185 = scmp.lt.s32.totalorder %s184, 3
          %s186 = scalar_select %p185, %s184, 3
          %s187 = smul.addr %s186, 8
          %s188 = smul.addr %s187, 8
          %s189 = scalar_lea.vmem %s0, %s188
          %s190 = smul.u32 2, %s14
        $region36: #{residual_block_forward_nhwc.1} parent=31 // pred_fallthru
          _
      $region32: #{residual_block_forward_nhwc.1} parent=5 // pred_fallthru
        _
      %p191 = scmp.le.s32.totalorder 1, %s14
      %p192 = scmp.lt.s32.totalorder %s14, 3
      %p193 = pnand %p191, %p192
      %p194 = pneg %p193
      // Predicated region
      $region37: #{residual_block_forward_nhwc.1} parent=5 // pred_check
        _
      $region38: #{residual_block_forward_nhwc.1} parent=5 // pred_check_branch
        %196 = sbr.rel (%p193) target = $region40
      $region39: #{residual_block_forward_nhwc.1} parent=5 // pred_region
        %s197 = ssub.s32 %s14, 1
        %s198 = smul.u32 2, %s19
        %p199 = scmp.lt.s32.totalorder %s198, 3
        %s200 = scalar_select %p199, %s198, 3
        %s201 = smul.addr %s200, 8
        %s202 = smul.addr %s201, 8
        %s203 = scalar_lea.vmem %s0, %s202
        %p204 = pneg %p40
        %p205 = pneg %p37
        %p206 = pneg %p61
        %p207 = pneg %p58
        %p208 = pneg %p82
        %p209 = pneg %p79
        %p210 = pneg %p103
        %p211 = pneg %p100
        %p212 = pneg %p124
        %p213 = pneg %p121
        %p214 = pneg %p150
        %p215 = pneg %p147
        %s216 = sand.u32 %s137, 1
        %s217 = scalar_lea.sflag [#allocation5], %s216
        %s218 = sand.u32 %s137, 1
        %s219 = smul.addr %s218, 128
        %s220 = scalar_lea.vmem [#allocation4], %s219
        %s221 = smul.u32 2, %s19
        %p222 = scmp.lt.s32.totalorder %s221, 3
        %s223 = scalar_select %p222, %s221, 3
        %s224 = smul.addr %s223, 8
        %s225 = smul.addr %s224, 8
        %s226 = scalar_lea.vmem %s0, %s225
        %s227 = smul.u32 2, %s19
        %s228 = smul.u32 16, %s19
        %vm230 = vcmask 257024
        %231 = vst.msk [vmem:[#allocation2] sm:$0xf] %vm230, 0
        %vm232 = vcmask 253952
        %233 = vst.msk [vmem:[#allocation2 + $0x4] sm:$0x1] %vm232, 0
        %234 = vst.msk [vmem:[#allocation2 + $0x50] sm:$0xf] %vm230, 0
        %235 = vst.msk [vmem:[#allocation2 + $0x54] sm:$0x1] %vm232, 0
        %s236 = scalar_lea.vmem [#allocation2], 72
        %237 = vst.msk [vmem:[%s236] sm:$0xf] %vm230, 0
        %238 = vst.msk [vmem:[%s236 + $0x4] sm:$0x1] %vm232, 0
        %239 = vst.msk [vmem:[%s236 + $0x50] sm:$0xf] %vm230, 0
        %240 = vst.msk [vmem:[%s236 + $0x54] sm:$0x1] %vm232, 0
        %s241 = scalar_lea.vmem [#allocation2], 8
        %vm242 = vcmask 253952
        %vm243 = vsmask.f32 256
        %vm244 = vmand %vm242, %vm243
        %v245 = vld [vmem:[%s241] sm:$0x1]
        %v246 = vsel %vm244, 0, %v245
        %247 = vst [vmem:[%s241] sm:$0x1] %v246
        %v248 = vld [vmem:[%s241 + $0x8] sm:$0x1]
        %v249 = vsel %vm244, 0, %v248
        %250 = vst [vmem:[%s241 + $0x8] sm:$0x1] %v249
        %v251 = vld [vmem:[%s241 + $0x10] sm:$0x1]
        %v252 = vsel %vm244, 0, %v251
        %253 = vst [vmem:[%s241 + $0x10] sm:$0x1] %v252
        %v254 = vld [vmem:[%s241 + $0x18] sm:$0x1]
        %v255 = vsel %vm244, 0, %v254
        %256 = vst [vmem:[%s241 + $0x18] sm:$0x1] %v255
        %v257 = vld [vmem:[%s241 + $0x20] sm:$0x1]
        %v258 = vsel %vm244, 0, %v257
        %259 = vst [vmem:[%s241 + $0x20] sm:$0x1] %v258
        %v260 = vld [vmem:[%s241 + $0x28] sm:$0x1]
        %v261 = vsel %vm244, 0, %v260
        %262 = vst [vmem:[%s241 + $0x28] sm:$0x1] %v261
        %v263 = vld [vmem:[%s241 + $0x30] sm:$0x1]
        %v264 = vsel %vm244, 0, %v263
        %265 = vst [vmem:[%s241 + $0x30] sm:$0x1] %v264
        %v266 = vld [vmem:[%s241 + $0x38] sm:$0x1]
        %v267 = vsel %vm244, 0, %v266
        %268 = vst [vmem:[%s241 + $0x38] sm:$0x1] %v267
        %v269 = vld [vmem:[%s241 + $0x50] sm:$0x1]
        %v270 = vsel %vm244, 0, %v269
        %271 = vst [vmem:[%s241 + $0x50] sm:$0x1] %v270
        %v272 = vld [vmem:[%s241 + $0x58] sm:$0x1]
        %v273 = vsel %vm244, 0, %v272
        %274 = vst [vmem:[%s241 + $0x58] sm:$0x1] %v273
        %v275 = vld [vmem:[%s241 + $0x60] sm:$0x1]
        %v276 = vsel %vm244, 0, %v275
        %277 = vst [vmem:[%s241 + $0x60] sm:$0x1] %v276
        %v278 = vld [vmem:[%s241 + $0x68] sm:$0x1]
        %v279 = vsel %vm244, 0, %v278
        %280 = vst [vmem:[%s241 + $0x68] sm:$0x1] %v279
        %v281 = vld [vmem:[%s241 + $0x70] sm:$0x1]
        %v282 = vsel %vm244, 0, %v281
        %283 = vst [vmem:[%s241 + $0x70] sm:$0x1] %v282
        %v284 = vld [vmem:[%s241 + $0x78] sm:$0x1]
        %v285 = vsel %vm244, 0, %v284
        %286 = vst [vmem:[%s241 + $0x78] sm:$0x1] %v285
        %v287 = vld [vmem:[%s241 + $0x80] sm:$0x1]
        %v288 = vsel %vm244, 0, %v287
        %289 = vst [vmem:[%s241 + $0x80] sm:$0x1] %v288
        %v290 = vld [vmem:[%s241 + $0x88] sm:$0x1]
        %v291 = vsel %vm244, 0, %v290
        %292 = vst [vmem:[%s241 + $0x88] sm:$0x1] %v291
        %vm293 = vsmask.f32 7938
        %vm294 = vmand %vm242, %vm293
        %v295 = vld [vmem:[%s241 + $0x4] sm:$0x1]
        %v296 = vsel %vm294, 0, %v295
        %297 = vst [vmem:[%s241 + $0x4] sm:$0x1] %v296
        %v298 = vld [vmem:[%s241 + $0xc] sm:$0x1]
        %v299 = vsel %vm294, 0, %v298
        %300 = vst [vmem:[%s241 + $0xc] sm:$0x1] %v299
        %v301 = vld [vmem:[%s241 + $0x14] sm:$0x1]
        %v302 = vsel %vm294, 0, %v301
        %303 = vst [vmem:[%s241 + $0x14] sm:$0x1] %v302
        %v304 = vld [vmem:[%s241 + $0x1c] sm:$0x1]
        %v305 = vsel %vm294, 0, %v304
        %306 = vst [vmem:[%s241 + $0x1c] sm:$0x1] %v305
        %v307 = vld [vmem:[%s241 + $0x24] sm:$0x1]
        %v308 = vsel %vm294, 0, %v307
        %309 = vst [vmem:[%s241 + $0x24] sm:$0x1] %v308
        %v310 = vld [vmem:[%s241 + $0x2c] sm:$0x1]
        %v311 = vsel %vm294, 0, %v310
        %312 = vst [vmem:[%s241 + $0x2c] sm:$0x1] %v311
        %v313 = vld [vmem:[%s241 + $0x34] sm:$0x1]
        %v314 = vsel %vm294, 0, %v313
        %315 = vst [vmem:[%s241 + $0x34] sm:$0x1] %v314
        %v316 = vld [vmem:[%s241 + $0x3c] sm:$0x1]
        %v317 = vsel %vm294, 0, %v316
        %318 = vst [vmem:[%s241 + $0x3c] sm:$0x1] %v317
        %v319 = vld [vmem:[%s241 + $0x54] sm:$0x1]
        %v320 = vsel %vm294, 0, %v319
        %321 = vst [vmem:[%s241 + $0x54] sm:$0x1] %v320
        %v322 = vld [vmem:[%s241 + $0x5c] sm:$0x1]
        %v323 = vsel %vm294, 0, %v322
        %324 = vst [vmem:[%s241 + $0x5c] sm:$0x1] %v323
        %v325 = vld [vmem:[%s241 + $0x64] sm:$0x1]
        %v326 = vsel %vm294, 0, %v325
        %327 = vst [vmem:[%s241 + $0x64] sm:$0x1] %v326
        %v328 = vld [vmem:[%s241 + $0x6c] sm:$0x1]
        %v329 = vsel %vm294, 0, %v328
        %330 = vst [vmem:[%s241 + $0x6c] sm:$0x1] %v329
        %v331 = vld [vmem:[%s241 + $0x74] sm:$0x1]
        %v332 = vsel %vm294, 0, %v331
        %333 = vst [vmem:[%s241 + $0x74] sm:$0x1] %v332
        %v334 = vld [vmem:[%s241 + $0x7c] sm:$0x1]
        %v335 = vsel %vm294, 0, %v334
        %336 = vst [vmem:[%s241 + $0x7c] sm:$0x1] %v335
        %v337 = vld [vmem:[%s241 + $0x84] sm:$0x1]
        %v338 = vsel %vm294, 0, %v337
        %339 = vst [vmem:[%s241 + $0x84] sm:$0x1] %v338
        %v340 = vld [vmem:[%s241 + $0x8c] sm:$0x1]
        %v341 = vsel %vm294, 0, %v340
        %342 = vst [vmem:[%s241 + $0x8c] sm:$0x1] %v341
        %v343 = vld [vmem:[%s226] sm:$0xff]
        %v344 = vld [vmem:[%s226 + $0x8] sm:$0xff]
        %v345 = vld [vmem:[%s226 + $0x10] sm:$0xff]
        %v346 = vld [vmem:[%s226 + $0x18] sm:$0xff]
        %v347 = vld [vmem:[%s226 + $0x20] sm:$0xff]
        %v348 = vld [vmem:[%s226 + $0x28] sm:$0xff]
        %v349 = vld [vmem:[%s226 + $0x30] sm:$0xff]
        %v350 = vld [vmem:[%s226 + $0x38] sm:$0xff]
        %v351 = vld [vmem:[%s226 + $0x40] sm:$0xff]
        %v352 = vld [vmem:[%s226 + $0x48] sm:$0xff]
        %v353 = vld [vmem:[%s226 + $0x50] sm:$0xff]
        %v354 = vld [vmem:[%s226 + $0x58] sm:$0xff]
        %v355 = vld [vmem:[%s226 + $0x60] sm:$0xff]
        %v356 = vld [vmem:[%s226 + $0x68] sm:$0xff]
        %v357 = vld [vmem:[%s226 + $0x70] sm:$0xff]
        %v358 = vld [vmem:[%s226 + $0x78] sm:$0xff]
        %v359 = vpack.c.bf16 %v343, %v343
        %v360 = vpack.c.bf16 %v344, %v344
        %v361 = vpack.c.bf16 %v345, %v345
        %v362 = vpack.c.bf16 %v346, %v346
        %v363 = vpack.c.bf16 %v347, %v347
        %v364 = vpack.c.bf16 %v348, %v348
        %v365 = vpack.c.bf16 %v349, %v349
        %v366 = vpack.c.bf16 %v350, %v350
        %v367 = vpack.c.bf16 %v351, %v351
        %v368 = vpack.c.bf16 %v352, %v352
        %v369 = vpack.c.bf16 %v353, %v353
        %v370 = vpack.c.bf16 %v354, %v354
        %v371 = vpack.c.bf16 %v355, %v355
        %v372 = vpack.c.bf16 %v356, %v356
        %v373 = vpack.c.bf16 %v357, %v357
        %v374 = vpack.c.bf16 %v358, %v358
        %v391 = vunpack.c.l.b16 %v359
        %v392 = vunpack.c.l.b16 %v360
        %v393 = vunpack.c.l.b16 %v361
        %v394 = vunpack.c.l.b16 %v362
        %v395 = vunpack.c.l.b16 %v363
        %v396 = vunpack.c.l.b16 %v364
        %v397 = vunpack.c.l.b16 %v365
        %v398 = vunpack.c.l.b16 %v366
        %v399 = vunpack.c.l.b16 %v367
        %v400 = vunpack.c.l.b16 %v368
        %v401 = vunpack.c.l.b16 %v369
        %v402 = vunpack.c.l.b16 %v370
        %v403 = vunpack.c.l.b16 %v371
        %v404 = vunpack.c.l.b16 %v372
        %v405 = vunpack.c.l.b16 %v373
        %v406 = vunpack.c.l.b16 %v374
        %v407 = vpack.c.b16 %v391, %v391
        %v408 = vpack.c.b16 %v392, %v392
        %v409 = vpack.c.b16 %v393, %v393
        %v410 = vpack.c.b16 %v394, %v394
        %v411 = vpack.c.b16 %v395, %v395
        %v412 = vpack.c.b16 %v396, %v396
        %v413 = vpack.c.b16 %v397, %v397
        %v414 = vpack.c.b16 %v398, %v398
        %v415 = vpack.c.b16 %v399, %v399
        %v416 = vpack.c.b16 %v400, %v400
        %v417 = vpack.c.b16 %v401, %v401
        %v418 = vpack.c.b16 %v402, %v402
        %v419 = vpack.c.b16 %v403, %v403
        %v420 = vpack.c.b16 %v404, %v404
        %v421 = vpack.c.b16 %v405, %v405
        %v422 = vpack.c.b16 %v406, %v406
        %v424 = vshrl.u32 %v407, 16
        %v426 = vrot.slane %v424, 7
        %v427 = vshll.u32 %v407, 16
        %v429 = vor.u32 %v426, %v427
        %v430 = vrot.slane %v426, 4
        %v432 = vshrl.u32 %v408, 16
        %v434 = vrot.slane %v432, 7
        %v435 = vshll.u32 %v408, 16
        %v437 = vor.u32 %v434, %v435
        %v438 = vrot.slane %v434, 4
        %v440 = vshrl.u32 %v409, 16
        %v442 = vrot.slane %v440, 7
        %v443 = vshll.u32 %v409, 16
        %v445 = vor.u32 %v442, %v443
        %v446 = vrot.slane %v442, 4
        %v448 = vshrl.u32 %v410, 16
        %v450 = vrot.slane %v448, 7
        %v451 = vshll.u32 %v410, 16
        %v453 = vor.u32 %v450, %v451
        %v454 = vrot.slane %v450, 4
        %v456 = vshrl.u32 %v411, 16
        %v458 = vrot.slane %v456, 7
        %v459 = vshll.u32 %v411, 16
        %v461 = vor.u32 %v458, %v459
        %v462 = vrot.slane %v458, 4
        %v464 = vshrl.u32 %v412, 16
        %v466 = vrot.slane %v464, 7
        %v467 = vshll.u32 %v412, 16
        %v469 = vor.u32 %v466, %v467
        %v470 = vrot.slane %v466, 4
        %v472 = vshrl.u32 %v413, 16
        %v474 = vrot.slane %v472, 7
        %v475 = vshll.u32 %v413, 16
        %v477 = vor.u32 %v474, %v475
        %v478 = vrot.slane %v474, 4
        %v480 = vshrl.u32 %v414, 16
        %v482 = vrot.slane %v480, 7
        %v483 = vshll.u32 %v414, 16
        %v485 = vor.u32 %v482, %v483
        %v486 = vrot.slane %v482, 4
        %v488 = vshrl.u32 %v415, 16
        %v490 = vrot.slane %v488, 7
        %v491 = vshll.u32 %v415, 16
        %v493 = vor.u32 %v490, %v491
        %v494 = vrot.slane %v490, 4
        %v496 = vshrl.u32 %v416, 16
        %v498 = vrot.slane %v496, 7
        %v499 = vshll.u32 %v416, 16
        %v501 = vor.u32 %v498, %v499
        %v502 = vrot.slane %v498, 4
        %v504 = vshrl.u32 %v417, 16
        %v506 = vrot.slane %v504, 7
        %v507 = vshll.u32 %v417, 16
        %v509 = vor.u32 %v506, %v507
        %v510 = vrot.slane %v506, 4
        %v512 = vshrl.u32 %v418, 16
        %v514 = vrot.slane %v512, 7
        %v515 = vshll.u32 %v418, 16
        %v517 = vor.u32 %v514, %v515
        %v518 = vrot.slane %v514, 4
        %v520 = vshrl.u32 %v419, 16
        %v522 = vrot.slane %v520, 7
        %v523 = vshll.u32 %v419, 16
        %v525 = vor.u32 %v522, %v523
        %v526 = vrot.slane %v522, 4
        %v528 = vshrl.u32 %v420, 16
        %v530 = vrot.slane %v528, 7
        %v531 = vshll.u32 %v420, 16
        %v533 = vor.u32 %v530, %v531
        %v534 = vrot.slane %v530, 4
        %v536 = vshrl.u32 %v421, 16
        %v538 = vrot.slane %v536, 7
        %v539 = vshll.u32 %v421, 16
        %v541 = vor.u32 %v538, %v539
        %v542 = vrot.slane %v538, 4
        %v544 = vshrl.u32 %v422, 16
        %v546 = vrot.slane %v544, 7
        %v547 = vshll.u32 %v422, 16
        %v549 = vor.u32 %v546, %v547
        %v550 = vrot.slane %v546, 4
        %vm583 = vcmask 257024
        %vm584 = vmand %vm583, %vm293
        %v585 = vld [vmem:[%s241] sm:$0xf]
        %v586 = vsel %vm584, %v429, %v585
        %587 = vst [vmem:[%s241] sm:$0xf] %v586
        %v588 = vld [vmem:[%s241 + $0x4] sm:$0x1]
        %v589 = vsel %vm244, %v430, %v588
        %590 = vst [vmem:[%s241 + $0x4] sm:$0x1] %v589
        %v591 = vld [vmem:[%s241 + $0x8] sm:$0xf]
        %v592 = vsel %vm584, %v437, %v591
        %593 = vst [vmem:[%s241 + $0x8] sm:$0xf] %v592
        %v594 = vld [vmem:[%s241 + $0xc] sm:$0x1]
        %v595 = vsel %vm244, %v438, %v594
        %596 = vst [vmem:[%s241 + $0xc] sm:$0x1] %v595
        %v597 = vld [vmem:[%s241 + $0x10] sm:$0xf]
        %v598 = vsel %vm584, %v445, %v597
        %599 = vst [vmem:[%s241 + $0x10] sm:$0xf] %v598
        %v600 = vld [vmem:[%s241 + $0x14] sm:$0x1]
        %v601 = vsel %vm244, %v446, %v600
        %602 = vst [vmem:[%s241 + $0x14] sm:$0x1] %v601
        %v603 = vld [vmem:[%s241 + $0x18] sm:$0xf]
        %v604 = vsel %vm584, %v453, %v603
        %605 = vst [vmem:[%s241 + $0x18] sm:$0xf] %v604
        %v606 = vld [vmem:[%s241 + $0x1c] sm:$0x1]
        %v607 = vsel %vm244, %v454, %v606
        %608 = vst [vmem:[%s241 + $0x1c] sm:$0x1] %v607
        %v609 = vld [vmem:[%s241 + $0x20] sm:$0xf]
        %v610 = vsel %vm584, %v461, %v609
        %611 = vst [vmem:[%s241 + $0x20] sm:$0xf] %v610
        %v612 = vld [vmem:[%s241 + $0x24] sm:$0x1]
        %v613 = vsel %vm244, %v462, %v612
        %614 = vst [vmem:[%s241 + $0x24] sm:$0x1] %v613
        %v615 = vld [vmem:[%s241 + $0x28] sm:$0xf]
        %v616 = vsel %vm584, %v469, %v615
        %617 = vst [vmem:[%s241 + $0x28] sm:$0xf] %v616
        %v618 = vld [vmem:[%s241 + $0x2c] sm:$0x1]
        %v619 = vsel %vm244, %v470, %v618
        %620 = vst [vmem:[%s241 + $0x2c] sm:$0x1] %v619
        %v621 = vld [vmem:[%s241 + $0x30] sm:$0xf]
        %v622 = vsel %vm584, %v477, %v621
        %623 = vst [vmem:[%s241 + $0x30] sm:$0xf] %v622
        %v624 = vld [vmem:[%s241 + $0x34] sm:$0x1]
        %v625 = vsel %vm244, %v478, %v624
        %626 = vst [vmem:[%s241 + $0x34] sm:$0x1] %v625
        %v627 = vld [vmem:[%s241 + $0x38] sm:$0xf]
        %v628 = vsel %vm584, %v485, %v627
        %629 = vst [vmem:[%s241 + $0x38] sm:$0xf] %v628
        %v630 = vld [vmem:[%s241 + $0x3c] sm:$0x1]
        %v631 = vsel %vm244, %v486, %v630
        %632 = vst [vmem:[%s241 + $0x3c] sm:$0x1] %v631
        %v633 = vld [vmem:[%s241 + $0x50] sm:$0xf]
        %v634 = vsel %vm584, %v493, %v633
        %635 = vst [vmem:[%s241 + $0x50] sm:$0xf] %v634
        %v636 = vld [vmem:[%s241 + $0x54] sm:$0x1]
        %v637 = vsel %vm244, %v494, %v636
        %638 = vst [vmem:[%s241 + $0x54] sm:$0x1] %v637
        %v639 = vld [vmem:[%s241 + $0x58] sm:$0xf]
        %v640 = vsel %vm584, %v501, %v639
        %641 = vst [vmem:[%s241 + $0x58] sm:$0xf] %v640
        %v642 = vld [vmem:[%s241 + $0x5c] sm:$0x1]
        %v643 = vsel %vm244, %v502, %v642
        %644 = vst [vmem:[%s241 + $0x5c] sm:$0x1] %v643
        %v645 = vld [vmem:[%s241 + $0x60] sm:$0xf]
        %v646 = vsel %vm584, %v509, %v645
        %647 = vst [vmem:[%s241 + $0x60] sm:$0xf] %v646
        %v648 = vld [vmem:[%s241 + $0x64] sm:$0x1]
        %v649 = vsel %vm244, %v510, %v648
        %650 = vst [vmem:[%s241 + $0x64] sm:$0x1] %v649
        %v651 = vld [vmem:[%s241 + $0x68] sm:$0xf]
        %v652 = vsel %vm584, %v517, %v651
        %653 = vst [vmem:[%s241 + $0x68] sm:$0xf] %v652
        %v654 = vld [vmem:[%s241 + $0x6c] sm:$0x1]
        %v655 = vsel %vm244, %v518, %v654
        %656 = vst [vmem:[%s241 + $0x6c] sm:$0x1] %v655
        %v657 = vld [vmem:[%s241 + $0x70] sm:$0xf]
        %v658 = vsel %vm584, %v525, %v657
        %659 = vst [vmem:[%s241 + $0x70] sm:$0xf] %v658
        %v660 = vld [vmem:[%s241 + $0x74] sm:$0x1]
        %v661 = vsel %vm244, %v526, %v660
        %662 = vst [vmem:[%s241 + $0x74] sm:$0x1] %v661
        %v663 = vld [vmem:[%s241 + $0x78] sm:$0xf]
        %v664 = vsel %vm584, %v533, %v663
        %665 = vst [vmem:[%s241 + $0x78] sm:$0xf] %v664
        %v666 = vld [vmem:[%s241 + $0x7c] sm:$0x1]
        %v667 = vsel %vm244, %v534, %v666
        %668 = vst [vmem:[%s241 + $0x7c] sm:$0x1] %v667
        %v669 = vld [vmem:[%s241 + $0x80] sm:$0xf]
        %v670 = vsel %vm584, %v541, %v669
        %671 = vst [vmem:[%s241 + $0x80] sm:$0xf] %v670
        %v672 = vld [vmem:[%s241 + $0x84] sm:$0x1]
        %v673 = vsel %vm244, %v542, %v672
        %674 = vst [vmem:[%s241 + $0x84] sm:$0x1] %v673
        %v675 = vld [vmem:[%s241 + $0x88] sm:$0xf]
        %v676 = vsel %vm584, %v549, %v675
        %677 = vst [vmem:[%s241 + $0x88] sm:$0xf] %v676
        %v678 = vld [vmem:[%s241 + $0x8c] sm:$0x1]
        %v679 = vsel %vm244, %v550, %v678
        %680 = vst [vmem:[%s241 + $0x8c] sm:$0x1] %v679
        %v681 = vld [vmem:[#allocation2] sm:$0xf]
        %v682 = vld [vmem:[#allocation2 + $0x4] sm:$0x1]
        %v683 = vld [vmem:[#allocation2 + $0x8] sm:$0xf]
        %v684 = vld [vmem:[#allocation2 + $0xc] sm:$0x1]
        %v685 = vld [vmem:[#allocation2 + $0x10] sm:$0xf]
        %v686 = vld [vmem:[#allocation2 + $0x14] sm:$0x1]
        %v687 = vld [vmem:[#allocation2 + $0x18] sm:$0xf]
        %v688 = vld [vmem:[#allocation2 + $0x1c] sm:$0x1]
        %v689 = vld [vmem:[#allocation2 + $0x20] sm:$0xf]
        %v690 = vld [vmem:[#allocation2 + $0x24] sm:$0x1]
        %v691 = vld [vmem:[#allocation2 + $0x28] sm:$0xf]
        %v692 = vld [vmem:[#allocation2 + $0x2c] sm:$0x1]
        %v693 = vld [vmem:[#allocation2 + $0x30] sm:$0xf]
        %v694 = vld [vmem:[#allocation2 + $0x34] sm:$0x1]
        %v695 = vld [vmem:[#allocation2 + $0x38] sm:$0xf]
        %v696 = vld [vmem:[#allocation2 + $0x3c] sm:$0x1]
        %v697 = vld [vmem:[#allocation2 + $0x40] sm:$0xf]
        %v698 = vld [vmem:[#allocation2 + $0x44] sm:$0x1]
        %v699 = vld [vmem:[#allocation2 + $0x48] sm:$0xf]
        %v700 = vld [vmem:[#allocation2 + $0x4c] sm:$0x1]
        %v701 = vld [vmem:[#allocation2 + $0x50] sm:$0xf]
        %v702 = vld [vmem:[#allocation2 + $0x54] sm:$0x1]
        %v703 = vld [vmem:[#allocation2 + $0x58] sm:$0xf]
        %v704 = vld [vmem:[#allocation2 + $0x5c] sm:$0x1]
        %v705 = vld [vmem:[#allocation2 + $0x60] sm:$0xf]
        %v706 = vld [vmem:[#allocation2 + $0x64] sm:$0x1]
        %v707 = vld [vmem:[#allocation2 + $0x68] sm:$0xf]
        %v708 = vld [vmem:[#allocation2 + $0x6c] sm:$0x1]
        %v709 = vld [vmem:[#allocation2 + $0x70] sm:$0xf]
        %v710 = vld [vmem:[#allocation2 + $0x74] sm:$0x1]
        %v711 = vld [vmem:[#allocation2 + $0x78] sm:$0xf]
        %v712 = vld [vmem:[#allocation2 + $0x7c] sm:$0x1]
        %v713 = vld [vmem:[#allocation2 + $0x80] sm:$0xf]
        %v714 = vld [vmem:[#allocation2 + $0x84] sm:$0x1]
        %v715 = vld [vmem:[#allocation2 + $0x88] sm:$0xf]
        %v716 = vld [vmem:[#allocation2 + $0x8c] sm:$0x1]
        %v717 = vld [vmem:[#allocation2 + $0x90] sm:$0xf]
        %v718 = vld [vmem:[#allocation2 + $0x94] sm:$0x1]
        %v719 = vld [vmem:[#allocation2 + $0x98] sm:$0xf]
        %v720 = vld [vmem:[#allocation2 + $0x9c] sm:$0x1]
        %vm721 = vsmask.f32 3328
        %vm722 = vsmask.f32 7440
        %vm723 = vmor %vm721, %vm722
        %v725 = vshrl.u32 %v681, 16
        %v727 = vrot.slane %v725, 4
        %v728 = vshll.u32 %v681, 16
        %v730 = vrot.slane %v728, 5
        %v731 = vor.u32 %v727, %v730
        %v732 = vrot.slane %v731, 4
        %v734 = vshll.u32 %v682, 16
        %v736 = vrot.slane %v734, 5
        %v737 = vsel %vm723, %v732, %v736
        %v739 = vshrl.u32 %v683, 16
        %v741 = vrot.slane %v739, 4
        %v742 = vshll.u32 %v683, 16
        %v744 = vrot.slane %v742, 5
        %v745 = vor.u32 %v741, %v744
        %v746 = vrot.slane %v745, 4
        %v748 = vshll.u32 %v684, 16
        %v750 = vrot.slane %v748, 5
        %v751 = vsel %vm723, %v746, %v750
        %v753 = vshrl.u32 %v685, 16
        %v755 = vrot.slane %v753, 4
        %v756 = vshll.u32 %v685, 16
        %v758 = vrot.slane %v756, 5
        %v759 = vor.u32 %v755, %v758
        %v760 = vrot.slane %v759, 4
        %v762 = vshll.u32 %v686, 16
        %v764 = vrot.slane %v762, 5
        %v765 = vsel %vm723, %v760, %v764
        %v767 = vshrl.u32 %v687, 16
        %v769 = vrot.slane %v767, 4
        %v770 = vshll.u32 %v687, 16
        %v772 = vrot.slane %v770, 5
        %v773 = vor.u32 %v769, %v772
        %v774 = vrot.slane %v773, 4
        %v776 = vshll.u32 %v688, 16
        %v778 = vrot.slane %v776, 5
        %v779 = vsel %vm723, %v774, %v778
        %v781 = vshrl.u32 %v689, 16
        %v783 = vrot.slane %v781, 4
        %v784 = vshll.u32 %v689, 16
        %v786 = vrot.slane %v784, 5
        %v787 = vor.u32 %v783, %v786
        %v788 = vrot.slane %v787, 4
        %v790 = vshll.u32 %v690, 16
        %v792 = vrot.slane %v790, 5
        %v793 = vsel %vm723, %v788, %v792
        %v795 = vshrl.u32 %v691, 16
        %v797 = vrot.slane %v795, 4
        %v798 = vshll.u32 %v691, 16
        %v800 = vrot.slane %v798, 5
        %v801 = vor.u32 %v797, %v800
        %v802 = vrot.slane %v801, 4
        %v804 = vshll.u32 %v692, 16
        %v806 = vrot.slane %v804, 5
        %v807 = vsel %vm723, %v802, %v806
        %v809 = vshrl.u32 %v693, 16
        %v811 = vrot.slane %v809, 4
        %v812 = vshll.u32 %v693, 16
        %v814 = vrot.slane %v812, 5
        %v815 = vor.u32 %v811, %v814
        %v816 = vrot.slane %v815, 4
        %v818 = vshll.u32 %v694, 16
        %v820 = vrot.slane %v818, 5
        %v821 = vsel %vm723, %v816, %v820
        %v823 = vshrl.u32 %v695, 16
        %v825 = vrot.slane %v823, 4
        %v826 = vshll.u32 %v695, 16
        %v828 = vrot.slane %v826, 5
        %v829 = vor.u32 %v825, %v828
        %v830 = vrot.slane %v829, 4
        %v832 = vshll.u32 %v696, 16
        %v834 = vrot.slane %v832, 5
        %v835 = vsel %vm723, %v830, %v834
        %v837 = vshrl.u32 %v701, 16
        %v839 = vrot.slane %v837, 4
        %v840 = vshll.u32 %v701, 16
        %v842 = vrot.slane %v840, 5
        %v843 = vor.u32 %v839, %v842
        %v844 = vrot.slane %v843, 4
        %v846 = vshll.u32 %v702, 16
        %v848 = vrot.slane %v846, 5
        %v849 = vsel %vm723, %v844, %v848
        %v851 = vshrl.u32 %v703, 16
        %v853 = vrot.slane %v851, 4
        %v854 = vshll.u32 %v703, 16
        %v856 = vrot.slane %v854, 5
        %v857 = vor.u32 %v853, %v856
        %v858 = vrot.slane %v857, 4
        %v860 = vshll.u32 %v704, 16
        %v862 = vrot.slane %v860, 5
        %v863 = vsel %vm723, %v858, %v862
        %v865 = vshrl.u32 %v705, 16
        %v867 = vrot.slane %v865, 4
        %v868 = vshll.u32 %v705, 16
        %v870 = vrot.slane %v868, 5
        %v871 = vor.u32 %v867, %v870
        %v872 = vrot.slane %v871, 4
        %v874 = vshll.u32 %v706, 16
        %v876 = vrot.slane %v874, 5
        %v877 = vsel %vm723, %v872, %v876
        %v879 = vshrl.u32 %v707, 16
        %v881 = vrot.slane %v879, 4
        %v882 = vshll.u32 %v707, 16
        %v884 = vrot.slane %v882, 5
        %v885 = vor.u32 %v881, %v884
        %v886 = vrot.slane %v885, 4
        %v888 = vshll.u32 %v708, 16
        %v890 = vrot.slane %v888, 5
        %v891 = vsel %vm723, %v886, %v890
        %v893 = vshrl.u32 %v709, 16
        %v895 = vrot.slane %v893, 4
        %v896 = vshll.u32 %v709, 16
        %v898 = vrot.slane %v896, 5
        %v899 = vor.u32 %v895, %v898
        %v900 = vrot.slane %v899, 4
        %v902 = vshll.u32 %v710, 16
        %v904 = vrot.slane %v902, 5
        %v905 = vsel %vm723, %v900, %v904
        %v907 = vshrl.u32 %v711, 16
        %v909 = vrot.slane %v907, 4
        %v910 = vshll.u32 %v711, 16
        %v912 = vrot.slane %v910, 5
        %v913 = vor.u32 %v909, %v912
        %v914 = vrot.slane %v913, 4
        %v916 = vshll.u32 %v712, 16
        %v918 = vrot.slane %v916, 5
        %v919 = vsel %vm723, %v914, %v918
        %v921 = vshrl.u32 %v713, 16
        %v923 = vrot.slane %v921, 4
        %v924 = vshll.u32 %v713, 16
        %v926 = vrot.slane %v924, 5
        %v927 = vor.u32 %v923, %v926
        %v928 = vrot.slane %v927, 4
        %v930 = vshll.u32 %v714, 16
        %v932 = vrot.slane %v930, 5
        %v933 = vsel %vm723, %v928, %v932
        %v935 = vshrl.u32 %v715, 16
        %v937 = vrot.slane %v935, 4
        %v938 = vshll.u32 %v715, 16
        %v940 = vrot.slane %v938, 5
        %v941 = vor.u32 %v937, %v940
        %v942 = vrot.slane %v941, 4
        %v944 = vshll.u32 %v716, 16
        %v946 = vrot.slane %v944, 5
        %v947 = vsel %vm723, %v942, %v946
        %vm980 = vcmask 1042432
        %vm981 = vcmask 1046532
        %vm982 = vmor %vm980, %vm981
        %v983 = vrot.slane %v681, 5
        %v984 = vrot.slane %v983, 4
        %v985 = vrot.slane %v682, 5
        %v986 = vsel %vm982, %v984, %v985
        %v987 = vrot.slane %v683, 5
        %v988 = vrot.slane %v987, 4
        %v989 = vrot.slane %v684, 5
        %v990 = vsel %vm982, %v988, %v989
        %v991 = vrot.slane %v685, 5
        %v992 = vrot.slane %v991, 4
        %v993 = vrot.slane %v686, 5
        %v994 = vsel %vm982, %v992, %v993
        %v995 = vrot.slane %v687, 5
        %v996 = vrot.slane %v995, 4
        %v997 = vrot.slane %v688, 5
        %v998 = vsel %vm982, %v996, %v997
        %v999 = vrot.slane %v689, 5
        %v1000 = vrot.slane %v999, 4
        %v1001 = vrot.slane %v690, 5
        %v1002 = vsel %vm982, %v1000, %v1001
        %v1003 = vrot.slane %v691, 5
        %v1004 = vrot.slane %v1003, 4
        %v1005 = vrot.slane %v692, 5
        %v1006 = vsel %vm982, %v1004, %v1005
        %v1007 = vrot.slane %v693, 5
        %v1008 = vrot.slane %v1007, 4
        %v1009 = vrot.slane %v694, 5
        %v1010 = vsel %vm982, %v1008, %v1009
        %v1011 = vrot.slane %v695, 5
        %v1012 = vrot.slane %v1011, 4
        %v1013 = vrot.slane %v696, 5
        %v1014 = vsel %vm982, %v1012, %v1013
        %v1015 = vrot.slane %v701, 5
        %v1016 = vrot.slane %v1015, 4
        %v1017 = vrot.slane %v702, 5
        %v1018 = vsel %vm982, %v1016, %v1017
        %v1019 = vrot.slane %v703, 5
        %v1020 = vrot.slane %v1019, 4
        %v1021 = vrot.slane %v704, 5
        %v1022 = vsel %vm982, %v1020, %v1021
        %v1023 = vrot.slane %v705, 5
        %v1024 = vrot.slane %v1023, 4
        %v1025 = vrot.slane %v706, 5
        %v1026 = vsel %vm982, %v1024, %v1025
        %v1027 = vrot.slane %v707, 5
        %v1028 = vrot.slane %v1027, 4
        %v1029 = vrot.slane %v708, 5
        %v1030 = vsel %vm982, %v1028, %v1029
        %v1031 = vrot.slane %v709, 5
        %v1032 = vrot.slane %v1031, 4
        %v1033 = vrot.slane %v710, 5
        %v1034 = vsel %vm982, %v1032, %v1033
        %v1035 = vrot.slane %v711, 5
        %v1036 = vrot.slane %v1035, 4
        %v1037 = vrot.slane %v712, 5
        %v1038 = vsel %vm982, %v1036, %v1037
        %v1039 = vrot.slane %v713, 5
        %v1040 = vrot.slane %v1039, 4
        %v1041 = vrot.slane %v714, 5
        %v1042 = vsel %vm982, %v1040, %v1041
        %v1043 = vrot.slane %v715, 5
        %v1044 = vrot.slane %v1043, 4
        %v1045 = vrot.slane %v716, 5
        %v1046 = vsel %vm982, %v1044, %v1045
        %v1047 = vunpack.c.l.b16 %v681
        %v1048 = vunpack.c.l.b16 %v683
        %v1049 = vunpack.c.l.b16 %v685
        %v1050 = vunpack.c.l.b16 %v687
        %v1051 = vunpack.c.l.b16 %v689
        %v1052 = vunpack.c.l.b16 %v691
        %v1053 = vunpack.c.l.b16 %v693
        %v1054 = vunpack.c.l.b16 %v695
        %v1055 = vunpack.c.l.b16 %v701
        %v1056 = vunpack.c.l.b16 %v703
        %v1057 = vunpack.c.l.b16 %v705
        %v1058 = vunpack.c.l.b16 %v707
        %v1059 = vunpack.c.l.b16 %v709
        %v1060 = vunpack.c.l.b16 %v711
        %v1061 = vunpack.c.l.b16 %v713
        %v1062 = vunpack.c.l.b16 %v715
        %v1063 = vpack.c.b16 %v1048, %v1047
        %v1064 = vpack.c.b16 %v1050, %v1049
        %v1065 = vpack.c.b16 %v1052, %v1051
        %v1066 = vpack.c.b16 %v1054, %v1053
        %v1067 = vpack.c.b16 %v1056, %v1055
        %v1068 = vpack.c.b16 %v1058, %v1057
        %v1069 = vpack.c.b16 %v1060, %v1059
        %v1070 = vpack.c.b16 %v1062, %v1061
        %v1071 = vunpack.c.l.b16 %v737
        %v1072 = vunpack.c.l.b16 %v751
        %v1073 = vunpack.c.l.b16 %v765
        %v1074 = vunpack.c.l.b16 %v779
        %v1075 = vunpack.c.l.b16 %v793
        %v1076 = vunpack.c.l.b16 %v807
        %v1077 = vunpack.c.l.b16 %v821
        %v1078 = vunpack.c.l.b16 %v835
        %v1079 = vunpack.c.l.b16 %v849
        %v1080 = vunpack.c.l.b16 %v863
        %v1081 = vunpack.c.l.b16 %v877
        %v1082 = vunpack.c.l.b16 %v891
        %v1083 = vunpack.c.l.b16 %v905
        %v1084 = vunpack.c.l.b16 %v919
        %v1085 = vunpack.c.l.b16 %v933
        %v1086 = vunpack.c.l.b16 %v947
        %v1087 = vpack.c.b16 %v1072, %v1071
        %v1088 = vpack.c.b16 %v1074, %v1073
        %v1089 = vpack.c.b16 %v1076, %v1075
        %v1090 = vpack.c.b16 %v1078, %v1077
        %v1091 = vpack.c.b16 %v1080, %v1079
        %v1092 = vpack.c.b16 %v1082, %v1081
        %v1093 = vpack.c.b16 %v1084, %v1083
        %v1094 = vpack.c.b16 %v1086, %v1085
        %1095 = vrot.lane.b32.xlu0 %v1087, 32
        %v1096 = vpop.permute.xlu0 %1095
        %1097 = vrot.lane.b32.xlu0 %v1088, 32
        %v1098 = vpop.permute.xlu0 %1097
        %1099 = vrot.lane.b32.xlu0 %v1089, 32
        %v1100 = vpop.permute.xlu0 %1099
        %1101 = vrot.lane.b32.xlu0 %v1090, 32
        %v1102 = vpop.permute.xlu0 %1101
        %1103 = vrot.lane.b32.xlu0 %v1091, 32
        %v1104 = vpop.permute.xlu0 %1103
        %1105 = vrot.lane.b32.xlu0 %v1092, 32
        %v1106 = vpop.permute.xlu0 %1105
        %1107 = vrot.lane.b32.xlu0 %v1093, 32
        %v1108 = vpop.permute.xlu0 %1107
        %1109 = vrot.lane.b32.xlu0 %v1094, 32
        %v1110 = vpop.permute.xlu0 %1109
        %v1111 = vunpack.c.l.b16 %v986
        %v1112 = vunpack.c.l.b16 %v990
        %v1113 = vunpack.c.l.b16 %v994
        %v1114 = vunpack.c.l.b16 %v998
        %v1115 = vunpack.c.l.b16 %v1002
        %v1116 = vunpack.c.l.b16 %v1006
        %v1117 = vunpack.c.l.b16 %v1010
        %v1118 = vunpack.c.l.b16 %v1014
        %v1119 = vunpack.c.l.b16 %v1018
        %v1120 = vunpack.c.l.b16 %v1022
        %v1121 = vunpack.c.l.b16 %v1026
        %v1122 = vunpack.c.l.b16 %v1030
        %v1123 = vunpack.c.l.b16 %v1034
        %v1124 = vunpack.c.l.b16 %v1038
        %v1125 = vunpack.c.l.b16 %v1042
        %v1126 = vunpack.c.l.b16 %v1046
        %v1127 = vpack.c.b16 %v1112, %v1111
        %v1128 = vpack.c.b16 %v1114, %v1113
        %v1129 = vpack.c.b16 %v1116, %v1115
        %v1130 = vpack.c.b16 %v1118, %v1117
        %v1131 = vpack.c.b16 %v1120, %v1119
        %v1132 = vpack.c.b16 %v1122, %v1121
        %v1133 = vpack.c.b16 %v1124, %v1123
        %v1134 = vpack.c.b16 %v1126, %v1125
        %1135 = vrot.lane.b32.xlu0 %v1127, 64
        %v1136 = vpop.permute.xlu0 %1135
        %1137 = vrot.lane.b32.xlu0 %v1128, 64
        %v1138 = vpop.permute.xlu0 %1137
        %1139 = vrot.lane.b32.xlu0 %v1129, 64
        %v1140 = vpop.permute.xlu0 %1139
        %1141 = vrot.lane.b32.xlu0 %v1130, 64
        %v1142 = vpop.permute.xlu0 %1141
        %1143 = vrot.lane.b32.xlu0 %v1131, 64
        %v1144 = vpop.permute.xlu0 %1143
        %1145 = vrot.lane.b32.xlu0 %v1132, 64
        %v1146 = vpop.permute.xlu0 %1145
        %1147 = vrot.lane.b32.xlu0 %v1133, 64
        %v1148 = vpop.permute.xlu0 %1147
        %1149 = vrot.lane.b32.xlu0 %v1134, 64
        %v1150 = vpop.permute.xlu0 %1149
        %v1153 = vunpack.c.l.b16 %v697
        %v1154 = vunpack.c.l.b16 %v717
        %v1155 = vpack.c.b16 %v1049, %v1048
        %v1156 = vpack.c.b16 %v1051, %v1050
        %v1157 = vpack.c.b16 %v1053, %v1052
        %v1158 = vpack.c.b16 %v1153, %v1054
        %v1159 = vpack.c.b16 %v1057, %v1056
        %v1160 = vpack.c.b16 %v1059, %v1058
        %v1161 = vpack.c.b16 %v1061, %v1060
        %v1162 = vpack.c.b16 %v1154, %v1062
        %1163 = vrot.lane.b32.xlu0 %v1155, 96
        %v1164 = vpop.permute.xlu0 %1163
        %1165 = vrot.lane.b32.xlu0 %v1156, 96
        %v1166 = vpop.permute.xlu0 %1165
        %1167 = vrot.lane.b32.xlu0 %v1157, 96
        %v1168 = vpop.permute.xlu0 %1167
        %1169 = vrot.lane.b32.xlu0 %v1158, 96
        %v1170 = vpop.permute.xlu0 %1169
        %1171 = vrot.lane.b32.xlu0 %v1159, 96
        %v1172 = vpop.permute.xlu0 %1171
        %1173 = vrot.lane.b32.xlu0 %v1160, 96
        %v1174 = vpop.permute.xlu0 %1173
        %1175 = vrot.lane.b32.xlu0 %v1161, 96
        %v1176 = vpop.permute.xlu0 %1175
        %1177 = vrot.lane.b32.xlu0 %v1162, 96
        %v1178 = vpop.permute.xlu0 %1177
        %vm1179 = vcmask 261120
        %v1182 = vsel %vm1179, %v1063, %v1096
        %v1185 = vsel %vm1179, %v1064, %v1098
        %v1188 = vsel %vm1179, %v1065, %v1100
        %v1191 = vsel %vm1179, %v1066, %v1102
        %v1194 = vsel %vm1179, %v1067, %v1104
        %v1197 = vsel %vm1179, %v1068, %v1106
        %v1200 = vsel %vm1179, %v1069, %v1108
        %v1203 = vsel %vm1179, %v1070, %v1110
        %vm1204 = vcmask 523264
        %v1206 = vsel %vm1204, %v1182, %v1136
        %v1208 = vsel %vm1204, %v1185, %v1138
        %v1210 = vsel %vm1204, %v1188, %v1140
        %v1212 = vsel %vm1204, %v1191, %v1142
        %v1214 = vsel %vm1204, %v1194, %v1144
        %v1216 = vsel %vm1204, %v1197, %v1146
        %v1218 = vsel %vm1204, %v1200, %v1148
        %v1220 = vsel %vm1204, %v1203, %v1150
        %vm1221 = vcmask 785408
        %v1223 = vsel %vm1221, %v1206, %v1164
        %v1226 = vsel %vm1221, %v1208, %v1166
        %v1229 = vsel %vm1221, %v1210, %v1168
        %v1232 = vsel %vm1221, %v1212, %v1170
        %v1235 = vsel %vm1221, %v1214, %v1172
        %v1238 = vsel %vm1221, %v1216, %v1174
        %v1241 = vsel %vm1221, %v1218, %v1176
        %v1244 = vsel %vm1221, %v1220, %v1178
        %1246 = vst [vmem:[#allocation3] sm:$0xff] %v1223
        %1247 = vst [vmem:[#allocation3 + $0x18] sm:$0xff] %v1226
        %1248 = vst [vmem:[#allocation3 + $0x30] sm:$0xff] %v1229
        %1249 = vst [vmem:[#allocation3 + $0x48] sm:$0xff] %v1232
        %1250 = vst [vmem:[#allocation3 + $0x60] sm:$0xff] %v1235
        %1251 = vst [vmem:[#allocation3 + $0x78] sm:$0xff] %v1238
        %1252 = vst [vmem:[#allocation3 + $0x90] sm:$0xff] %v1241
        %1253 = vst [vmem:[#allocation3 + $0xa8] sm:$0xff] %v1244
        %v1255 = vshrl.u32 %v697, 16
        %v1257 = vrot.slane %v1255, 4
        %v1258 = vshll.u32 %v697, 16
        %v1260 = vrot.slane %v1258, 5
        %v1261 = vor.u32 %v1257, %v1260
        %v1262 = vrot.slane %v1261, 4
        %v1264 = vshll.u32 %v698, 16
        %v1266 = vrot.slane %v1264, 5
        %v1267 = vsel %vm723, %v1262, %v1266
        %v1269 = vshrl.u32 %v717, 16
        %v1271 = vrot.slane %v1269, 4
        %v1272 = vshll.u32 %v717, 16
        %v1274 = vrot.slane %v1272, 5
        %v1275 = vor.u32 %v1271, %v1274
        %v1276 = vrot.slane %v1275, 4
        %v1278 = vshll.u32 %v718, 16
        %v1280 = vrot.slane %v1278, 5
        %v1281 = vsel %vm723, %v1276, %v1280
        %v1284 = vrot.slane %v697, 5
        %v1285 = vrot.slane %v1284, 4
        %v1286 = vrot.slane %v698, 5
        %v1287 = vsel %vm982, %v1285, %v1286
        %v1288 = vrot.slane %v717, 5
        %v1289 = vrot.slane %v1288, 4
        %v1290 = vrot.slane %v718, 5
        %v1291 = vsel %vm982, %v1289, %v1290
        %v1293 = vshrl.u32 %v699, 16
        %v1295 = vrot.slane %v1293, 4
        %v1296 = vshll.u32 %v699, 16
        %v1298 = vrot.slane %v1296, 5
        %v1299 = vor.u32 %v1295, %v1298
        %v1300 = vrot.slane %v1299, 4
        %v1302 = vshll.u32 %v700, 16
        %v1304 = vrot.slane %v1302, 5
        %v1305 = vsel %vm723, %v1300, %v1304
        %v1307 = vshrl.u32 %v719, 16
        %v1309 = vrot.slane %v1307, 4
        %v1310 = vshll.u32 %v719, 16
        %v1312 = vrot.slane %v1310, 5
        %v1313 = vor.u32 %v1309, %v1312
        %v1314 = vrot.slane %v1313, 4
        %v1316 = vshll.u32 %v720, 16
        %v1318 = vrot.slane %v1316, 5
        %v1319 = vsel %vm723, %v1314, %v1318
        %v1320 = vunpack.c.l.b16 %v1267
        %v1321 = vunpack.c.l.b16 %v1281
        %v1322 = vpack.c.b16 %v1073, %v1072
        %v1323 = vpack.c.b16 %v1075, %v1074
        %v1324 = vpack.c.b16 %v1077, %v1076
        %v1325 = vpack.c.b16 %v1320, %v1078
        %v1326 = vpack.c.b16 %v1081, %v1080
        %v1327 = vpack.c.b16 %v1083, %v1082
        %v1328 = vpack.c.b16 %v1085, %v1084
        %v1329 = vpack.c.b16 %v1321, %v1086
        %v1330 = vunpack.c.l.b16 %v1287
        %v1331 = vunpack.c.l.b16 %v1291
        %v1332 = vpack.c.b16 %v1113, %v1112
        %v1333 = vpack.c.b16 %v1115, %v1114
        %v1334 = vpack.c.b16 %v1117, %v1116
        %v1335 = vpack.c.b16 %v1330, %v1118
        %v1336 = vpack.c.b16 %v1121, %v1120
        %v1337 = vpack.c.b16 %v1123, %v1122
        %v1338 = vpack.c.b16 %v1125, %v1124
        %v1339 = vpack.c.b16 %v1331, %v1126
        %1340 = vrot.lane.b32.xlu0 %v1332, 32
        %v1341 = vpop.permute.xlu0 %1340
        %1342 = vrot.lane.b32.xlu0 %v1333, 32
        %v1343 = vpop.permute.xlu0 %1342
        %1344 = vrot.lane.b32.xlu0 %v1334, 32
        %v1345 = vpop.permute.xlu0 %1344
        %1346 = vrot.lane.b32.xlu0 %v1335, 32
        %v1347 = vpop.permute.xlu0 %1346
        %1348 = vrot.lane.b32.xlu0 %v1336, 32
        %v1349 = vpop.permute.xlu0 %1348
        %1350 = vrot.lane.b32.xlu0 %v1337, 32
        %v1351 = vpop.permute.xlu0 %1350
        %1352 = vrot.lane.b32.xlu0 %v1338, 32
        %v1353 = vpop.permute.xlu0 %1352
        %1354 = vrot.lane.b32.xlu0 %v1339, 32
        %v1355 = vpop.permute.xlu0 %1354
        %v1358 = vunpack.c.l.b16 %v699
        %v1359 = vunpack.c.l.b16 %v719
        %v1360 = vpack.c.b16 %v1358, %v1153
        %v1361 = vpack.c.b16 %v1359, %v1154
        %1362 = vrot.lane.b32.xlu0 %v1064, 64
        %v1363 = vpop.permute.xlu0 %1362
        %1364 = vrot.lane.b32.xlu0 %v1065, 64
        %v1365 = vpop.permute.xlu0 %1364
        %1366 = vrot.lane.b32.xlu0 %v1066, 64
        %v1367 = vpop.permute.xlu0 %1366
        %1368 = vrot.lane.b32.xlu0 %v1360, 64
        %v1369 = vpop.permute.xlu0 %1368
        %1370 = vrot.lane.b32.xlu0 %v1068, 64
        %v1371 = vpop.permute.xlu0 %1370
        %1372 = vrot.lane.b32.xlu0 %v1069, 64
        %v1373 = vpop.permute.xlu0 %1372
        %1374 = vrot.lane.b32.xlu0 %v1070, 64
        %v1375 = vpop.permute.xlu0 %1374
        %1376 = vrot.lane.b32.xlu0 %v1361, 64
        %v1377 = vpop.permute.xlu0 %1376
        %v1378 = vunpack.c.l.b16 %v1305
        %v1379 = vunpack.c.l.b16 %v1319
        %v1380 = vpack.c.b16 %v1378, %v1320
        %v1381 = vpack.c.b16 %v1379, %v1321
        %1382 = vrot.lane.b32.xlu0 %v1088, 96
        %v1383 = vpop.permute.xlu0 %1382
        %1384 = vrot.lane.b32.xlu0 %v1089, 96
        %v1385 = vpop.permute.xlu0 %1384
        %1386 = vrot.lane.b32.xlu0 %v1090, 96
        %v1387 = vpop.permute.xlu0 %1386
        %1388 = vrot.lane.b32.xlu0 %v1380, 96
        %v1389 = vpop.permute.xlu0 %1388
        %1390 = vrot.lane.b32.xlu0 %v1092, 96
        %v1391 = vpop.permute.xlu0 %1390
        %1392 = vrot.lane.b32.xlu0 %v1093, 96
        %v1393 = vpop.permute.xlu0 %1392
        %1394 = vrot.lane.b32.xlu0 %v1094, 96
        %v1395 = vpop.permute.xlu0 %1394
        %1396 = vrot.lane.b32.xlu0 %v1381, 96
        %v1397 = vpop.permute.xlu0 %1396
        %v1400 = vsel %vm1179, %v1322, %v1341
        %v1403 = vsel %vm1179, %v1323, %v1343
        %v1406 = vsel %vm1179, %v1324, %v1345
        %v1409 = vsel %vm1179, %v1325, %v1347
        %v1412 = vsel %vm1179, %v1326, %v1349
        %v1415 = vsel %vm1179, %v1327, %v1351
        %v1418 = vsel %vm1179, %v1328, %v1353
        %v1421 = vsel %vm1179, %v1329, %v1355
        %v1423 = vsel %vm1204, %v1400, %v1363
        %v1425 = vsel %vm1204, %v1403, %v1365
        %v1427 = vsel %vm1204, %v1406, %v1367
        %v1429 = vsel %vm1204, %v1409, %v1369
        %v1431 = vsel %vm1204, %v1412, %v1371
        %v1433 = vsel %vm1204, %v1415, %v1373
        %v1435 = vsel %vm1204, %v1418, %v1375
        %v1437 = vsel %vm1204, %v1421, %v1377
        %v1439 = vsel %vm1221, %v1423, %v1383
        %v1442 = vsel %vm1221, %v1425, %v1385
        %v1445 = vsel %vm1221, %v1427, %v1387
        %v1448 = vsel %vm1221, %v1429, %v1389
        %v1451 = vsel %vm1221, %v1431, %v1391
        %v1454 = vsel %vm1221, %v1433, %v1393
        %v1457 = vsel %vm1221, %v1435, %v1395
        %v1460 = vsel %vm1221, %v1437, %v1397
        %1462 = vst [vmem:[#allocation3 + $0x8] sm:$0xff] %v1439
        %1463 = vst [vmem:[#allocation3 + $0x20] sm:$0xff] %v1442
        %1464 = vst [vmem:[#allocation3 + $0x38] sm:$0xff] %v1445
        %1465 = vst [vmem:[#allocation3 + $0x50] sm:$0xff] %v1448
        %1466 = vst [vmem:[#allocation3 + $0x68] sm:$0xff] %v1451
        %1467 = vst [vmem:[#allocation3 + $0x80] sm:$0xff] %v1454
        %1468 = vst [vmem:[#allocation3 + $0x98] sm:$0xff] %v1457
        %1469 = vst [vmem:[#allocation3 + $0xb0] sm:$0xff] %v1460
        %v1472 = vrot.slane %v699, 5
        %v1473 = vrot.slane %v1472, 4
        %v1474 = vrot.slane %v700, 5
        %v1475 = vsel %vm982, %v1473, %v1474
        %v1476 = vrot.slane %v719, 5
        %v1477 = vrot.slane %v1476, 4
        %v1478 = vrot.slane %v720, 5
        %v1479 = vsel %vm982, %v1477, %v1478
        %v1480 = vunpack.c.l.b16 %v1475
        %v1481 = vunpack.c.l.b16 %v1479
        %v1482 = vpack.c.b16 %v1480, %v1330
        %v1483 = vpack.c.b16 %v1481, %v1331
        %1492 = vst.msk [vmem:[#allocation3 + $0x10] sm:$0xff] %vm1179, %v1128
        %1493 = vst.msk [vmem:[#allocation3 + $0x28] sm:$0xff] %vm1179, %v1129
        %1494 = vst.msk [vmem:[#allocation3 + $0x40] sm:$0xff] %vm1179, %v1130
        %1495 = vst.msk [vmem:[#allocation3 + $0x58] sm:$0xff] %vm1179, %v1482
        %1496 = vst.msk [vmem:[#allocation3 + $0x70] sm:$0xff] %vm1179, %v1132
        %1497 = vst.msk [vmem:[#allocation3 + $0x88] sm:$0xff] %vm1179, %v1133
        %1498 = vst.msk [vmem:[#allocation3 + $0xa0] sm:$0xff] %vm1179, %v1134
        %1499 = vst.msk [vmem:[#allocation3 + $0xb8] sm:$0xff] %vm1179, %v1483
        %v1500 = vld [vmem:[#allocation3] sm:$0xff]
        %v1501 = vld [vmem:[#allocation3 + $0x8] sm:$0xff]
        %v1502 = vld [vmem:[#allocation3 + $0x10] sm:$0xff]
        %v1503 = vld [vmem:[#allocation3 + $0x18] sm:$0xff]
        %v1504 = vld [vmem:[#allocation3 + $0x20] sm:$0xff]
        %v1505 = vld [vmem:[#allocation3 + $0x28] sm:$0xff]
        %v1506 = vld [vmem:[#allocation3 + $0x30] sm:$0xff]
        %v1507 = vld [vmem:[#allocation3 + $0x38] sm:$0xff]
        %v1508 = vld [vmem:[#allocation3 + $0x40] sm:$0xff]
        %v1509 = vld [vmem:[#allocation3 + $0x48] sm:$0xff]
        %v1510 = vld [vmem:[#allocation3 + $0x50] sm:$0xff]
        %v1511 = vld [vmem:[#allocation3 + $0x58] sm:$0xff]
        %v1512 = vld [vmem:[#allocation3 + $0x60] sm:$0xff]
        %v1513 = vld [vmem:[#allocation3 + $0x68] sm:$0xff]
        %v1514 = vld [vmem:[#allocation3 + $0x70] sm:$0xff]
        %v1515 = vld [vmem:[#allocation3 + $0x78] sm:$0xff]
        %v1516 = vld [vmem:[#allocation3 + $0x80] sm:$0xff]
        %v1517 = vld [vmem:[#allocation3 + $0x88] sm:$0xff]
        %v1518 = vld [vmem:[#allocation3 + $0x90] sm:$0xff]
        %v1519 = vld [vmem:[#allocation3 + $0x98] sm:$0xff]
        %v1520 = vld [vmem:[#allocation3 + $0xa0] sm:$0xff]
        %v1521 = vld [vmem:[#allocation3 + $0xa8] sm:$0xff]
        %v1522 = vld [vmem:[#allocation3 + $0xb0] sm:$0xff]
        %v1523 = vld [vmem:[#allocation3 + $0xb8] sm:$0xff]
        %v1524 = vld [vmem:[%s1] sm:$0xf]
        %v1525 = vld [vmem:[%s1 + $0x4] sm:$0xf]
        %v1526 = vld [vmem:[%s1 + $0x8] sm:$0xf]
        %v1527 = vld [vmem:[%s1 + $0xc] sm:$0xf]
        %v1528 = vld [vmem:[%s1 + $0x10] sm:$0xf]
        %v1529 = vld [vmem:[%s1 + $0x14] sm:$0xf]
        %v1530 = vld [vmem:[%s1 + $0x18] sm:$0xf]
        %v1531 = vld [vmem:[%s1 + $0x1c] sm:$0xf]
        %v1532 = vld [vmem:[%s1 + $0x20] sm:$0xf]
        %v1533 = vld [vmem:[%s1 + $0x24] sm:$0xf]
        %v1534 = vld [vmem:[%s1 + $0x28] sm:$0xf]
        %v1535 = vld [vmem:[%s1 + $0x2c] sm:$0xf]
        %v1536 = vld [vmem:[%s1 + $0x30] sm:$0xf]
        %v1537 = vld [vmem:[%s1 + $0x34] sm:$0xf]
        %v1538 = vld [vmem:[%s1 + $0x38] sm:$0xf]
        %v1539 = vld [vmem:[%s1 + $0x3c] sm:$0xf]
        %v1540 = vld [vmem:[%s1 + $0x40] sm:$0xf]
        %v1541 = vld [vmem:[%s1 + $0x44] sm:$0xf]
        %v1542 = vld [vmem:[%s1 + $0x48] sm:$0xf]
        %v1543 = vld [vmem:[%s1 + $0x4c] sm:$0xf]
        %v1544 = vld [vmem:[%s1 + $0x50] sm:$0xf]
        %v1545 = vld [vmem:[%s1 + $0x54] sm:$0xf]
        %v1546 = vld [vmem:[%s1 + $0x58] sm:$0xf]
        %v1547 = vld [vmem:[%s1 + $0x5c] sm:$0xf]
        %v1548 = vld [vmem:[%s1 + $0x60] sm:$0xf]
        %v1549 = vld [vmem:[%s1 + $0x64] sm:$0xf]
        %v1550 = vld [vmem:[%s1 + $0x68] sm:$0xf]
        %v1551 = vld [vmem:[%s1 + $0x6c] sm:$0xf]
        %v1552 = vld [vmem:[%s1 + $0x70] sm:$0xf]
        %v1553 = vld [vmem:[%s1 + $0x74] sm:$0xf]
        %v1554 = vld [vmem:[%s1 + $0x78] sm:$0xf]
        %v1555 = vld [vmem:[%s1 + $0x7c] sm:$0xf]
        %v1556 = vld [vmem:[%s1 + $0x80] sm:$0xf]
        %v1557 = vld [vmem:[%s1 + $0x84] sm:$0xf]
        %v1558 = vld [vmem:[%s1 + $0x88] sm:$0xf]
        %v1559 = vld [vmem:[%s1 + $0x8c] sm:$0xf]
        %v1560 = vld [vmem:[%s2] sm:$0x1]
        %v1562 = vlaneseq
        %v1563 = vshrl.u32 %v1562, 7
        %v1564 = vsub.s32 0, %v1563
        %v1565 = vrot.slane %v1560, %v1564
        %v1603 = vunpack.c.l.b16 %v1524
        %v1604 = vunpack.c.l.b16 %v1525
        %v1605 = vunpack.c.l.b16 %v1526
        %v1606 = vunpack.c.l.b16 %v1527
        %v1607 = vunpack.c.l.b16 %v1528
        %v1608 = vunpack.c.l.b16 %v1529
        %v1609 = vunpack.c.l.b16 %v1530
        %v1610 = vunpack.c.l.b16 %v1531
        %v1611 = vunpack.c.l.b16 %v1532
        %v1612 = vunpack.c.l.b16 %v1533
        %v1613 = vunpack.c.l.b16 %v1534
        %v1614 = vunpack.c.l.b16 %v1535
        %v1615 = vunpack.c.l.b16 %v1536
        %v1616 = vunpack.c.l.b16 %v1537
        %v1617 = vunpack.c.l.b16 %v1538
        %v1618 = vunpack.c.l.b16 %v1539
        %v1619 = vunpack.c.l.b16 %v1540
        %v1620 = vunpack.c.l.b16 %v1541
        %v1621 = vunpack.c.l.b16 %v1542
        %v1622 = vunpack.c.l.b16 %v1543
        %v1623 = vunpack.c.l.b16 %v1544
        %v1624 = vunpack.c.l.b16 %v1545
        %v1625 = vunpack.c.l.b16 %v1546
        %v1626 = vunpack.c.l.b16 %v1547
        %v1627 = vunpack.c.l.b16 %v1548
        %v1628 = vunpack.c.l.b16 %v1549
        %v1629 = vunpack.c.l.b16 %v1550
        %v1630 = vunpack.c.l.b16 %v1551
        %v1631 = vunpack.c.l.b16 %v1552
        %v1632 = vunpack.c.l.b16 %v1553
        %v1633 = vunpack.c.l.b16 %v1554
        %v1634 = vunpack.c.l.b16 %v1555
        %v1635 = vunpack.c.l.b16 %v1556
        %v1636 = vunpack.c.l.b16 %v1557
        %v1637 = vunpack.c.l.b16 %v1558
        %v1638 = vunpack.c.l.b16 %v1559
        %v1639 = vpack.c.b16 %v1604, %v1603
        %v1640 = vpack.c.b16 %v1606, %v1605
        %v1641 = vpack.c.b16 %v1608, %v1607
        %v1642 = vpack.c.b16 %v1610, %v1609
        %v1643 = vpack.c.b16 %v1612, %v1611
        %v1644 = vpack.c.b16 %v1614, %v1613
        %v1645 = vpack.c.b16 %v1616, %v1615
        %v1646 = vpack.c.b16 %v1618, %v1617
        %v1647 = vpack.c.b16 %v1620, %v1619
        %v1648 = vpack.c.b16 %v1622, %v1621
        %v1649 = vpack.c.b16 %v1624, %v1623
        %v1650 = vpack.c.b16 %v1626, %v1625
        %v1651 = vpack.c.b16 %v1628, %v1627
        %v1652 = vpack.c.b16 %v1630, %v1629
        %v1653 = vpack.c.b16 %v1632, %v1631
        %v1654 = vpack.c.b16 %v1634, %v1633
        %v1655 = vpack.c.b16 %v1636, %v1635
        %v1656 = vpack.c.b16 %v1638, %v1637
        %v1676 = vsel %vm1179, %v1502, 0
        %v1679 = vsel %vm1179, %v1505, 0
        %v1682 = vsel %vm1179, %v1508, 0
        %v1685 = vsel %vm1179, %v1511, 0
        %v1688 = vsel %vm1179, %v1514, 0
        %v1691 = vsel %vm1179, %v1517, 0
        %v1694 = vsel %vm1179, %v1520, 0
        %v1697 = vsel %vm1179, %v1523, 0
        %1699 = vmatprep.subr.bf16.mxu0 0
        %1700 = vmatpush1.bf16.msra.mxu0 %v1639
        %1701 = vmatprep.subr.bf16.mxu0 0
        %1702 = vmatpush1.bf16.msra.mxu0 %v1640
        %1703 = vmatprep.subr.bf16.mxu0 0
        %1704 = vmatpush1.bf16.msra.mxu0 %v1641
        %1705 = vmatprep.subr.bf16.mxu0 0
        %1706 = vmatpush1.bf16.msra.mxu0 %v1642
        %1707 = vmatprep.subr.bf16.mxu0 0
        %1708 = vmatpush1.bf16.msra.mxu0 %v1643
        %1709 = vmatprep.subr.bf16.mxu0 0
        %1710 = vmatpush1.bf16.msra.mxu0 %v1644
        %1711 = vmatprep.subr.bf16.mxu0 0
        %1712 = vmatpush1.bf16.msra.mxu0 %v1645
        %1713 = vmatprep.subr.bf16.mxu0 0
        %1714 = vmatpush1.bf16.msra.mxu0 %v1646
        %1715 = vmatprep.subr.bf16.mxu0 0
        %1716 = vmatpush1.bf16.msra.mxu0 %v1647
        %1717 = vmatprep.subr.bf16.mxu0 0
        %1718 = vmatpush1.bf16.msra.mxu0 %v1648
        %1719 = vmatprep.subr.bf16.mxu0 0
        %1720 = vmatpush1.bf16.msra.mxu0 %v1649
        %1721 = vmatprep.subr.bf16.mxu0 0
        %1722 = vmatpush1.bf16.msra.mxu0 %v1650
        %1723 = vmatprep.subr.bf16.mxu0 0
        %1724 = vmatpush1.bf16.msra.mxu0 %v1651
        %1725 = vmatprep.subr.bf16.mxu0 0
        %1726 = vmatpush1.bf16.msra.mxu0 %v1652
        %1727 = vmatprep.subr.bf16.mxu0 0
        %1728 = vmatpush1.bf16.msra.mxu0 %v1653
        %1729 = vmatprep.subr.bf16.mxu0 0
        %1730 = vmatpush1.bf16.msra.mxu0 %v1654
        %1731 = vmatprep.mubr.bf16.mxu0 %v1501
        %1732 = vmatmul.mubr.bf16.gmra.mrb[0].mxu0 %v1500
        %v1733 = vpop.f32.mrb[0].mxu0
        %v1734 = vadd.f32 %v1565, %v1733
        %v1735 = vpop.f32.mrb[0].mxu0
        %v1736 = vpop.f32.mrb[0].mxu0
        %v1737 = vadd.f32 %v1565, %v1736
        %v1738 = vpop.f32.mrb[0].mxu0
        %1739 = vmatprep.mubr.bf16.mxu0 %v1504
        %1740 = vmatmul.mubr.bf16.gmra.mrb[0].mxu0 %v1503
        %v1741 = vpop.f32.mrb[0].mxu0
        %v1742 = vadd.f32 %v1565, %v1741
        %v1743 = vpop.f32.mrb[0].mxu0
        %v1744 = vpop.f32.mrb[0].mxu0
        %v1745 = vadd.f32 %v1565, %v1744
        %v1746 = vpop.f32.mrb[0].mxu0
        %1747 = vmatprep.mubr.bf16.mxu0 %v1507
        %1748 = vmatmul.mubr.bf16.gmra.mrb[0].mxu0 %v1506
        %v1749 = vpop.f32.mrb[0].mxu0
        %v1750 = vadd.f32 %v1565, %v1749
        %v1751 = vpop.f32.mrb[0].mxu0
        %v1752 = vpop.f32.mrb[0].mxu0
        %v1753 = vadd.f32 %v1565, %v1752
        %v1754 = vpop.f32.mrb[0].mxu0
        %1755 = vmatprep.mubr.bf16.mxu0 %v1510
        %1756 = vmatmul.mubr.bf16.gmra.mrb[0].mxu0 %v1509
        %v1757 = vpop.f32.mrb[0].mxu0
        %v1758 = vadd.f32 %v1565, %v1757
        %v1759 = vpop.f32.mrb[0].mxu0
        %v1760 = vpop.f32.mrb[0].mxu0
        %v1761 = vadd.f32 %v1565, %v1760
        %v1762 = vpop.f32.mrb[0].mxu0
        %1763 = vmatprep.mubr.bf16.mxu0 %v1513
        %1764 = vmatmul.mubr.bf16.gmra.mrb[0].mxu0 %v1512
        %v1765 = vpop.f32.mrb[0].mxu0
        %v1766 = vadd.f32 %v1565, %v1765
        %v1767 = vpop.f32.mrb[0].mxu0
        %v1768 = vpop.f32.mrb[0].mxu0
        %v1769 = vadd.f32 %v1565, %v1768
        %v1770 = vpop.f32.mrb[0].mxu0
        %1771 = vmatprep.mubr.bf16.mxu0 %v1516
        %1772 = vmatmul.mubr.bf16.gmra.mrb[0].mxu0 %v1515
        %v1773 = vpop.f32.mrb[0].mxu0
        %v1774 = vadd.f32 %v1565, %v1773
        %v1775 = vpop.f32.mrb[0].mxu0
        %v1776 = vpop.f32.mrb[0].mxu0
        %v1777 = vadd.f32 %v1565, %v1776
        %v1778 = vpop.f32.mrb[0].mxu0
        %1779 = vmatprep.mubr.bf16.mxu0 %v1519
        %1780 = vmatmul.mubr.bf16.gmra.mrb[0].mxu0 %v1518
        %v1781 = vpop.f32.mrb[0].mxu0
        %v1782 = vadd.f32 %v1565, %v1781
        %v1783 = vpop.f32.mrb[0].mxu0
        %v1784 = vpop.f32.mrb[0].mxu0
        %v1785 = vadd.f32 %v1565, %v1784
        %v1786 = vpop.f32.mrb[0].mxu0
        %1787 = vmatprep.mubr.bf16.mxu0 %v1522
        %1788 = vmatmul.mubr.bf16.gmra.mrb[0].mxu0 %v1521
        %v1789 = vpop.f32.mrb[0].mxu0
        %v1790 = vadd.f32 %v1565, %v1789
        %v1791 = vpop.f32.mrb[0].mxu0
        %v1792 = vpop.f32.mrb[0].mxu0
        %v1793 = vadd.f32 %v1565, %v1792
        %v1794 = vpop.f32.mrb[0].mxu0
        %1795 = vdwg.mxu0
        %1796 = vmatprep.subr.bf16.mxu0 0
        %1797 = vmatpush1.bf16.msra.mxu0 %v1655
        %1798 = vmatprep.subr.bf16.mxu0 0
        %1799 = vmatpush1.bf16.msra.mxu0 %v1656
        %1800 = vmatprep.subr.bf16.mxu0 0
        %1801 = vmatpush1.bf16.msra.mxu0 0
        %1802 = vmatprep.subr.bf16.mxu0 0
        %1803 = vmatpush1.bf16.msra.mxu0 0
        %1804 = vmatprep.subr.bf16.mxu0 0
        %1805 = vmatpush1.bf16.msra.mxu0 0
        %1806 = vmatprep.subr.bf16.mxu0 0
        %1807 = vmatpush1.bf16.msra.mxu0 0
        %1808 = vmatprep.subr.bf16.mxu0 0
        %1809 = vmatpush1.bf16.msra.mxu0 0
        %1810 = vmatprep.subr.bf16.mxu0 0
        %1811 = vmatpush1.bf16.msra.mxu0 0
        %1812 = vmatprep.subr.bf16.mxu0 0
        %1813 = vmatpush1.bf16.msra.mxu0 0
        %1814 = vmatprep.subr.bf16.mxu0 0
        %1815 = vmatpush1.bf16.msra.mxu0 0
        %1816 = vmatprep.subr.bf16.mxu0 0
        %1817 = vmatpush1.bf16.msra.mxu0 0
        %1818 = vmatprep.subr.bf16.mxu0 0
        %1819 = vmatpush1.bf16.msra.mxu0 0
        %1820 = vmatprep.subr.bf16.mxu0 0
        %1821 = vmatpush1.bf16.msra.mxu0 0
        %1822 = vmatprep.subr.bf16.mxu0 0
        %1823 = vmatpush1.bf16.msra.mxu0 0
        %1824 = vmatprep.subr.bf16.mxu0 0
        %1825 = vmatpush1.bf16.msra.mxu0 0
        %1826 = vmatprep.subr.bf16.mxu0 0
        %1827 = vmatpush1.bf16.msra.mxu0 0
        %1828 = vmatprep.mubr.bf16.mxu0 0
        %1829 = vmatmul.mubr.bf16.gmra.mrb[0].mxu0 %v1676
        %v1830 = vpop.f32.mrb[0].mxu0
        %v1831 = vadd.f32 %v1734, %v1830
        %v1832 = vpop.f32.mrb[0].mxu0
        %v1833 = vpop.f32.mrb[0].mxu0
        %v1834 = vadd.f32 %v1737, %v1833
        %v1835 = vpop.f32.mrb[0].mxu0
        %1836 = vmatprep.mubr.bf16.mxu0 0
        %1837 = vmatmul.mubr.bf16.gmra.mrb[0].mxu0 %v1679
        %v1838 = vpop.f32.mrb[0].mxu0
        %v1839 = vadd.f32 %v1742, %v1838
        %v1840 = vpop.f32.mrb[0].mxu0
        %v1841 = vpop.f32.mrb[0].mxu0
        %v1842 = vadd.f32 %v1745, %v1841
        %v1843 = vpop.f32.mrb[0].mxu0
        %1844 = vmatprep.mubr.bf16.mxu0 0
        %1845 = vmatmul.mubr.bf16.gmra.mrb[0].mxu0 %v1682
        %v1846 = vpop.f32.mrb[0].mxu0
        %v1847 = vadd.f32 %v1750, %v1846
        %v1848 = vpop.f32.mrb[0].mxu0
        %v1849 = vpop.f32.mrb[0].mxu0
        %v1850 = vadd.f32 %v1753, %v1849
        %v1851 = vpop.f32.mrb[0].mxu0
        %1852 = vmatprep.mubr.bf16.mxu0 0
        %1853 = vmatmul.mubr.bf16.gmra.mrb[0].mxu0 %v1685
        %v1854 = vpop.f32.mrb[0].mxu0
        %v1855 = vadd.f32 %v1758, %v1854
        %v1856 = vpop.f32.mrb[0].mxu0
        %v1857 = vpop.f32.mrb[0].mxu0
        %v1858 = vadd.f32 %v1761, %v1857
        %v1859 = vpop.f32.mrb[0].mxu0
        %1860 = vmatprep.mubr.bf16.mxu0 0
        %1861 = vmatmul.mubr.bf16.gmra.mrb[0].mxu0 %v1688
        %v1862 = vpop.f32.mrb[0].mxu0
        %v1863 = vadd.f32 %v1766, %v1862
        %v1864 = vpop.f32.mrb[0].mxu0
        %v1865 = vpop.f32.mrb[0].mxu0
        %v1866 = vadd.f32 %v1769, %v1865
        %v1867 = vpop.f32.mrb[0].mxu0
        %1868 = vmatprep.mubr.bf16.mxu0 0
        %1869 = vmatmul.mubr.bf16.gmra.mrb[0].mxu0 %v1691
        %v1870 = vpop.f32.mrb[0].mxu0
        %v1871 = vadd.f32 %v1774, %v1870
        %v1872 = vpop.f32.mrb[0].mxu0
        %v1873 = vpop.f32.mrb[0].mxu0
        %v1874 = vadd.f32 %v1777, %v1873
        %v1875 = vpop.f32.mrb[0].mxu0
        %1876 = vmatprep.mubr.bf16.mxu0 0
        %1877 = vmatmul.mubr.bf16.gmra.mrb[0].mxu0 %v1694
        %v1878 = vpop.f32.mrb[0].mxu0
        %v1879 = vadd.f32 %v1782, %v1878
        %v1880 = vpop.f32.mrb[0].mxu0
        %v1881 = vpop.f32.mrb[0].mxu0
        %v1882 = vadd.f32 %v1785, %v1881
        %v1883 = vpop.f32.mrb[0].mxu0
        %1884 = vmatprep.mubr.bf16.mxu0 0
        %1885 = vmatmul.mubr.bf16.gmra.mrb[0].mxu0 %v1697
        %v1886 = vpop.f32.mrb[0].mxu0
        %v1887 = vadd.f32 %v1790, %v1886
        %v1888 = vpop.f32.mrb[0].mxu0
        %v1889 = vpop.f32.mrb[0].mxu0
        %v1890 = vadd.f32 %v1793, %v1889
        %v1891 = vpop.f32.mrb[0].mxu0
        %1892 = vdwg.mxu0
        %v1893 = vmax.f32 %v1831, 0.0
        %v1894 = vmax.f32 %v1834, 0.0
        %v1895 = vmax.f32 %v1839, 0.0
        %v1896 = vmax.f32 %v1842, 0.0
        %v1897 = vmax.f32 %v1847, 0.0
        %v1898 = vmax.f32 %v1850, 0.0
        %v1899 = vmax.f32 %v1855, 0.0
        %v1900 = vmax.f32 %v1858, 0.0
        %v1901 = vmax.f32 %v1863, 0.0
        %v1902 = vmax.f32 %v1866, 0.0
        %v1903 = vmax.f32 %v1871, 0.0
        %v1904 = vmax.f32 %v1874, 0.0
        %v1905 = vmax.f32 %v1879, 0.0
        %v1906 = vmax.f32 %v1882, 0.0
        %v1907 = vmax.f32 %v1887, 0.0
        %v1908 = vmax.f32 %v1890, 0.0
        %v1909 = vpack.c.bf16 %v1893, %v1893
        %v1910 = vpack.c.bf16 %v1894, %v1894
        %v1911 = vpack.c.bf16 %v1895, %v1895
        %v1912 = vpack.c.bf16 %v1896, %v1896
        %v1913 = vpack.c.bf16 %v1897, %v1897
        %v1914 = vpack.c.bf16 %v1898, %v1898
        %v1915 = vpack.c.bf16 %v1899, %v1899
        %v1916 = vpack.c.bf16 %v1900, %v1900
        %v1917 = vpack.c.bf16 %v1901, %v1901
        %v1918 = vpack.c.bf16 %v1902, %v1902
        %v1919 = vpack.c.bf16 %v1903, %v1903
        %v1920 = vpack.c.bf16 %v1904, %v1904
        %v1921 = vpack.c.bf16 %v1905, %v1905
        %v1922 = vpack.c.bf16 %v1906, %v1906
        %v1923 = vpack.c.bf16 %v1907, %v1907
        %v1924 = vpack.c.bf16 %v1908, %v1908
        %v1941 = vunpack.c.l.b16 %v1909
        %v1942 = vunpack.c.l.b16 %v1910
        %v1943 = vunpack.c.l.b16 %v1911
        %v1944 = vunpack.c.l.b16 %v1912
        %v1945 = vunpack.c.l.b16 %v1913
        %v1946 = vunpack.c.l.b16 %v1914
        %v1947 = vunpack.c.l.b16 %v1915
        %v1948 = vunpack.c.l.b16 %v1916
        %v1949 = vunpack.c.l.b16 %v1917
        %v1950 = vunpack.c.l.b16 %v1918
        %v1951 = vunpack.c.l.b16 %v1919
        %v1952 = vunpack.c.l.b16 %v1920
        %v1953 = vunpack.c.l.b16 %v1921
        %v1954 = vunpack.c.l.b16 %v1922
        %v1955 = vunpack.c.l.b16 %v1923
        %v1956 = vunpack.c.l.b16 %v1924
        %v1957 = vpack.c.b16 %v1941, %v1941
        %v1958 = vpack.c.b16 %v1942, %v1942
        %v1959 = vpack.c.b16 %v1943, %v1943
        %v1960 = vpack.c.b16 %v1944, %v1944
        %v1961 = vpack.c.b16 %v1945, %v1945
        %v1962 = vpack.c.b16 %v1946, %v1946
        %v1963 = vpack.c.b16 %v1947, %v1947
        %v1964 = vpack.c.b16 %v1948, %v1948
        %v1965 = vpack.c.b16 %v1949, %v1949
        %v1966 = vpack.c.b16 %v1950, %v1950
        %v1967 = vpack.c.b16 %v1951, %v1951
        %v1968 = vpack.c.b16 %v1952, %v1952
        %v1969 = vpack.c.b16 %v1953, %v1953
        %v1970 = vpack.c.b16 %v1954, %v1954
        %v1971 = vpack.c.b16 %v1955, %v1955
        %v1972 = vpack.c.b16 %v1956, %v1956
        %v1974 = vshrl.u32 %v1957, 16
        %v1976 = vrot.slane %v1974, 7
        %v1977 = vshll.u32 %v1957, 16
        %v1979 = vor.u32 %v1976, %v1977
        %v1980 = vrot.slane %v1976, 4
        %v1982 = vshrl.u32 %v1958, 16
        %v1984 = vrot.slane %v1982, 7
        %v1985 = vshll.u32 %v1958, 16
        %v1987 = vor.u32 %v1984, %v1985
        %v1988 = vrot.slane %v1984, 4
        %v1990 = vshrl.u32 %v1959, 16
        %v1992 = vrot.slane %v1990, 7
        %v1993 = vshll.u32 %v1959, 16
        %v1995 = vor.u32 %v1992, %v1993
        %v1996 = vrot.slane %v1992, 4
        %v1998 = vshrl.u32 %v1960, 16
        %v2000 = vrot.slane %v1998, 7
        %v2001 = vshll.u32 %v1960, 16
        %v2003 = vor.u32 %v2000, %v2001
        %v2004 = vrot.slane %v2000, 4
        %v2006 = vshrl.u32 %v1961, 16
        %v2008 = vrot.slane %v2006, 7
        %v2009 = vshll.u32 %v1961, 16
        %v2011 = vor.u32 %v2008, %v2009
        %v2012 = vrot.slane %v2008, 4
        %v2014 = vshrl.u32 %v1962, 16
        %v2016 = vrot.slane %v2014, 7
        %v2017 = vshll.u32 %v1962, 16
        %v2019 = vor.u32 %v2016, %v2017
        %v2020 = vrot.slane %v2016, 4
        %v2022 = vshrl.u32 %v1963, 16
        %v2024 = vrot.slane %v2022, 7
        %v2025 = vshll.u32 %v1963, 16
        %v2027 = vor.u32 %v2024, %v2025
        %v2028 = vrot.slane %v2024, 4
        %v2030 = vshrl.u32 %v1964, 16
        %v2032 = vrot.slane %v2030, 7
        %v2033 = vshll.u32 %v1964, 16
        %v2035 = vor.u32 %v2032, %v2033
        %v2036 = vrot.slane %v2032, 4
        %v2038 = vshrl.u32 %v1965, 16
        %v2040 = vrot.slane %v2038, 7
        %v2041 = vshll.u32 %v1965, 16
        %v2043 = vor.u32 %v2040, %v2041
        %v2044 = vrot.slane %v2040, 4
        %v2046 = vshrl.u32 %v1966, 16
        %v2048 = vrot.slane %v2046, 7
        %v2049 = vshll.u32 %v1966, 16
        %v2051 = vor.u32 %v2048, %v2049
        %v2052 = vrot.slane %v2048, 4
        %v2054 = vshrl.u32 %v1967, 16
        %v2056 = vrot.slane %v2054, 7
        %v2057 = vshll.u32 %v1967, 16
        %v2059 = vor.u32 %v2056, %v2057
        %v2060 = vrot.slane %v2056, 4
        %v2062 = vshrl.u32 %v1968, 16
        %v2064 = vrot.slane %v2062, 7
        %v2065 = vshll.u32 %v1968, 16
        %v2067 = vor.u32 %v2064, %v2065
        %v2068 = vrot.slane %v2064, 4
        %v2070 = vshrl.u32 %v1969, 16
        %v2072 = vrot.slane %v2070, 7
        %v2073 = vshll.u32 %v1969, 16
        %v2075 = vor.u32 %v2072, %v2073
        %v2076 = vrot.slane %v2072, 4
        %v2078 = vshrl.u32 %v1970, 16
        %v2080 = vrot.slane %v2078, 7
        %v2081 = vshll.u32 %v1970, 16
        %v2083 = vor.u32 %v2080, %v2081
        %v2084 = vrot.slane %v2080, 4
        %v2086 = vshrl.u32 %v1971, 16
        %v2088 = vrot.slane %v2086, 7
        %v2089 = vshll.u32 %v1971, 16
        %v2091 = vor.u32 %v2088, %v2089
        %v2092 = vrot.slane %v2088, 4
        %v2094 = vshrl.u32 %v1972, 16
        %v2096 = vrot.slane %v2094, 7
        %v2097 = vshll.u32 %v1972, 16
        %v2099 = vor.u32 %v2096, %v2097
        %v2100 = vrot.slane %v2096, 4
        %v2133 = vld [vmem:[%s241] sm:$0xf]
        %v2134 = vsel %vm584, %v1979, %v2133
        %2135 = vst [vmem:[%s241] sm:$0xf] %v2134
        %v2136 = vld [vmem:[%s241 + $0x4] sm:$0x1]
        %v2137 = vsel %vm244, %v1980, %v2136
        %2138 = vst [vmem:[%s241 + $0x4] sm:$0x1] %v2137
        %v2139 = vld [vmem:[%s241 + $0x8] sm:$0xf]
        %v2140 = vsel %vm584, %v1987, %v2139
        %2141 = vst [vmem:[%s241 + $0x8] sm:$0xf] %v2140
        %v2142 = vld [vmem:[%s241 + $0xc] sm:$0x1]
        %v2143 = vsel %vm244, %v1988, %v2142
        %2144 = vst [vmem:[%s241 + $0xc] sm:$0x1] %v2143
        %v2145 = vld [vmem:[%s241 + $0x10] sm:$0xf]
        %v2146 = vsel %vm584, %v1995, %v2145
        %2147 = vst [vmem:[%s241 + $0x10] sm:$0xf] %v2146
        %v2148 = vld [vmem:[%s241 + $0x14] sm:$0x1]
        %v2149 = vsel %vm244, %v1996, %v2148
        %2150 = vst [vmem:[%s241 + $0x14] sm:$0x1] %v2149
        %v2151 = vld [vmem:[%s241 + $0x18] sm:$0xf]
        %v2152 = vsel %vm584, %v2003, %v2151
        %2153 = vst [vmem:[%s241 + $0x18] sm:$0xf] %v2152
        %v2154 = vld [vmem:[%s241 + $0x1c] sm:$0x1]
        %v2155 = vsel %vm244, %v2004, %v2154
        %2156 = vst [vmem:[%s241 + $0x1c] sm:$0x1] %v2155
        %v2157 = vld [vmem:[%s241 + $0x20] sm:$0xf]
        %v2158 = vsel %vm584, %v2011, %v2157
        %2159 = vst [vmem:[%s241 + $0x20] sm:$0xf] %v2158
        %v2160 = vld [vmem:[%s241 + $0x24] sm:$0x1]
        %v2161 = vsel %vm244, %v2012, %v2160
        %2162 = vst [vmem:[%s241 + $0x24] sm:$0x1] %v2161
        %v2163 = vld [vmem:[%s241 + $0x28] sm:$0xf]
        %v2164 = vsel %vm584, %v2019, %v2163
        %2165 = vst [vmem:[%s241 + $0x28] sm:$0xf] %v2164
        %v2166 = vld [vmem:[%s241 + $0x2c] sm:$0x1]
        %v2167 = vsel %vm244, %v2020, %v2166
        %2168 = vst [vmem:[%s241 + $0x2c] sm:$0x1] %v2167
        %v2169 = vld [vmem:[%s241 + $0x30] sm:$0xf]
        %v2170 = vsel %vm584, %v2027, %v2169
        %2171 = vst [vmem:[%s241 + $0x30] sm:$0xf] %v2170
        %v2172 = vld [vmem:[%s241 + $0x34] sm:$0x1]
        %v2173 = vsel %vm244, %v2028, %v2172
        %2174 = vst [vmem:[%s241 + $0x34] sm:$0x1] %v2173
        %v2175 = vld [vmem:[%s241 + $0x38] sm:$0xf]
        %v2176 = vsel %vm584, %v2035, %v2175
        %2177 = vst [vmem:[%s241 + $0x38] sm:$0xf] %v2176
        %v2178 = vld [vmem:[%s241 + $0x3c] sm:$0x1]
        %v2179 = vsel %vm244, %v2036, %v2178
        %2180 = vst [vmem:[%s241 + $0x3c] sm:$0x1] %v2179
        %v2181 = vld [vmem:[%s241 + $0x50] sm:$0xf]
        %v2182 = vsel %vm584, %v2043, %v2181
        %2183 = vst [vmem:[%s241 + $0x50] sm:$0xf] %v2182
        %v2184 = vld [vmem:[%s241 + $0x54] sm:$0x1]
        %v2185 = vsel %vm244, %v2044, %v2184
        %2186 = vst [vmem:[%s241 + $0x54] sm:$0x1] %v2185
        %v2187 = vld [vmem:[%s241 + $0x58] sm:$0xf]
        %v2188 = vsel %vm584, %v2051, %v2187
        %2189 = vst [vmem:[%s241 + $0x58] sm:$0xf] %v2188
        %v2190 = vld [vmem:[%s241 + $0x5c] sm:$0x1]
        %v2191 = vsel %vm244, %v2052, %v2190
        %2192 = vst [vmem:[%s241 + $0x5c] sm:$0x1] %v2191
        %v2193 = vld [vmem:[%s241 + $0x60] sm:$0xf]
        %v2194 = vsel %vm584, %v2059, %v2193
        %2195 = vst [vmem:[%s241 + $0x60] sm:$0xf] %v2194
        %v2196 = vld [vmem:[%s241 + $0x64] sm:$0x1]
        %v2197 = vsel %vm244, %v2060, %v2196
        %2198 = vst [vmem:[%s241 + $0x64] sm:$0x1] %v2197
        %v2199 = vld [vmem:[%s241 + $0x68] sm:$0xf]
        %v2200 = vsel %vm584, %v2067, %v2199
        %2201 = vst [vmem:[%s241 + $0x68] sm:$0xf] %v2200
        %v2202 = vld [vmem:[%s241 + $0x6c] sm:$0x1]
        %v2203 = vsel %vm244, %v2068, %v2202
        %2204 = vst [vmem:[%s241 + $0x6c] sm:$0x1] %v2203
        %v2205 = vld [vmem:[%s241 + $0x70] sm:$0xf]
        %v2206 = vsel %vm584, %v2075, %v2205
        %2207 = vst [vmem:[%s241 + $0x70] sm:$0xf] %v2206
        %v2208 = vld [vmem:[%s241 + $0x74] sm:$0x1]
        %v2209 = vsel %vm244, %v2076, %v2208
        %2210 = vst [vmem:[%s241 + $0x74] sm:$0x1] %v2209
        %v2211 = vld [vmem:[%s241 + $0x78] sm:$0xf]
        %v2212 = vsel %vm584, %v2083, %v2211
        %2213 = vst [vmem:[%s241 + $0x78] sm:$0xf] %v2212
        %v2214 = vld [vmem:[%s241 + $0x7c] sm:$0x1]
        %v2215 = vsel %vm244, %v2084, %v2214
        %2216 = vst [vmem:[%s241 + $0x7c] sm:$0x1] %v2215
        %v2217 = vld [vmem:[%s241 + $0x80] sm:$0xf]
        %v2218 = vsel %vm584, %v2091, %v2217
        %2219 = vst [vmem:[%s241 + $0x80] sm:$0xf] %v2218
        %v2220 = vld [vmem:[%s241 + $0x84] sm:$0x1]
        %v2221 = vsel %vm244, %v2092, %v2220
        %2222 = vst [vmem:[%s241 + $0x84] sm:$0x1] %v2221
        %v2223 = vld [vmem:[%s241 + $0x88] sm:$0xf]
        %v2224 = vsel %vm584, %v2099, %v2223
        %2225 = vst [vmem:[%s241 + $0x88] sm:$0xf] %v2224
        %v2226 = vld [vmem:[%s241 + $0x8c] sm:$0x1]
        %v2227 = vsel %vm244, %v2100, %v2226
        %2228 = vst [vmem:[%s241 + $0x8c] sm:$0x1] %v2227
        %v2229 = vld [vmem:[#allocation2] sm:$0xf]
        %v2230 = vld [vmem:[#allocation2 + $0x4] sm:$0x1]
        %v2231 = vld [vmem:[#allocation2 + $0x8] sm:$0xf]
        %v2232 = vld [vmem:[#allocation2 + $0xc] sm:$0x1]
        %v2233 = vld [vmem:[#allocation2 + $0x10] sm:$0xf]
        %v2234 = vld [vmem:[#allocation2 + $0x14] sm:$0x1]
        %v2235 = vld [vmem:[#allocation2 + $0x18] sm:$0xf]
        %v2236 = vld [vmem:[#allocation2 + $0x1c] sm:$0x1]
        %v2237 = vld [vmem:[#allocation2 + $0x20] sm:$0xf]
        %v2238 = vld [vmem:[#allocation2 + $0x24] sm:$0x1]
        %v2239 = vld [vmem:[#allocation2 + $0x28] sm:$0xf]
        %v2240 = vld [vmem:[#allocation2 + $0x2c] sm:$0x1]
        %v2241 = vld [vmem:[#allocation2 + $0x30] sm:$0xf]
        %v2242 = vld [vmem:[#allocation2 + $0x34] sm:$0x1]
        %v2243 = vld [vmem:[#allocation2 + $0x38] sm:$0xf]
        %v2244 = vld [vmem:[#allocation2 + $0x3c] sm:$0x1]
        %v2245 = vld [vmem:[#allocation2 + $0x40] sm:$0xf]
        %v2246 = vld [vmem:[#allocation2 + $0x44] sm:$0x1]
        %v2247 = vld [vmem:[#allocation2 + $0x48] sm:$0xf]
        %v2248 = vld [vmem:[#allocation2 + $0x4c] sm:$0x1]
        %v2249 = vld [vmem:[#allocation2 + $0x50] sm:$0xf]
        %v2250 = vld [vmem:[#allocation2 + $0x54] sm:$0x1]
        %v2251 = vld [vmem:[#allocation2 + $0x58] sm:$0xf]
        %v2252 = vld [vmem:[#allocation2 + $0x5c] sm:$0x1]
        %v2253 = vld [vmem:[#allocation2 + $0x60] sm:$0xf]
        %v2254 = vld [vmem:[#allocation2 + $0x64] sm:$0x1]
        %v2255 = vld [vmem:[#allocation2 + $0x68] sm:$0xf]
        %v2256 = vld [vmem:[#allocation2 + $0x6c] sm:$0x1]
        %v2257 = vld [vmem:[#allocation2 + $0x70] sm:$0xf]
        %v2258 = vld [vmem:[#allocation2 + $0x74] sm:$0x1]
        %v2259 = vld [vmem:[#allocation2 + $0x78] sm:$0xf]
        %v2260 = vld [vmem:[#allocation2 + $0x7c] sm:$0x1]
        %v2261 = vld [vmem:[#allocation2 + $0x80] sm:$0xf]
        %v2262 = vld [vmem:[#allocation2 + $0x84] sm:$0x1]
        %v2263 = vld [vmem:[#allocation2 + $0x88] sm:$0xf]
        %v2264 = vld [vmem:[#allocation2 + $0x8c] sm:$0x1]
        %v2265 = vld [vmem:[#allocation2 + $0x90] sm:$0xf]
        %v2266 = vld [vmem:[#allocation2 + $0x94] sm:$0x1]
        %v2267 = vld [vmem:[#allocation2 + $0x98] sm:$0xf]
        %v2268 = vld [vmem:[#allocation2 + $0x9c] sm:$0x1]
        %v2270 = vshrl.u32 %v2229, 16
        %v2272 = vrot.slane %v2270, 4
        %v2273 = vshll.u32 %v2229, 16
        %v2275 = vrot.slane %v2273, 5
        %v2276 = vor.u32 %v2272, %v2275
        %v2277 = vrot.slane %v2276, 4
        %v2279 = vshll.u32 %v2230, 16
        %v2281 = vrot.slane %v2279, 5
        %v2282 = vsel %vm723, %v2277, %v2281
        %v2284 = vshrl.u32 %v2231, 16
        %v2286 = vrot.slane %v2284, 4
        %v2287 = vshll.u32 %v2231, 16
        %v2289 = vrot.slane %v2287, 5
        %v2290 = vor.u32 %v2286, %v2289
        %v2291 = vrot.slane %v2290, 4
        %v2293 = vshll.u32 %v2232, 16
        %v2295 = vrot.slane %v2293, 5
        %v2296 = vsel %vm723, %v2291, %v2295
        %v2298 = vshrl.u32 %v2233, 16
        %v2300 = vrot.slane %v2298, 4
        %v2301 = vshll.u32 %v2233, 16
        %v2303 = vrot.slane %v2301, 5
        %v2304 = vor.u32 %v2300, %v2303
        %v2305 = vrot.slane %v2304, 4
        %v2307 = vshll.u32 %v2234, 16
        %v2309 = vrot.slane %v2307, 5
        %v2310 = vsel %vm723, %v2305, %v2309
        %v2312 = vshrl.u32 %v2235, 16
        %v2314 = vrot.slane %v2312, 4
        %v2315 = vshll.u32 %v2235, 16
        %v2317 = vrot.slane %v2315, 5
        %v2318 = vor.u32 %v2314, %v2317
        %v2319 = vrot.slane %v2318, 4
        %v2321 = vshll.u32 %v2236, 16
        %v2323 = vrot.slane %v2321, 5
        %v2324 = vsel %vm723, %v2319, %v2323
        %v2326 = vshrl.u32 %v2237, 16
        %v2328 = vrot.slane %v2326, 4
        %v2329 = vshll.u32 %v2237, 16
        %v2331 = vrot.slane %v2329, 5
        %v2332 = vor.u32 %v2328, %v2331
        %v2333 = vrot.slane %v2332, 4
        %v2335 = vshll.u32 %v2238, 16
        %v2337 = vrot.slane %v2335, 5
        %v2338 = vsel %vm723, %v2333, %v2337
        %v2340 = vshrl.u32 %v2239, 16
        %v2342 = vrot.slane %v2340, 4
        %v2343 = vshll.u32 %v2239, 16
        %v2345 = vrot.slane %v2343, 5
        %v2346 = vor.u32 %v2342, %v2345
        %v2347 = vrot.slane %v2346, 4
        %v2349 = vshll.u32 %v2240, 16
        %v2351 = vrot.slane %v2349, 5
        %v2352 = vsel %vm723, %v2347, %v2351
        %v2354 = vshrl.u32 %v2241, 16
        %v2356 = vrot.slane %v2354, 4
        %v2357 = vshll.u32 %v2241, 16
        %v2359 = vrot.slane %v2357, 5
        %v2360 = vor.u32 %v2356, %v2359
        %v2361 = vrot.slane %v2360, 4
        %v2363 = vshll.u32 %v2242, 16
        %v2365 = vrot.slane %v2363, 5
        %v2366 = vsel %vm723, %v2361, %v2365
        %v2368 = vshrl.u32 %v2243, 16
        %v2370 = vrot.slane %v2368, 4
        %v2371 = vshll.u32 %v2243, 16
        %v2373 = vrot.slane %v2371, 5
        %v2374 = vor.u32 %v2370, %v2373
        %v2375 = vrot.slane %v2374, 4
        %v2377 = vshll.u32 %v2244, 16
        %v2379 = vrot.slane %v2377, 5
        %v2380 = vsel %vm723, %v2375, %v2379
        %v2382 = vshrl.u32 %v2249, 16
        %v2384 = vrot.slane %v2382, 4
        %v2385 = vshll.u32 %v2249, 16
        %v2387 = vrot.slane %v2385, 5
        %v2388 = vor.u32 %v2384, %v2387
        %v2389 = vrot.slane %v2388, 4
        %v2391 = vshll.u32 %v2250, 16
        %v2393 = vrot.slane %v2391, 5
        %v2394 = vsel %vm723, %v2389, %v2393
        %v2396 = vshrl.u32 %v2251, 16
        %v2398 = vrot.slane %v2396, 4
        %v2399 = vshll.u32 %v2251, 16
        %v2401 = vrot.slane %v2399, 5
        %v2402 = vor.u32 %v2398, %v2401
        %v2403 = vrot.slane %v2402, 4
        %v2405 = vshll.u32 %v2252, 16
        %v2407 = vrot.slane %v2405, 5
        %v2408 = vsel %vm723, %v2403, %v2407
        %v2410 = vshrl.u32 %v2253, 16
        %v2412 = vrot.slane %v2410, 4
        %v2413 = vshll.u32 %v2253, 16
        %v2415 = vrot.slane %v2413, 5
        %v2416 = vor.u32 %v2412, %v2415
        %v2417 = vrot.slane %v2416, 4
        %v2419 = vshll.u32 %v2254, 16
        %v2421 = vrot.slane %v2419, 5
        %v2422 = vsel %vm723, %v2417, %v2421
        %v2424 = vshrl.u32 %v2255, 16
        %v2426 = vrot.slane %v2424, 4
        %v2427 = vshll.u32 %v2255, 16
        %v2429 = vrot.slane %v2427, 5
        %v2430 = vor.u32 %v2426, %v2429
        %v2431 = vrot.slane %v2430, 4
        %v2433 = vshll.u32 %v2256, 16
        %v2435 = vrot.slane %v2433, 5
        %v2436 = vsel %vm723, %v2431, %v2435
        %v2438 = vshrl.u32 %v2257, 16
        %v2440 = vrot.slane %v2438, 4
        %v2441 = vshll.u32 %v2257, 16
        %v2443 = vrot.slane %v2441, 5
        %v2444 = vor.u32 %v2440, %v2443
        %v2445 = vrot.slane %v2444, 4
        %v2447 = vshll.u32 %v2258, 16
        %v2449 = vrot.slane %v2447, 5
        %v2450 = vsel %vm723, %v2445, %v2449
        %v2452 = vshrl.u32 %v2259, 16
        %v2454 = vrot.slane %v2452, 4
        %v2455 = vshll.u32 %v2259, 16
        %v2457 = vrot.slane %v2455, 5
        %v2458 = vor.u32 %v2454, %v2457
        %v2459 = vrot.slane %v2458, 4
        %v2461 = vshll.u32 %v2260, 16
        %v2463 = vrot.slane %v2461, 5
        %v2464 = vsel %vm723, %v2459, %v2463
        %v2466 = vshrl.u32 %v2261, 16
        %v2468 = vrot.slane %v2466, 4
        %v2469 = vshll.u32 %v2261, 16
        %v2471 = vrot.slane %v2469, 5
        %v2472 = vor.u32 %v2468, %v2471
        %v2473 = vrot.slane %v2472, 4
        %v2475 = vshll.u32 %v2262, 16
        %v2477 = vrot.slane %v2475, 5
        %v2478 = vsel %vm723, %v2473, %v2477
        %v2480 = vshrl.u32 %v2263, 16
        %v2482 = vrot.slane %v2480, 4
        %v2483 = vshll.u32 %v2263, 16
        %v2485 = vrot.slane %v2483, 5
        %v2486 = vor.u32 %v2482, %v2485
        %v2487 = vrot.slane %v2486, 4
        %v2489 = vshll.u32 %v2264, 16
        %v2491 = vrot.slane %v2489, 5
        %v2492 = vsel %vm723, %v2487, %v2491
        %v2525 = vrot.slane %v2229, 5
        %v2526 = vrot.slane %v2525, 4
        %v2527 = vrot.slane %v2230, 5
        %v2528 = vsel %vm982, %v2526, %v2527
        %v2529 = vrot.slane %v2231, 5
        %v2530 = vrot.slane %v2529, 4
        %v2531 = vrot.slane %v2232, 5
        %v2532 = vsel %vm982, %v2530, %v2531
        %v2533 = vrot.slane %v2233, 5
        %v2534 = vrot.slane %v2533, 4
        %v2535 = vrot.slane %v2234, 5
        %v2536 = vsel %vm982, %v2534, %v2535
        %v2537 = vrot.slane %v2235, 5
        %v2538 = vrot.slane %v2537, 4
        %v2539 = vrot.slane %v2236, 5
        %v2540 = vsel %vm982, %v2538, %v2539
        %v2541 = vrot.slane %v2237, 5
        %v2542 = vrot.slane %v2541, 4
        %v2543 = vrot.slane %v2238, 5
        %v2544 = vsel %vm982, %v2542, %v2543
        %v2545 = vrot.slane %v2239, 5
        %v2546 = vrot.slane %v2545, 4
        %v2547 = vrot.slane %v2240, 5
        %v2548 = vsel %vm982, %v2546, %v2547
        %v2549 = vrot.slane %v2241, 5
        %v2550 = vrot.slane %v2549, 4
        %v2551 = vrot.slane %v2242, 5
        %v2552 = vsel %vm982, %v2550, %v2551
        %v2553 = vrot.slane %v2243, 5
        %v2554 = vrot.slane %v2553, 4
        %v2555 = vrot.slane %v2244, 5
        %v2556 = vsel %vm982, %v2554, %v2555
        %v2557 = vrot.slane %v2249, 5
        %v2558 = vrot.slane %v2557, 4
        %v2559 = vrot.slane %v2250, 5
        %v2560 = vsel %vm982, %v2558, %v2559
        %v2561 = vrot.slane %v2251, 5
        %v2562 = vrot.slane %v2561, 4
        %v2563 = vrot.slane %v2252, 5
        %v2564 = vsel %vm982, %v2562, %v2563
        %v2565 = vrot.slane %v2253, 5
        %v2566 = vrot.slane %v2565, 4
        %v2567 = vrot.slane %v2254, 5
        %v2568 = vsel %vm982, %v2566, %v2567
        %v2569 = vrot.slane %v2255, 5
        %v2570 = vrot.slane %v2569, 4
        %v2571 = vrot.slane %v2256, 5
        %v2572 = vsel %vm982, %v2570, %v2571
        %v2573 = vrot.slane %v2257, 5
        %v2574 = vrot.slane %v2573, 4
        %v2575 = vrot.slane %v2258, 5
        %v2576 = vsel %vm982, %v2574, %v2575
        %v2577 = vrot.slane %v2259, 5
        %v2578 = vrot.slane %v2577, 4
        %v2579 = vrot.slane %v2260, 5
        %v2580 = vsel %vm982, %v2578, %v2579
        %v2581 = vrot.slane %v2261, 5
        %v2582 = vrot.slane %v2581, 4
        %v2583 = vrot.slane %v2262, 5
        %v2584 = vsel %vm982, %v2582, %v2583
        %v2585 = vrot.slane %v2263, 5
        %v2586 = vrot.slane %v2585, 4
        %v2587 = vrot.slane %v2264, 5
        %v2588 = vsel %vm982, %v2586, %v2587
        %v2589 = vunpack.c.l.b16 %v2229
        %v2590 = vunpack.c.l.b16 %v2231
        %v2591 = vunpack.c.l.b16 %v2233
        %v2592 = vunpack.c.l.b16 %v2235
        %v2593 = vunpack.c.l.b16 %v2237
        %v2594 = vunpack.c.l.b16 %v2239
        %v2595 = vunpack.c.l.b16 %v2241
        %v2596 = vunpack.c.l.b16 %v2243
        %v2597 = vunpack.c.l.b16 %v2249
        %v2598 = vunpack.c.l.b16 %v2251
        %v2599 = vunpack.c.l.b16 %v2253
        %v2600 = vunpack.c.l.b16 %v2255
        %v2601 = vunpack.c.l.b16 %v2257
        %v2602 = vunpack.c.l.b16 %v2259
        %v2603 = vunpack.c.l.b16 %v2261
        %v2604 = vunpack.c.l.b16 %v2263
        %v2605 = vpack.c.b16 %v2590, %v2589
        %v2606 = vpack.c.b16 %v2592, %v2591
        %v2607 = vpack.c.b16 %v2594, %v2593
        %v2608 = vpack.c.b16 %v2596, %v2595
        %v2609 = vpack.c.b16 %v2598, %v2597
        %v2610 = vpack.c.b16 %v2600, %v2599
        %v2611 = vpack.c.b16 %v2602, %v2601
        %v2612 = vpack.c.b16 %v2604, %v2603
        %v2613 = vunpack.c.l.b16 %v2282
        %v2614 = vunpack.c.l.b16 %v2296
        %v2615 = vunpack.c.l.b16 %v2310
        %v2616 = vunpack.c.l.b16 %v2324
        %v2617 = vunpack.c.l.b16 %v2338
        %v2618 = vunpack.c.l.b16 %v2352
        %v2619 = vunpack.c.l.b16 %v2366
        %v2620 = vunpack.c.l.b16 %v2380
        %v2621 = vunpack.c.l.b16 %v2394
        %v2622 = vunpack.c.l.b16 %v2408
        %v2623 = vunpack.c.l.b16 %v2422
        %v2624 = vunpack.c.l.b16 %v2436
        %v2625 = vunpack.c.l.b16 %v2450
        %v2626 = vunpack.c.l.b16 %v2464
        %v2627 = vunpack.c.l.b16 %v2478
        %v2628 = vunpack.c.l.b16 %v2492
        %v2629 = vpack.c.b16 %v2614, %v2613
        %v2630 = vpack.c.b16 %v2616, %v2615
        %v2631 = vpack.c.b16 %v2618, %v2617
        %v2632 = vpack.c.b16 %v2620, %v2619
        %v2633 = vpack.c.b16 %v2622, %v2621
        %v2634 = vpack.c.b16 %v2624, %v2623
        %v2635 = vpack.c.b16 %v2626, %v2625
        %v2636 = vpack.c.b16 %v2628, %v2627
        %2637 = vrot.lane.b32.xlu0 %v2629, 32
        %v2638 = vpop.permute.xlu0 %2637
        %2639 = vrot.lane.b32.xlu0 %v2630, 32
        %v2640 = vpop.permute.xlu0 %2639
        %2641 = vrot.lane.b32.xlu0 %v2631, 32
        %v2642 = vpop.permute.xlu0 %2641
        %2643 = vrot.lane.b32.xlu0 %v2632, 32
        %v2644 = vpop.permute.xlu0 %2643
        %2645 = vrot.lane.b32.xlu0 %v2633, 32
        %v2646 = vpop.permute.xlu0 %2645
        %2647 = vrot.lane.b32.xlu0 %v2634, 32
        %v2648 = vpop.permute.xlu0 %2647
        %2649 = vrot.lane.b32.xlu0 %v2635, 32
        %v2650 = vpop.permute.xlu0 %2649
        %2651 = vrot.lane.b32.xlu0 %v2636, 32
        %v2652 = vpop.permute.xlu0 %2651
        %v2653 = vunpack.c.l.b16 %v2528
        %v2654 = vunpack.c.l.b16 %v2532
        %v2655 = vunpack.c.l.b16 %v2536
        %v2656 = vunpack.c.l.b16 %v2540
        %v2657 = vunpack.c.l.b16 %v2544
        %v2658 = vunpack.c.l.b16 %v2548
        %v2659 = vunpack.c.l.b16 %v2552
        %v2660 = vunpack.c.l.b16 %v2556
        %v2661 = vunpack.c.l.b16 %v2560
        %v2662 = vunpack.c.l.b16 %v2564
        %v2663 = vunpack.c.l.b16 %v2568
        %v2664 = vunpack.c.l.b16 %v2572
        %v2665 = vunpack.c.l.b16 %v2576
        %v2666 = vunpack.c.l.b16 %v2580
        %v2667 = vunpack.c.l.b16 %v2584
        %v2668 = vunpack.c.l.b16 %v2588
        %v2669 = vpack.c.b16 %v2654, %v2653
        %v2670 = vpack.c.b16 %v2656, %v2655
        %v2671 = vpack.c.b16 %v2658, %v2657
        %v2672 = vpack.c.b16 %v2660, %v2659
        %v2673 = vpack.c.b16 %v2662, %v2661
        %v2674 = vpack.c.b16 %v2664, %v2663
        %v2675 = vpack.c.b16 %v2666, %v2665
        %v2676 = vpack.c.b16 %v2668, %v2667
        %2677 = vrot.lane.b32.xlu0 %v2669, 64
        %v2678 = vpop.permute.xlu0 %2677
        %2679 = vrot.lane.b32.xlu0 %v2670, 64
        %v2680 = vpop.permute.xlu0 %2679
        %2681 = vrot.lane.b32.xlu0 %v2671, 64
        %v2682 = vpop.permute.xlu0 %2681
        %2683 = vrot.lane.b32.xlu0 %v2672, 64
        %v2684 = vpop.permute.xlu0 %2683
        %2685 = vrot.lane.b32.xlu0 %v2673, 64
        %v2686 = vpop.permute.xlu0 %2685
        %2687 = vrot.lane.b32.xlu0 %v2674, 64
        %v2688 = vpop.permute.xlu0 %2687
        %2689 = vrot.lane.b32.xlu0 %v2675, 64
        %v2690 = vpop.permute.xlu0 %2689
        %2691 = vrot.lane.b32.xlu0 %v2676, 64
        %v2692 = vpop.permute.xlu0 %2691
        %v2695 = vunpack.c.l.b16 %v2245
        %v2696 = vunpack.c.l.b16 %v2265
        %v2697 = vpack.c.b16 %v2591, %v2590
        %v2698 = vpack.c.b16 %v2593, %v2592
        %v2699 = vpack.c.b16 %v2595, %v2594
        %v2700 = vpack.c.b16 %v2695, %v2596
        %v2701 = vpack.c.b16 %v2599, %v2598
        %v2702 = vpack.c.b16 %v2601, %v2600
        %v2703 = vpack.c.b16 %v2603, %v2602
        %v2704 = vpack.c.b16 %v2696, %v2604
        %2705 = vrot.lane.b32.xlu0 %v2697, 96
        %v2706 = vpop.permute.xlu0 %2705
        %2707 = vrot.lane.b32.xlu0 %v2698, 96
        %v2708 = vpop.permute.xlu0 %2707
        %2709 = vrot.lane.b32.xlu0 %v2699, 96
        %v2710 = vpop.permute.xlu0 %2709
        %2711 = vrot.lane.b32.xlu0 %v2700, 96
        %v2712 = vpop.permute.xlu0 %2711
        %2713 = vrot.lane.b32.xlu0 %v2701, 96
        %v2714 = vpop.permute.xlu0 %2713
        %2715 = vrot.lane.b32.xlu0 %v2702, 96
        %v2716 = vpop.permute.xlu0 %2715
        %2717 = vrot.lane.b32.xlu0 %v2703, 96
        %v2718 = vpop.permute.xlu0 %2717
        %2719 = vrot.lane.b32.xlu0 %v2704, 96
        %v2720 = vpop.permute.xlu0 %2719
        %v2723 = vsel %vm1179, %v2605, %v2638
        %v2726 = vsel %vm1179, %v2606, %v2640
        %v2729 = vsel %vm1179, %v2607, %v2642
        %v2732 = vsel %vm1179, %v2608, %v2644
        %v2735 = vsel %vm1179, %v2609, %v2646
        %v2738 = vsel %vm1179, %v2610, %v2648
        %v2741 = vsel %vm1179, %v2611, %v2650
        %v2744 = vsel %vm1179, %v2612, %v2652
        %v2746 = vsel %vm1204, %v2723, %v2678
        %v2748 = vsel %vm1204, %v2726, %v2680
        %v2750 = vsel %vm1204, %v2729, %v2682
        %v2752 = vsel %vm1204, %v2732, %v2684
        %v2754 = vsel %vm1204, %v2735, %v2686
        %v2756 = vsel %vm1204, %v2738, %v2688
        %v2758 = vsel %vm1204, %v2741, %v2690
        %v2760 = vsel %vm1204, %v2744, %v2692
        %v2762 = vsel %vm1221, %v2746, %v2706
        %v2765 = vsel %vm1221, %v2748, %v2708
        %v2768 = vsel %vm1221, %v2750, %v2710
        %v2771 = vsel %vm1221, %v2752, %v2712
        %v2774 = vsel %vm1221, %v2754, %v2714
        %v2777 = vsel %vm1221, %v2756, %v2716
        %v2780 = vsel %vm1221, %v2758, %v2718
        %v2783 = vsel %vm1221, %v2760, %v2720
        %2785 = vst [vmem:[#allocation3] sm:$0xff] %v2762
        %2786 = vst [vmem:[#allocation3 + $0x18] sm:$0xff] %v2765
        %2787 = vst [vmem:[#allocation3 + $0x30] sm:$0xff] %v2768
        %2788 = vst [vmem:[#allocation3 + $0x48] sm:$0xff] %v2771
        %2789 = vst [vmem:[#allocation3 + $0x60] sm:$0xff] %v2774
        %2790 = vst [vmem:[#allocation3 + $0x78] sm:$0xff] %v2777
        %2791 = vst [vmem:[#allocation3 + $0x90] sm:$0xff] %v2780
        %2792 = vst [vmem:[#allocation3 + $0xa8] sm:$0xff] %v2783
        %v2794 = vshrl.u32 %v2245, 16
        %v2796 = vrot.slane %v2794, 4
        %v2797 = vshll.u32 %v2245, 16
        %v2799 = vrot.slane %v2797, 5
        %v2800 = vor.u32 %v2796, %v2799
        %v2801 = vrot.slane %v2800, 4
        %v2803 = vshll.u32 %v2246, 16
        %v2805 = vrot.slane %v2803, 5
        %v2806 = vsel %vm723, %v2801, %v2805
        %v2808 = vshrl.u32 %v2265, 16
        %v2810 = vrot.slane %v2808, 4
        %v2811 = vshll.u32 %v2265, 16
        %v2813 = vrot.slane %v2811, 5
        %v2814 = vor.u32 %v2810, %v2813
        %v2815 = vrot.slane %v2814, 4
        %v2817 = vshll.u32 %v2266, 16
        %v2819 = vrot.slane %v2817, 5
        %v2820 = vsel %vm723, %v2815, %v2819
        %v2823 = vrot.slane %v2245, 5
        %v2824 = vrot.slane %v2823, 4
        %v2825 = vrot.slane %v2246, 5
        %v2826 = vsel %vm982, %v2824, %v2825
        %v2827 = vrot.slane %v2265, 5
        %v2828 = vrot.slane %v2827, 4
        %v2829 = vrot.slane %v2266, 5
        %v2830 = vsel %vm982, %v2828, %v2829
        %v2832 = vshrl.u32 %v2247, 16
        %v2834 = vrot.slane %v2832, 4
        %v2835 = vshll.u32 %v2247, 16
        %v2837 = vrot.slane %v2835, 5
        %v2838 = vor.u32 %v2834, %v2837
        %v2839 = vrot.slane %v2838, 4
        %v2841 = vshll.u32 %v2248, 16
        %v2843 = vrot.slane %v2841, 5
        %v2844 = vsel %vm723, %v2839, %v2843
        %v2846 = vshrl.u32 %v2267, 16
        %v2848 = vrot.slane %v2846, 4
        %v2849 = vshll.u32 %v2267, 16
        %v2851 = vrot.slane %v2849, 5
        %v2852 = vor.u32 %v2848, %v2851
        %v2853 = vrot.slane %v2852, 4
        %v2855 = vshll.u32 %v2268, 16
        %v2857 = vrot.slane %v2855, 5
        %v2858 = vsel %vm723, %v2853, %v2857
        %v2859 = vunpack.c.l.b16 %v2806
        %v2860 = vunpack.c.l.b16 %v2820
        %v2861 = vpack.c.b16 %v2615, %v2614
        %v2862 = vpack.c.b16 %v2617, %v2616
        %v2863 = vpack.c.b16 %v2619, %v2618
        %v2864 = vpack.c.b16 %v2859, %v2620
        %v2865 = vpack.c.b16 %v2623, %v2622
        %v2866 = vpack.c.b16 %v2625, %v2624
        %v2867 = vpack.c.b16 %v2627, %v2626
        %v2868 = vpack.c.b16 %v2860, %v2628
        %v2869 = vunpack.c.l.b16 %v2826
        %v2870 = vunpack.c.l.b16 %v2830
        %v2871 = vpack.c.b16 %v2655, %v2654
        %v2872 = vpack.c.b16 %v2657, %v2656
        %v2873 = vpack.c.b16 %v2659, %v2658
        %v2874 = vpack.c.b16 %v2869, %v2660
        %v2875 = vpack.c.b16 %v2663, %v2662
        %v2876 = vpack.c.b16 %v2665, %v2664
        %v2877 = vpack.c.b16 %v2667, %v2666
        %v2878 = vpack.c.b16 %v2870, %v2668
        %2879 = vrot.lane.b32.xlu0 %v2871, 32
        %v2880 = vpop.permute.xlu0 %2879
        %2881 = vrot.lane.b32.xlu0 %v2872, 32
        %v2882 = vpop.permute.xlu0 %2881
        %2883 = vrot.lane.b32.xlu0 %v2873, 32
        %v2884 = vpop.permute.xlu0 %2883
        %2885 = vrot.lane.b32.xlu0 %v2874, 32
        %v2886 = vpop.permute.xlu0 %2885
        %2887 = vrot.lane.b32.xlu0 %v2875, 32
        %v2888 = vpop.permute.xlu0 %2887
        %2889 = vrot.lane.b32.xlu0 %v2876, 32
        %v2890 = vpop.permute.xlu0 %2889
        %2891 = vrot.lane.b32.xlu0 %v2877, 32
        %v2892 = vpop.permute.xlu0 %2891
        %2893 = vrot.lane.b32.xlu0 %v2878, 32
        %v2894 = vpop.permute.xlu0 %2893
        %v2897 = vunpack.c.l.b16 %v2247
        %v2898 = vunpack.c.l.b16 %v2267
        %v2899 = vpack.c.b16 %v2897, %v2695
        %v2900 = vpack.c.b16 %v2898, %v2696
        %2901 = vrot.lane.b32.xlu0 %v2606, 64
        %v2902 = vpop.permute.xlu0 %2901
        %2903 = vrot.lane.b32.xlu0 %v2607, 64
        %v2904 = vpop.permute.xlu0 %2903
        %2905 = vrot.lane.b32.xlu0 %v2608, 64
        %v2906 = vpop.permute.xlu0 %2905
        %2907 = vrot.lane.b32.xlu0 %v2899, 64
        %v2908 = vpop.permute.xlu0 %2907
        %2909 = vrot.lane.b32.xlu0 %v2610, 64
        %v2910 = vpop.permute.xlu0 %2909
        %2911 = vrot.lane.b32.xlu0 %v2611, 64
        %v2912 = vpop.permute.xlu0 %2911
        %2913 = vrot.lane.b32.xlu0 %v2612, 64
        %v2914 = vpop.permute.xlu0 %2913
        %2915 = vrot.lane.b32.xlu0 %v2900, 64
        %v2916 = vpop.permute.xlu0 %2915
        %v2917 = vunpack.c.l.b16 %v2844
        %v2918 = vunpack.c.l.b16 %v2858
        %v2919 = vpack.c.b16 %v2917, %v2859
        %v2920 = vpack.c.b16 %v2918, %v2860
        %2921 = vrot.lane.b32.xlu0 %v2630, 96
        %v2922 = vpop.permute.xlu0 %2921
        %2923 = vrot.lane.b32.xlu0 %v2631, 96
        %v2924 = vpop.permute.xlu0 %2923
        %2925 = vrot.lane.b32.xlu0 %v2632, 96
        %v2926 = vpop.permute.xlu0 %2925
        %2927 = vrot.lane.b32.xlu0 %v2919, 96
        %v2928 = vpop.permute.xlu0 %2927
        %2929 = vrot.lane.b32.xlu0 %v2634, 96
        %v2930 = vpop.permute.xlu0 %2929
        %2931 = vrot.lane.b32.xlu0 %v2635, 96
        %v2932 = vpop.permute.xlu0 %2931
        %2933 = vrot.lane.b32.xlu0 %v2636, 96
        %v2934 = vpop.permute.xlu0 %2933
        %2935 = vrot.lane.b32.xlu0 %v2920, 96
        %v2936 = vpop.permute.xlu0 %2935
        %v2939 = vsel %vm1179, %v2861, %v2880
        %v2942 = vsel %vm1179, %v2862, %v2882
        %v2945 = vsel %vm1179, %v2863, %v2884
        %v2948 = vsel %vm1179, %v2864, %v2886
        %v2951 = vsel %vm1179, %v2865, %v2888
        %v2954 = vsel %vm1179, %v2866, %v2890
        %v2957 = vsel %vm1179, %v2867, %v2892
        %v2960 = vsel %vm1179, %v2868, %v2894
        %v2962 = vsel %vm1204, %v2939, %v2902
        %v2964 = vsel %vm1204, %v2942, %v2904
        %v2966 = vsel %vm1204, %v2945, %v2906
        %v2968 = vsel %vm1204, %v2948, %v2908
        %v2970 = vsel %vm1204, %v2951, %v2910
        %v2972 = vsel %vm1204, %v2954, %v2912
        %v2974 = vsel %vm1204, %v2957, %v2914
        %v2976 = vsel %vm1204, %v2960, %v2916
        %v2978 = vsel %vm1221, %v2962, %v2922
        %v2981 = vsel %vm1221, %v2964, %v2924
        %v2984 = vsel %vm1221, %v2966, %v2926
        %v2987 = vsel %vm1221, %v2968, %v2928
        %v2990 = vsel %vm1221, %v2970, %v2930
        %v2993 = vsel %vm1221, %v2972, %v2932
        %v2996 = vsel %vm1221, %v2974, %v2934
        %v2999 = vsel %vm1221, %v2976, %v2936
        %3001 = vst [vmem:[#allocation3 + $0x8] sm:$0xff] %v2978
        %3002 = vst [vmem:[#allocation3 + $0x20] sm:$0xff] %v2981
        %3003 = vst [vmem:[#allocation3 + $0x38] sm:$0xff] %v2984
        %3004 = vst [vmem:[#allocation3 + $0x50] sm:$0xff] %v2987
        %3005 = vst [vmem:[#allocation3 + $0x68] sm:$0xff] %v2990
        %3006 = vst [vmem:[#allocation3 + $0x80] sm:$0xff] %v2993
        %3007 = vst [vmem:[#allocation3 + $0x98] sm:$0xff] %v2996
        %3008 = vst [vmem:[#allocation3 + $0xb0] sm:$0xff] %v2999
        %v3011 = vrot.slane %v2247, 5
        %v3012 = vrot.slane %v3011, 4
        %v3013 = vrot.slane %v2248, 5
        %v3014 = vsel %vm982, %v3012, %v3013
        %v3015 = vrot.slane %v2267, 5
        %v3016 = vrot.slane %v3015, 4
        %v3017 = vrot.slane %v2268, 5
        %v3018 = vsel %vm982, %v3016, %v3017
        %v3019 = vunpack.c.l.b16 %v3014
        %v3020 = vunpack.c.l.b16 %v3018
        %v3021 = vpack.c.b16 %v3019, %v2869
        %v3022 = vpack.c.b16 %v3020, %v2870
        %3031 = vst.msk [vmem:[#allocation3 + $0x10] sm:$0xff] %vm1179, %v2670
        %3032 = vst.msk [vmem:[#allocation3 + $0x28] sm:$0xff] %vm1179, %v2671
        %3033 = vst.msk [vmem:[#allocation3 + $0x40] sm:$0xff] %vm1179, %v2672
        %3034 = vst.msk [vmem:[#allocation3 + $0x58] sm:$0xff] %vm1179, %v3021
        %3035 = vst.msk [vmem:[#allocation3 + $0x70] sm:$0xff] %vm1179, %v2674
        %3036 = vst.msk [vmem:[#allocation3 + $0x88] sm:$0xff] %vm1179, %v2675
        %3037 = vst.msk [vmem:[#allocation3 + $0xa0] sm:$0xff] %vm1179, %v2676
        %3038 = vst.msk [vmem:[#allocation3 + $0xb8] sm:$0xff] %vm1179, %v3022
        %v3039 = vld [vmem:[#allocation3] sm:$0xff]
        %v3040 = vld [vmem:[#allocation3 + $0x8] sm:$0xff]
        %v3041 = vld [vmem:[#allocation3 + $0x10] sm:$0xff]
        %v3042 = vld [vmem:[#allocation3 + $0x18] sm:$0xff]
        %v3043 = vld [vmem:[#allocation3 + $0x20] sm:$0xff]
        %v3044 = vld [vmem:[#allocation3 + $0x28] sm:$0xff]
        %v3045 = vld [vmem:[#allocation3 + $0x30] sm:$0xff]
        %v3046 = vld [vmem:[#allocation3 + $0x38] sm:$0xff]
        %v3047 = vld [vmem:[#allocation3 + $0x40] sm:$0xff]
        %v3048 = vld [vmem:[#allocation3 + $0x48] sm:$0xff]
        %v3049 = vld [vmem:[#allocation3 + $0x50] sm:$0xff]
        %v3050 = vld [vmem:[#allocation3 + $0x58] sm:$0xff]
        %v3051 = vld [vmem:[#allocation3 + $0x60] sm:$0xff]
        %v3052 = vld [vmem:[#allocation3 + $0x68] sm:$0xff]
        %v3053 = vld [vmem:[#allocation3 + $0x70] sm:$0xff]
        %v3054 = vld [vmem:[#allocation3 + $0x78] sm:$0xff]
        %v3055 = vld [vmem:[#allocation3 + $0x80] sm:$0xff]
        %v3056 = vld [vmem:[#allocation3 + $0x88] sm:$0xff]
        %v3057 = vld [vmem:[#allocation3 + $0x90] sm:$0xff]
        %v3058 = vld [vmem:[#allocation3 + $0x98] sm:$0xff]
        %v3059 = vld [vmem:[#allocation3 + $0xa0] sm:$0xff]
        %v3060 = vld [vmem:[#allocation3 + $0xa8] sm:$0xff]
        %v3061 = vld [vmem:[#allocation3 + $0xb0] sm:$0xff]
        %v3062 = vld [vmem:[#allocation3 + $0xb8] sm:$0xff]
        %v3063 = vld [vmem:[%s3] sm:$0xf]
        %v3064 = vld [vmem:[%s3 + $0x4] sm:$0xf]
        %v3065 = vld [vmem:[%s3 + $0x8] sm:$0xf]
        %v3066 = vld [vmem:[%s3 + $0xc] sm:$0xf]
        %v3067 = vld [vmem:[%s3 + $0x10] sm:$0xf]
        %v3068 = vld [vmem:[%s3 + $0x14] sm:$0xf]
        %v3069 = vld [vmem:[%s3 + $0x18] sm:$0xf]
        %v3070 = vld [vmem:[%s3 + $0x1c] sm:$0xf]
        %v3071 = vld [vmem:[%s3 + $0x20] sm:$0xf]
        %v3072 = vld [vmem:[%s3 + $0x24] sm:$0xf]
        %v3073 = vld [vmem:[%s3 + $0x28] sm:$0xf]
        %v3074 = vld [vmem:[%s3 + $0x2c] sm:$0xf]
        %v3075 = vld [vmem:[%s3 + $0x30] sm:$0xf]
        %v3076 = vld [vmem:[%s3 + $0x34] sm:$0xf]
        %v3077 = vld [vmem:[%s3 + $0x38] sm:$0xf]
        %v3078 = vld [vmem:[%s3 + $0x3c] sm:$0xf]
        %v3079 = vld [vmem:[%s3 + $0x40] sm:$0xf]
        %v3080 = vld [vmem:[%s3 + $0x44] sm:$0xf]
        %v3081 = vld [vmem:[%s3 + $0x48] sm:$0xf]
        %v3082 = vld [vmem:[%s3 + $0x4c] sm:$0xf]
        %v3083 = vld [vmem:[%s3 + $0x50] sm:$0xf]
        %v3084 = vld [vmem:[%s3 + $0x54] sm:$0xf]
        %v3085 = vld [vmem:[%s3 + $0x58] sm:$0xf]
        %v3086 = vld [vmem:[%s3 + $0x5c] sm:$0xf]
        %v3087 = vld [vmem:[%s3 + $0x60] sm:$0xf]
        %v3088 = vld [vmem:[%s3 + $0x64] sm:$0xf]
        %v3089 = vld [vmem:[%s3 + $0x68] sm:$0xf]
        %v3090 = vld [vmem:[%s3 + $0x6c] sm:$0xf]
        %v3091 = vld [vmem:[%s3 + $0x70] sm:$0xf]
        %v3092 = vld [vmem:[%s3 + $0x74] sm:$0xf]
        %v3093 = vld [vmem:[%s3 + $0x78] sm:$0xf]
        %v3094 = vld [vmem:[%s3 + $0x7c] sm:$0xf]
        %v3095 = vld [vmem:[%s3 + $0x80] sm:$0xf]
        %v3096 = vld [vmem:[%s3 + $0x84] sm:$0xf]
        %v3097 = vld [vmem:[%s3 + $0x88] sm:$0xf]
        %v3098 = vld [vmem:[%s3 + $0x8c] sm:$0xf]
        %v3099 = vld [vmem:[%s4] sm:$0x1]
        %v3101 = vlaneseq
        %v3102 = vshrl.u32 %v3101, 7
        %v3103 = vsub.s32 0, %v3102
        %v3104 = vrot.slane %v3099, %v3103
        %v3142 = vunpack.c.l.b16 %v3063
        %v3143 = vunpack.c.l.b16 %v3064
        %v3144 = vunpack.c.l.b16 %v3065
        %v3145 = vunpack.c.l.b16 %v3066
        %v3146 = vunpack.c.l.b16 %v3067
        %v3147 = vunpack.c.l.b16 %v3068
        %v3148 = vunpack.c.l.b16 %v3069
        %v3149 = vunpack.c.l.b16 %v3070
        %v3150 = vunpack.c.l.b16 %v3071
        %v3151 = vunpack.c.l.b16 %v3072
        %v3152 = vunpack.c.l.b16 %v3073
        %v3153 = vunpack.c.l.b16 %v3074
        %v3154 = vunpack.c.l.b16 %v3075
        %v3155 = vunpack.c.l.b16 %v3076
        %v3156 = vunpack.c.l.b16 %v3077
        %v3157 = vunpack.c.l.b16 %v3078
        %v3158 = vunpack.c.l.b16 %v3079
        %v3159 = vunpack.c.l.b16 %v3080
        %v3160 = vunpack.c.l.b16 %v3081
        %v3161 = vunpack.c.l.b16 %v3082
        %v3162 = vunpack.c.l.b16 %v3083
        %v3163 = vunpack.c.l.b16 %v3084
        %v3164 = vunpack.c.l.b16 %v3085
        %v3165 = vunpack.c.l.b16 %v3086
        %v3166 = vunpack.c.l.b16 %v3087
        %v3167 = vunpack.c.l.b16 %v3088
        %v3168 = vunpack.c.l.b16 %v3089
        %v3169 = vunpack.c.l.b16 %v3090
        %v3170 = vunpack.c.l.b16 %v3091
        %v3171 = vunpack.c.l.b16 %v3092
        %v3172 = vunpack.c.l.b16 %v3093
        %v3173 = vunpack.c.l.b16 %v3094
        %v3174 = vunpack.c.l.b16 %v3095
        %v3175 = vunpack.c.l.b16 %v3096
        %v3176 = vunpack.c.l.b16 %v3097
        %v3177 = vunpack.c.l.b16 %v3098
        %v3178 = vpack.c.b16 %v3143, %v3142
        %v3179 = vpack.c.b16 %v3145, %v3144
        %v3180 = vpack.c.b16 %v3147, %v3146
        %v3181 = vpack.c.b16 %v3149, %v3148
        %v3182 = vpack.c.b16 %v3151, %v3150
        %v3183 = vpack.c.b16 %v3153, %v3152
        %v3184 = vpack.c.b16 %v3155, %v3154
        %v3185 = vpack.c.b16 %v3157, %v3156
        %v3186 = vpack.c.b16 %v3159, %v3158
        %v3187 = vpack.c.b16 %v3161, %v3160
        %v3188 = vpack.c.b16 %v3163, %v3162
        %v3189 = vpack.c.b16 %v3165, %v3164
        %v3190 = vpack.c.b16 %v3167, %v3166
        %v3191 = vpack.c.b16 %v3169, %v3168
        %v3192 = vpack.c.b16 %v3171, %v3170
        %v3193 = vpack.c.b16 %v3173, %v3172
        %v3194 = vpack.c.b16 %v3175, %v3174
        %v3195 = vpack.c.b16 %v3177, %v3176
        %v3215 = vsel %vm1179, %v3041, 0
        %v3218 = vsel %vm1179, %v3044, 0
        %v3221 = vsel %vm1179, %v3047, 0
        %v3224 = vsel %vm1179, %v3050, 0
        %v3227 = vsel %vm1179, %v3053, 0
        %v3230 = vsel %vm1179, %v3056, 0
        %v3233 = vsel %vm1179, %v3059, 0
        %v3236 = vsel %vm1179, %v3062, 0
        %3238 = vmatprep.subr.bf16.mxu0 0
        %3239 = vmatpush1.bf16.msra.mxu0 %v3178
        %3240 = vmatprep.subr.bf16.mxu0 0
        %3241 = vmatpush1.bf16.msra.mxu0 %v3179
        %3242 = vmatprep.subr.bf16.mxu0 0
        %3243 = vmatpush1.bf16.msra.mxu0 %v3180
        %3244 = vmatprep.subr.bf16.mxu0 0
        %3245 = vmatpush1.bf16.msra.mxu0 %v3181
        %3246 = vmatprep.subr.bf16.mxu0 0
        %3247 = vmatpush1.bf16.msra.mxu0 %v3182
        %3248 = vmatprep.subr.bf16.mxu0 0
        %3249 = vmatpush1.bf16.msra.mxu0 %v3183
        %3250 = vmatprep.subr.bf16.mxu0 0
        %3251 = vmatpush1.bf16.msra.mxu0 %v3184
        %3252 = vmatprep.subr.bf16.mxu0 0
        %3253 = vmatpush1.bf16.msra.mxu0 %v3185
        %3254 = vmatprep.subr.bf16.mxu0 0
        %3255 = vmatpush1.bf16.msra.mxu0 %v3186
        %3256 = vmatprep.subr.bf16.mxu0 0
        %3257 = vmatpush1.bf16.msra.mxu0 %v3187
        %3258 = vmatprep.subr.bf16.mxu0 0
        %3259 = vmatpush1.bf16.msra.mxu0 %v3188
        %3260 = vmatprep.subr.bf16.mxu0 0
        %3261 = vmatpush1.bf16.msra.mxu0 %v3189
        %3262 = vmatprep.subr.bf16.mxu0 0
        %3263 = vmatpush1.bf16.msra.mxu0 %v3190
        %3264 = vmatprep.subr.bf16.mxu0 0
        %3265 = vmatpush1.bf16.msra.mxu0 %v3191
        %3266 = vmatprep.subr.bf16.mxu0 0
        %3267 = vmatpush1.bf16.msra.mxu0 %v3192
        %3268 = vmatprep.subr.bf16.mxu0 0
        %3269 = vmatpush1.bf16.msra.mxu0 %v3193
        %3270 = vmatprep.mubr.bf16.mxu0 %v3040
        %3271 = vmatmul.mubr.bf16.gmra.mrb[0].mxu0 %v3039
        %v3272 = vpop.f32.mrb[0].mxu0
        %v3273 = vadd.f32 %v3104, %v3272
        %v3274 = vpop.f32.mrb[0].mxu0
        %v3275 = vpop.f32.mrb[0].mxu0
        %v3276 = vadd.f32 %v3104, %v3275
        %v3277 = vpop.f32.mrb[0].mxu0
        %3278 = vmatprep.mubr.bf16.mxu0 %v3043
        %3279 = vmatmul.mubr.bf16.gmra.mrb[0].mxu0 %v3042
        %v3280 = vpop.f32.mrb[0].mxu0
        %v3281 = vadd.f32 %v3104, %v3280
        %v3282 = vpop.f32.mrb[0].mxu0
        %v3283 = vpop.f32.mrb[0].mxu0
        %v3284 = vadd.f32 %v3104, %v3283
        %v3285 = vpop.f32.mrb[0].mxu0
        %3286 = vmatprep.mubr.bf16.mxu0 %v3046
        %3287 = vmatmul.mubr.bf16.gmra.mrb[0].mxu0 %v3045
        %v3288 = vpop.f32.mrb[0].mxu0
        %v3289 = vadd.f32 %v3104, %v3288
        %v3290 = vpop.f32.mrb[0].mxu0
        %v3291 = vpop.f32.mrb[0].mxu0
        %v3292 = vadd.f32 %v3104, %v3291
        %v3293 = vpop.f32.mrb[0].mxu0
        %3294 = vmatprep.mubr.bf16.mxu0 %v3049
        %3295 = vmatmul.mubr.bf16.gmra.mrb[0].mxu0 %v3048
        %v3296 = vpop.f32.mrb[0].mxu0
        %v3297 = vadd.f32 %v3104, %v3296
        %v3298 = vpop.f32.mrb[0].mxu0
        %v3299 = vpop.f32.mrb[0].mxu0
        %v3300 = vadd.f32 %v3104, %v3299
        %v3301 = vpop.f32.mrb[0].mxu0
        %3302 = vmatprep.mubr.bf16.mxu0 %v3052
        %3303 = vmatmul.mubr.bf16.gmra.mrb[0].mxu0 %v3051
        %v3304 = vpop.f32.mrb[0].mxu0
        %v3305 = vadd.f32 %v3104, %v3304
        %v3306 = vpop.f32.mrb[0].mxu0
        %v3307 = vpop.f32.mrb[0].mxu0
        %v3308 = vadd.f32 %v3104, %v3307
        %v3309 = vpop.f32.mrb[0].mxu0
        %3310 = vmatprep.mubr.bf16.mxu0 %v3055
        %3311 = vmatmul.mubr.bf16.gmra.mrb[0].mxu0 %v3054
        %v3312 = vpop.f32.mrb[0].mxu0
        %v3313 = vadd.f32 %v3104, %v3312
        %v3314 = vpop.f32.mrb[0].mxu0
        %v3315 = vpop.f32.mrb[0].mxu0
        %v3316 = vadd.f32 %v3104, %v3315
        %v3317 = vpop.f32.mrb[0].mxu0
        %3318 = vmatprep.mubr.bf16.mxu0 %v3058
        %3319 = vmatmul.mubr.bf16.gmra.mrb[0].mxu0 %v3057
        %v3320 = vpop.f32.mrb[0].mxu0
        %v3321 = vadd.f32 %v3104, %v3320
        %v3322 = vpop.f32.mrb[0].mxu0
        %v3323 = vpop.f32.mrb[0].mxu0
        %v3324 = vadd.f32 %v3104, %v3323
        %v3325 = vpop.f32.mrb[0].mxu0
        %3326 = vmatprep.mubr.bf16.mxu0 %v3061
        %3327 = vmatmul.mubr.bf16.gmra.mrb[0].mxu0 %v3060
        %v3328 = vpop.f32.mrb[0].mxu0
        %v3329 = vadd.f32 %v3104, %v3328
        %v3330 = vpop.f32.mrb[0].mxu0
        %v3331 = vpop.f32.mrb[0].mxu0
        %v3332 = vadd.f32 %v3104, %v3331
        %v3333 = vpop.f32.mrb[0].mxu0
        %3334 = vdwg.mxu0
        %3335 = vmatprep.subr.bf16.mxu0 0
        %3336 = vmatpush1.bf16.msra.mxu0 %v3194
        %3337 = vmatprep.subr.bf16.mxu0 0
        %3338 = vmatpush1.bf16.msra.mxu0 %v3195
        %3339 = vmatprep.subr.bf16.mxu0 0
        %3340 = vmatpush1.bf16.msra.mxu0 0
        %3341 = vmatprep.subr.bf16.mxu0 0
        %3342 = vmatpush1.bf16.msra.mxu0 0
        %3343 = vmatprep.subr.bf16.mxu0 0
        %3344 = vmatpush1.bf16.msra.mxu0 0
        %3345 = vmatprep.subr.bf16.mxu0 0
        %3346 = vmatpush1.bf16.msra.mxu0 0
        %3347 = vmatprep.subr.bf16.mxu0 0
        %3348 = vmatpush1.bf16.msra.mxu0 0
        %3349 = vmatprep.subr.bf16.mxu0 0
        %3350 = vmatpush1.bf16.msra.mxu0 0
        %3351 = vmatprep.subr.bf16.mxu0 0
        %3352 = vmatpush1.bf16.msra.mxu0 0
        %3353 = vmatprep.subr.bf16.mxu0 0
        %3354 = vmatpush1.bf16.msra.mxu0 0
        %3355 = vmatprep.subr.bf16.mxu0 0
        %3356 = vmatpush1.bf16.msra.mxu0 0
        %3357 = vmatprep.subr.bf16.mxu0 0
        %3358 = vmatpush1.bf16.msra.mxu0 0
        %3359 = vmatprep.subr.bf16.mxu0 0
        %3360 = vmatpush1.bf16.msra.mxu0 0
        %3361 = vmatprep.subr.bf16.mxu0 0
        %3362 = vmatpush1.bf16.msra.mxu0 0
        %3363 = vmatprep.subr.bf16.mxu0 0
        %3364 = vmatpush1.bf16.msra.mxu0 0
        %3365 = vmatprep.subr.bf16.mxu0 0
        %3366 = vmatpush1.bf16.msra.mxu0 0
        %3367 = vmatprep.mubr.bf16.mxu0 0
        %3368 = vmatmul.mubr.bf16.gmra.mrb[0].mxu0 %v3215
        %v3369 = vpop.f32.mrb[0].mxu0
        %v3370 = vadd.f32 %v3273, %v3369
        %v3371 = vpop.f32.mrb[0].mxu0
        %v3372 = vpop.f32.mrb[0].mxu0
        %v3373 = vadd.f32 %v3276, %v3372
        %v3374 = vpop.f32.mrb[0].mxu0
        %3375 = vmatprep.mubr.bf16.mxu0 0
        %3376 = vmatmul.mubr.bf16.gmra.mrb[0].mxu0 %v3218
        %v3377 = vpop.f32.mrb[0].mxu0
        %v3378 = vadd.f32 %v3281, %v3377
        %v3379 = vpop.f32.mrb[0].mxu0
        %v3380 = vpop.f32.mrb[0].mxu0
        %v3381 = vadd.f32 %v3284, %v3380
        %v3382 = vpop.f32.mrb[0].mxu0
        %3383 = vmatprep.mubr.bf16.mxu0 0
        %3384 = vmatmul.mubr.bf16.gmra.mrb[0].mxu0 %v3221
        %v3385 = vpop.f32.mrb[0].mxu0
        %v3386 = vadd.f32 %v3289, %v3385
        %v3387 = vpop.f32.mrb[0].mxu0
        %v3388 = vpop.f32.mrb[0].mxu0
        %v3389 = vadd.f32 %v3292, %v3388
        %v3390 = vpop.f32.mrb[0].mxu0
        %3391 = vmatprep.mubr.bf16.mxu0 0
        %3392 = vmatmul.mubr.bf16.gmra.mrb[0].mxu0 %v3224
        %v3393 = vpop.f32.mrb[0].mxu0
        %v3394 = vadd.f32 %v3297, %v3393
        %v3395 = vpop.f32.mrb[0].mxu0
        %v3396 = vpop.f32.mrb[0].mxu0
        %v3397 = vadd.f32 %v3300, %v3396
        %v3398 = vpop.f32.mrb[0].mxu0
        %3399 = vmatprep.mubr.bf16.mxu0 0
        %3400 = vmatmul.mubr.bf16.gmra.mrb[0].mxu0 %v3227
        %v3401 = vpop.f32.mrb[0].mxu0
        %v3402 = vadd.f32 %v3305, %v3401
        %v3403 = vpop.f32.mrb[0].mxu0
        %v3404 = vpop.f32.mrb[0].mxu0
        %v3405 = vadd.f32 %v3308, %v3404
        %v3406 = vpop.f32.mrb[0].mxu0
        %3407 = vmatprep.mubr.bf16.mxu0 0
        %3408 = vmatmul.mubr.bf16.gmra.mrb[0].mxu0 %v3230
        %v3409 = vpop.f32.mrb[0].mxu0
        %v3410 = vadd.f32 %v3313, %v3409
        %v3411 = vpop.f32.mrb[0].mxu0
        %v3412 = vpop.f32.mrb[0].mxu0
        %v3413 = vadd.f32 %v3316, %v3412
        %v3414 = vpop.f32.mrb[0].mxu0
        %3415 = vmatprep.mubr.bf16.mxu0 0
        %3416 = vmatmul.mubr.bf16.gmra.mrb[0].mxu0 %v3233
        %v3417 = vpop.f32.mrb[0].mxu0
        %v3418 = vadd.f32 %v3321, %v3417
        %v3419 = vpop.f32.mrb[0].mxu0
        %v3420 = vpop.f32.mrb[0].mxu0
        %v3421 = vadd.f32 %v3324, %v3420
        %v3422 = vpop.f32.mrb[0].mxu0
        %3423 = vmatprep.mubr.bf16.mxu0 0
        %3424 = vmatmul.mubr.bf16.gmra.mrb[0].mxu0 %v3236
        %v3425 = vpop.f32.mrb[0].mxu0
        %v3426 = vadd.f32 %v3329, %v3425
        %v3427 = vpop.f32.mrb[0].mxu0
        %v3428 = vpop.f32.mrb[0].mxu0
        %v3429 = vadd.f32 %v3332, %v3428
        %v3430 = vpop.f32.mrb[0].mxu0
        %3431 = vdwg.mxu0
        %v3432 = vadd.f32 %v3370, %v343
        %v3433 = vadd.f32 %v3373, %v344
        %v3434 = vadd.f32 %v3378, %v345
        %v3435 = vadd.f32 %v3381, %v346
        %v3436 = vadd.f32 %v3386, %v347
        %v3437 = vadd.f32 %v3389, %v348
        %v3438 = vadd.f32 %v3394, %v349
        %v3439 = vadd.f32 %v3397, %v350
        %v3440 = vadd.f32 %v3402, %v351
        %v3441 = vadd.f32 %v3405, %v352
        %v3442 = vadd.f32 %v3410, %v353
        %v3443 = vadd.f32 %v3413, %v354
        %v3444 = vadd.f32 %v3418, %v355
        %v3445 = vadd.f32 %v3421, %v356
        %v3446 = vadd.f32 %v3426, %v357
        %v3447 = vadd.f32 %v3429, %v358
        %v3448 = vmax.f32 %v3432, 0.0
        %v3449 = vmax.f32 %v3433, 0.0
        %v3450 = vmax.f32 %v3434, 0.0
        %v3451 = vmax.f32 %v3435, 0.0
        %v3452 = vmax.f32 %v3436, 0.0
        %v3453 = vmax.f32 %v3437, 0.0
        %v3454 = vmax.f32 %v3438, 0.0
        %v3455 = vmax.f32 %v3439, 0.0
        %v3456 = vmax.f32 %v3440, 0.0
        %v3457 = vmax.f32 %v3441, 0.0
        %v3458 = vmax.f32 %v3442, 0.0
        %v3459 = vmax.f32 %v3443, 0.0
        %v3460 = vmax.f32 %v3444, 0.0
        %v3461 = vmax.f32 %v3445, 0.0
        %v3462 = vmax.f32 %v3446, 0.0
        %v3463 = vmax.f32 %v3447, 0.0
        %3464 = vst.msk [vmem:[%s220] sm:$0xff] %vm1179, %v3448
        %3465 = vst.msk [vmem:[%s220 + $0x8] sm:$0xff] %vm1179, %v3449
        %3466 = vst.msk [vmem:[%s220 + $0x10] sm:$0xff] %vm1179, %v3450
        %3467 = vst.msk [vmem:[%s220 + $0x18] sm:$0xff] %vm1179, %v3451
        %3468 = vst.msk [vmem:[%s220 + $0x20] sm:$0xff] %vm1179, %v3452
        %3469 = vst.msk [vmem:[%s220 + $0x28] sm:$0xff] %vm1179, %v3453
        %3470 = vst.msk [vmem:[%s220 + $0x30] sm:$0xff] %vm1179, %v3454
        %3471 = vst.msk [vmem:[%s220 + $0x38] sm:$0xff] %vm1179, %v3455
        %3472 = vst.msk [vmem:[%s220 + $0x40] sm:$0xff] %vm1179, %v3456
        %3473 = vst.msk [vmem:[%s220 + $0x48] sm:$0xff] %vm1179, %v3457
        %3474 = vst.msk [vmem:[%s220 + $0x50] sm:$0xff] %vm1179, %v3458
        %3475 = vst.msk [vmem:[%s220 + $0x58] sm:$0xff] %vm1179, %v3459
        %3476 = vst.msk [vmem:[%s220 + $0x60] sm:$0xff] %vm1179, %v3460
        %3477 = vst.msk [vmem:[%s220 + $0x68] sm:$0xff] %vm1179, %v3461
        %3478 = vst.msk [vmem:[%s220 + $0x70] sm:$0xff] %vm1179, %v3462
        %3479 = vst.msk [vmem:[%s220 + $0x78] sm:$0xff] %vm1179, %v3463
        %s3480 = sand.u32 %s137, 1
        %s3481 = scalar_lea.sflag [#allocation5], %s3480
        %s3482 = sand.u32 %s137, 1
        %s3483 = smul.addr %s3482, 128
        %s3484 = scalar_lea.vmem [#allocation4], %s3483
        // Predicated region
        $region41: #{residual_block_forward_nhwc.1} parent=39 // pred_check
          %p3485 = pneg %p147
        $region42: #{residual_block_forward_nhwc.1} parent=39 // pred_check_branch
          %3487 = sbr.rel (%p3485) target = $region44
        $region43: #{residual_block_forward_nhwc.1} parent=39 // pred_region
          %s3488 = smul.u32 16, %s19
          %s3490 = ssub.s32 2048, 2048
          %3491 = vsyncadd %s3481, %s3490
          %s3492 = smul.addr %s3488, 128
          %s3493 = scalar_lea.hbm %s5, %s3492
          %s3494 = sshll.u32 %s3484, 4
          %s3495 = int_to_ptr.vmem [resolvable:$true] %s3494
          %3500 = dma.vmem_to_hbm [thread:$0]  %s3495, 2048, %s3493, %s3481, 128, 128, 8
        $region44: #{residual_block_forward_nhwc.1} parent=39 // pred_fallthru
          _
      $region40: #{residual_block_forward_nhwc.1} parent=5 // pred_fallthru
        _
      %p3501 = scmp.le.s32.totalorder 2, %s14
      // Predicated region
      $region45: #{residual_block_forward_nhwc.1} parent=5 // pred_check
        %p3502 = pneg %p3501
      $region46: #{residual_block_forward_nhwc.1} parent=5 // pred_check_branch
        %3504 = sbr.rel (%p3502) target = $region48
      $region47: #{residual_block_forward_nhwc.1} parent=5 // pred_region
        %s3505 = ssub.s32 %s14, 2
        // Predicated region
        $region49: #{residual_block_forward_nhwc.1} parent=47 // pred_check
          %p3506 = pneg %p153
        $region50: #{residual_block_forward_nhwc.1} parent=47 // pred_check_branch
          %3508 = sbr.rel (%p3506) target = $region52
        $region51: #{residual_block_forward_nhwc.1} parent=47 // pred_region
          %s3509 = sand.u32 %s138, 1
          %s3510 = scalar_lea.sflag [#allocation5], %s3509
          %s3511 = sand.u32 %s138, 1
          %s3512 = smul.addr %s3511, 128
          %s3513 = scalar_lea.vmem [#allocation4], %s3512
          %3514 = dma.done %s3510, 2048
        $region52: #{residual_block_forward_nhwc.1} parent=47 // pred_fallthru
          _
      $region48: #{residual_block_forward_nhwc.1} parent=5 // pred_fallthru
        _
    $region6: #{residual_block_forward_nhwc.1} parent=1 // loop_footer
      %s18 = sadd.s32 1, %s14
    $region7: #{residual_block_forward_nhwc.1} parent=1 // loop_footer_branch
      %13 = sbr.rel target = $region3
    $region8: #{residual_block_forward_nhwc.1} parent=1 // loop_exit
      _
    %3515 = vsyncpa [#allocation5], 1
    %s3516 = scalar_lea.sflag [#allocation5], 1
    %3517 = vsyncpa %s3516, 1

</llo_original>
